<compile_context>
chip_gen: v7x
topology: tpu7x:2x2x1
jax: 0.10.0
libtpu: 0.0.40
codegen_flags: <defaults>
</compile_context>

<pallas_src>
import jax
import jax.numpy as jnp
from jax import lax
from jax.experimental import pallas as pl
from jax.experimental.pallas import tpu as pltpu

# ---- model hyper-parameters (small, consistent with the module) -------------
HIDDEN = 32                       # hidden_dim
NUM_CB = 8                        # num_codebooks (forward always uses 8)
VOCAB = 256                       # codebook_size
EXPAND = 1.5
D_INNER = int(HIDDEN * EXPAND)    # 48
H2 = HIDDEN // 2                  # 16
N_MAMBA = 4
EPS = 1e-5                        # nn.LayerNorm default eps


# ---- in-kernel math helpers --------------------------------------------------
def _sigmoid(x):
    # 1/(1+exp(-x)) with the divide on the EUP approximate-reciprocal slot.
    return pl.reciprocal(1.0 + jnp.exp(-x), approx=True)


def _gelu_tanh(x):
    # tanh-GELU (EUP tanh); |err| vs torch's exact-erf GELU ~1e-3, far inside
    # the comparison tolerance.
    c = 0.7978845608028654  # sqrt(2/pi)
    return 0.5 * x * (1.0 + jnp.tanh(c * (x + 0.044715 * x * x * x)))


def _layernorm(x, w, b):
    m = jnp.mean(x, axis=-1, keepdims=True)
    v = jnp.mean((x - m) ** 2, axis=-1, keepdims=True)
    return (x - m) * lax.rsqrt(v + EPS) * w + b


# =============================================================================
# Single fused kernel: embeddings + ctx add -> 4x Mamba block -> 8 output heads
# grid = (B // BBLK,), BBLK batch rows per grid step ("parallel" -> both TCs)
# =============================================================================
def fused_forward_kernel(tok_ref, ctx_ref, etab_ref, elnw_ref, elnb_ref,
                         mlnw_ref, mlnb_ref, mwin_ref, mwconv_ref,
                         mwdt_ref, mbdt_ref, mwout_ref, mscale_ref,
                         hw1_ref, hb1_ref, hw2_ref, hb2_ref,
                         out_ref):
    BBLK, T, _ = tok_ref.shape
    M = BBLK * T
    tok = tok_ref[...].reshape(M, NUM_CB)                     # (M, C) int32

    # ---- embeddings via one-hot bf16 MXU "gather" (0/1 exact in bf16) + LN + mean
    vocab_iota = lax.broadcasted_iota(jnp.int32, (M, VOCAB), 1)
    acc = jnp.zeros((M, HIDDEN), jnp.float32)
    for c in range(NUM_CB):                                   # static unroll (8)
        onehot = (tok[:, c:c + 1] == vocab_iota).astype(jnp.bfloat16)     # (M, V)
        e = jnp.dot(onehot, etab_ref[c], preferred_element_type=jnp.float32)  # (M, H)
        acc = acc + _layernorm(e, elnw_ref[c], elnb_ref[c])
    ctxb = jnp.broadcast_to(ctx_ref[...], (BBLK, T, HIDDEN)).reshape(M, HIDDEN)
    x = acc * (1.0 / NUM_CB) + ctxb                           # (M, H); ctx proj hoisted

    # ---- conv boundary masks, built ONCE per grid step (hoisted out of loop)
    t_idx = lax.broadcasted_iota(jnp.int32, (BBLK, T, D_INNER), 1).reshape(M, D_INNER)
    first_row = t_idx == 0
    last_row = t_idx == T - 1

    # ---- 4 Mamba blocks, activation stays resident (no HBM round-trips)
    for l in range(N_MAMBA):                                  # static unroll (4)
        xn = _layernorm(x, mlnw_ref[l], mlnb_ref[l])
        xp = jnp.dot(xn.astype(jnp.bfloat16), mwin_ref[l],
                     preferred_element_type=jnp.float32)      # (M, 2*Di)
        x1 = xp[:, :D_INNER]
        x2 = xp[:, D_INNER:]

        # depthwise Conv1d, k=3, pad=1, no bias, along T (per sequence).
        # XLU roll + per-sequence boundary masks (also zeroes cross-batch rows).
        prev = jnp.where(first_row, 0.0, pltpu.roll(x1, shift=1, axis=0))
        nxt = jnp.where(last_row, 0.0, pltpu.roll(x1, shift=M - 1, axis=0))
        wc = mwconv_ref[l]                                    # (3, Di)
        x1c = prev * wc[0:1, :] + x1 * wc[1:2, :] + nxt * wc[2:3, :]

        x1s = x1c * _sigmoid(x1c)                             # SiLU
        dt = jnp.dot(x1s.astype(jnp.bfloat16), mwdt_ref[l],
                     preferred_element_type=jnp.float32) + mbdt_ref[l]
        # sigmoid(softplus(dt)) == 1 - 1/(2 + exp(dt)); clamp dt to avoid overflow
        gate = 1.0 - pl.reciprocal(2.0 + jnp.exp(jnp.minimum(dt, 30.0)), approx=True)
        xg = x1s * gate * _sigmoid(x2)
        out = jnp.dot(xg.astype(jnp.bfloat16), mwout_ref[l],
                      preferred_element_type=jnp.float32)
        x = out * mscale_ref[l] + x                           # layer_scale + residual

    # ---- output heads: shared normalize, per-head LN affine folded into the
    # stacked (H, C*H2)=(32,128) first projection, then ONE block-diagonal
    # (128, 2048) matmul straight into the lane-dense output slab.
    m = jnp.mean(x, axis=-1, keepdims=True)
    v = jnp.mean((x - m) ** 2, axis=-1, keepdims=True)
    xhat = (x - m) * lax.rsqrt(v + EPS)                       # (M, H)
    h = jnp.dot(xhat.astype(jnp.bfloat16), hw1_ref[...],
                preferred_element_type=jnp.float32) + hb1_ref[...]
    h = _gelu_tanh(h)                                         # (M, C*H2)
    logits = jnp.dot(h.astype(jnp.bfloat16), hw2_ref[...],
                     preferred_element_type=jnp.float32) + hb2_ref[...]   # (M, C*V)
    out_ref[...] = logits.reshape(BBLK, T, NUM_CB * VOCAB)    # lane-dense store


def _pick_batch_block(B, T):
    # Keep >=2 grid steps when B>=2 so v7x's two TensorCores both get work,
    # otherwise as large as possible; bound the resident logits slab to
    # ~512 rows x 2048 f32 (~4 MiB) per step.
    max_rows = 512
    bblk = max(1, min(B // 2 if B >= 2 else 1, max(1, max_rows // max(T, 1))))
    while B % bblk:
        bblk -= 1
    return max(bblk, 1)


def fused_forward(tokens_tc, ctx, p, hw1, hb1, hw2, hb2):
    B, T, _ = tokens_tc.shape
    bblk = _pick_batch_block(B, T)
    const3 = lambda b: (0, 0, 0)
    const2 = lambda b: (0, 0)
    bf16 = jnp.bfloat16
    out_flat = pl.pallas_call(
        fused_forward_kernel,
        out_shape=jax.ShapeDtypeStruct((B, T, NUM_CB * VOCAB), jnp.float32),
        grid=(B // bblk,),
        in_specs=[
            pl.BlockSpec((bblk, T, NUM_CB), lambda b: (b, 0, 0)),         # tokens (B,T,C)
            pl.BlockSpec((bblk, 1, HIDDEN), lambda b: (b, 0, 0)),         # ctx proj (B,1,H)
            pl.BlockSpec((NUM_CB, VOCAB, HIDDEN), const3),                # emb tables (resident, bf16)
            pl.BlockSpec((NUM_CB, 1, HIDDEN), const3),                    # emb LN w
            pl.BlockSpec((NUM_CB, 1, HIDDEN), const3),                    # emb LN b
            pl.BlockSpec((N_MAMBA, 1, HIDDEN), const3),                   # mamba LN w
            pl.BlockSpec((N_MAMBA, 1, HIDDEN), const3),                   # mamba LN b
            pl.BlockSpec((N_MAMBA, HIDDEN, 2 * D_INNER), const3),         # in_proj (bf16)
            pl.BlockSpec((N_MAMBA, 3, D_INNER), const3),                  # conv weight
            pl.BlockSpec((N_MAMBA, D_INNER, D_INNER), const3),            # dt_proj w (bf16)
            pl.BlockSpec((N_MAMBA, 1, D_INNER), const3),                  # dt_proj b
            pl.BlockSpec((N_MAMBA, D_INNER, HIDDEN), const3),             # out_proj (bf16)
            pl.BlockSpec((N_MAMBA, 1, HIDDEN), const3),                   # layer_scale
            pl.BlockSpec((HIDDEN, NUM_CB * H2), const2),                  # stacked head w1 (LN folded, bf16)
            pl.BlockSpec((1, NUM_CB * H2), const2),                       # stacked head b1
            pl.BlockSpec((NUM_CB * H2, NUM_CB * VOCAB), const2),          # block-diag head w2 (bf16)
            pl.BlockSpec((1, NUM_CB * VOCAB), const2),                    # flat head b2
        ],
        out_specs=pl.BlockSpec((bblk, T, NUM_CB * VOCAB), lambda b: (b, 0, 0)),
        compiler_params=pltpu.CompilerParams(dimension_semantics=("parallel",)),
    )(tokens_tc, ctx,
      p["emb_tables"].astype(bf16), p["emb_ln_w"], p["emb_ln_b"],
      p["m_ln_w"], p["m_ln_b"], p["m_w_in"].astype(bf16), p["m_w_conv"],
      p["m_w_dt"].astype(bf16), p["m_b_dt"], p["m_w_out"].astype(bf16),
      p["m_scale"], hw1, hb1, hw2, hb2)
    return out_flat


# =============================================================================
# parameter init (deterministic, in-script) + full forward
# =============================================================================
def init_params(key):
    keys = iter(jax.random.split(key, 32))

    def nrm(shape, scale):
        return jax.random.normal(next(keys), shape, jnp.float32) * scale

    def nrm_mxu(shape, scale):
        # matmul weights are fed to the MXU in bf16; pre-round so the f32
        # reference uses identical effective weights.
        return nrm(shape, scale).astype(jnp.bfloat16).astype(jnp.float32)

    p = {
        "emb_tables": nrm_mxu((NUM_CB, VOCAB, HIDDEN), 1.0),
        "emb_ln_w": 1.0 + nrm((NUM_CB, 1, HIDDEN), 0.1),
        "emb_ln_b": nrm((NUM_CB, 1, HIDDEN), 0.1),
        "w_ctx": nrm((HIDDEN, HIDDEN), HIDDEN ** -0.5),
        "b_ctx": nrm((1, HIDDEN), 0.1),
        # stacked mamba layer params, leading axis = layer
        "m_ln_w": 1.0 + nrm((N_MAMBA, 1, HIDDEN), 0.1),
        "m_ln_b": nrm((N_MAMBA, 1, HIDDEN), 0.1),
        "m_w_in": nrm_mxu((N_MAMBA, HIDDEN, 2 * D_INNER), HIDDEN ** -0.5),
        "m_w_conv": nrm((N_MAMBA, 3, D_INNER), 3 ** -0.5),
        "m_w_dt": nrm_mxu((N_MAMBA, D_INNER, D_INNER), D_INNER ** -0.5),
        "m_b_dt": nrm((N_MAMBA, 1, D_INNER), 0.1),
        "m_w_out": nrm_mxu((N_MAMBA, D_INNER, HIDDEN), D_INNER ** -0.5),
        "m_scale": 0.1 * jnp.ones((N_MAMBA, 1, HIDDEN), jnp.float32),
        # stacked head params, leading axis = codebook
        "head_ln_w": 1.0 + nrm((NUM_CB, 1, HIDDEN), 0.1),
        "head_ln_b": nrm((NUM_CB, 1, HIDDEN), 0.1),
        "head_w1": nrm_mxu((NUM_CB, HIDDEN, H2), HIDDEN ** -0.5),
        "head_b1": nrm((NUM_CB, 1, H2), 0.1),
        "head_w2": nrm_mxu((NUM_CB, H2, VOCAB), H2 ** -0.5),
        "head_b2": nrm((NUM_CB, 1, VOCAB), 0.1),
    }
    return p


def forward(params, audio_tokens, text_context):
    B, C, T = audio_tokens.shape
    if C < NUM_CB:                       # pad missing codebooks with token id 0
        pad = jnp.zeros((B, NUM_CB - C, T), audio_tokens.dtype)
        audio_tokens = jnp.concatenate([audio_tokens, pad], axis=1)
    elif C > NUM_CB:
        audio_tokens = audio_tokens[:, :NUM_CB, :]

    # tokens as (B, T, C) so the kernel can compare against a lane-iota directly
    tokens_tc = jnp.transpose(audio_tokens, (0, 2, 1)).astype(jnp.int32)

    # text-context projection hoisted out of the kernel (one batched matmul)
    ctx = (text_context @ params["w_ctx"] + params["b_ctx"])[:, None, :]   # (B, 1, H)

    # fold per-head LayerNorm affine into the first head Linear, stack heads:
    # LN_c(x)@W1_c + b1_c == xhat @ (g_c[:,None]*W1_c) + (beta_c@W1_c + b1_c)
    w1_fold = params["head_ln_w"][:, 0, :, None] * params["head_w1"]       # (C, H, H2)
    b1_fold = (jnp.einsum("ch,chk->ck", params["head_ln_b"][:, 0, :], params["head_w1"])
               + params["head_b1"][:, 0, :])                               # (C, H2)
    hw1 = jnp.transpose(w1_fold, (1, 0, 2)).reshape(HIDDEN, NUM_CB * H2)
    hw1 = hw1.astype(jnp.bfloat16)                                         # (32, 128)
    hb1 = b1_fold.reshape(1, NUM_CB * H2)                                  # (1, 128)

    # block-diagonal second head projection: ONE (M,128)@(128,2048) matmul
    hw2 = jnp.zeros((NUM_CB * H2, NUM_CB * VOCAB), jnp.float32)
    for c in range(NUM_CB):
        hw2 = hw2.at[c * H2:(c + 1) * H2, c * VOCAB:(c + 1) * VOCAB].set(
            params["head_w2"][c])
    hw2 = hw2.astype(jnp.bfloat16)                                         # (128, 2048)
    hb2 = params["head_b2"].reshape(1, NUM_CB * VOCAB)                     # (1, 2048)

    out_flat = fused_forward(tokens_tc, ctx, params, hw1, hb1, hw2, hb2)   # (B, T, C*V)
    # (B, T, C*V) -> (B, C, T, V)  (matches torch.stack(logits, dim=1))
    return jnp.transpose(out_flat.reshape(B, T, NUM_CB, VOCAB), (0, 2, 1, 3))


# ---- pure-JAX f32 reference for a correctness sanity check --------------------
def forward_ref(params, audio_tokens, text_context):
    B, C, T = audio_tokens.shape
    if C < NUM_CB:
        audio_tokens = jnp.concatenate(
            [audio_tokens, jnp.zeros((B, NUM_CB - C, T), audio_tokens.dtype)], axis=1)
    elif C > NUM_CB:
        audio_tokens = audio_tokens[:, :NUM_CB, :]

    def ln(x, w, b):
        m = x.mean(-1, keepdims=True)
        v = ((x - m) ** 2).mean(-1, keepdims=True)
        return (x - m) / jnp.sqrt(v + EPS) * w + b

    embs = []
    for c in range(NUM_CB):
        e = params["emb_tables"][c][audio_tokens[:, c, :]]
        embs.append(ln(e, params["emb_ln_w"][c, 0], params["emb_ln_b"][c, 0]))
    x = jnp.stack(embs, 1).mean(1)
    x = x + (text_context @ params["w_ctx"] + params["b_ctx"])[:, None, :]

    for l in range(N_MAMBA):
        res = x
        xn = ln(x, params["m_ln_w"][l, 0], params["m_ln_b"][l, 0])
        xp = xn @ params["m_w_in"][l]
        x1, x2 = xp[..., :D_INNER], xp[..., D_INNER:]
        x1p = jnp.pad(x1, ((0, 0), (1, 1), (0, 0)))
        wc = params["m_w_conv"][l]
        x1c = x1p[:, :-2] * wc[0] + x1p[:, 1:-1] * wc[1] + x1p[:, 2:] * wc[2]
        x1s = jax.nn.silu(x1c)
        dt = jax.nn.softplus(x1s @ params["m_w_dt"][l] + params["m_b_dt"][l, 0])
        xg = x1s * jax.nn.sigmoid(dt) * jax.nn.sigmoid(x2)
        x = (xg @ params["m_w_out"][l]) * params["m_scale"][l, 0] + res

    logits = []
    for c in range(NUM_CB):
        xn = ln(x, params["head_ln_w"][c, 0], params["head_ln_b"][c, 0])
        h = jax.nn.gelu(xn @ params["head_w1"][c] + params["head_b1"][c, 0],
                        approximate=False)
        logits.append(h @ params["head_w2"][c] + params["head_b2"][c, 0])
    return jnp.stack(logits, 1)


if __name__ == "__main__":
    key = jax.random.PRNGKey(0)
    kp, kt, kc = jax.random.split(key, 3)
    params = init_params(kp)

    B, C, T = 2, 8, 8
    audio_tokens = jax.random.randint(kt, (B, C, T), 0, VOCAB, dtype=jnp.int32)
    text_context = jax.random.normal(kc, (B, HIDDEN), jnp.float32)

    out = forward(params, audio_tokens, text_context)
    out = jax.block_until_ready(out)
    assert out.shape == (B, NUM_CB, T, VOCAB), out.shape
    assert bool(jnp.all(jnp.isfinite(out)))

    # combined abs/rel tolerance: kernel uses bf16 MXU operands, tanh-GELU and
    # approximate reciprocals vs the exact-f32 reference.
    ref = forward_ref(params, audio_tokens, text_context)
    abs_err = jnp.abs(out - ref)
    tol = 5e-2 + 5e-2 * jnp.abs(ref)
    if not bool(jnp.all(abs_err <= tol)):
        raise AssertionError(
            f"mismatch vs reference: max abs err {float(jnp.max(abs_err))}")

    print("KERNEL_OK")
</pallas_src>

<mosaic_0001>
module attributes {stable_mosaic.version = 11 : i64} {
  func.func @fused_forward_kernel(%arg0: i32, %arg1: memref<1x8x8xi32, #tpu.memory_space<vmem>>, %arg2: memref<1x1x32xf32, #tpu.memory_space<vmem>>, %arg3: memref<8x256x32xbf16, #tpu.memory_space<vmem>>, %arg4: memref<8x1x32xf32, #tpu.memory_space<vmem>>, %arg5: memref<8x1x32xf32, #tpu.memory_space<vmem>>, %arg6: memref<4x1x32xf32, #tpu.memory_space<vmem>>, %arg7: memref<4x1x32xf32, #tpu.memory_space<vmem>>, %arg8: memref<4x32x96xbf16, #tpu.memory_space<vmem>>, %arg9: memref<4x3x48xf32, #tpu.memory_space<vmem>>, %arg10: memref<4x48x48xbf16, #tpu.memory_space<vmem>>, %arg11: memref<4x1x48xf32, #tpu.memory_space<vmem>>, %arg12: memref<4x48x32xbf16, #tpu.memory_space<vmem>>, %arg13: memref<4x1x32xf32, #tpu.memory_space<vmem>>, %arg14: memref<32x128xbf16, #tpu.memory_space<vmem>>, %arg15: memref<1x128xf32, #tpu.memory_space<vmem>>, %arg16: memref<128x2048xbf16, #tpu.memory_space<vmem>>, %arg17: memref<1x2048xf32, #tpu.memory_space<vmem>>, %arg18: memref<1x8x2048xf32, #tpu.memory_space<vmem>>) attributes {dimension_semantics = [#tpu.dimension_semantics<parallel>], iteration_bounds = array<i64: 2>, scalar_prefetch = 0 : i64, scratch_operands = 0 : i64, tpu.core_type = #tpu.core_type<tc>, window_params = [{transform_indices = @transform_0, window_bounds = array<i64: 1, 8, 8>}, {transform_indices = @transform_1, window_bounds = array<i64: 1, 1, 32>}, {pipeline_mode = #tpu.pipeline_mode<synchronous>, transform_indices = @transform_2, window_bounds = array<i64: 8, 256, 32>}, {pipeline_mode = #tpu.pipeline_mode<synchronous>, transform_indices = @transform_3, window_bounds = array<i64: 8, 1, 32>}, {pipeline_mode = #tpu.pipeline_mode<synchronous>, transform_indices = @transform_4, window_bounds = array<i64: 8, 1, 32>}, {pipeline_mode = #tpu.pipeline_mode<synchronous>, transform_indices = @transform_5, window_bounds = array<i64: 4, 1, 32>}, {pipeline_mode = #tpu.pipeline_mode<synchronous>, transform_indices = @transform_6, window_bounds = array<i64: 4, 1, 32>}, {pipeline_mode = #tpu.pipeline_mode<synchronous>, transform_indices = @transform_7, window_bounds = array<i64: 4, 32, 96>}, {pipeline_mode = #tpu.pipeline_mode<synchronous>, transform_indices = @transform_8, window_bounds = array<i64: 4, 3, 48>}, {pipeline_mode = #tpu.pipeline_mode<synchronous>, transform_indices = @transform_9, window_bounds = array<i64: 4, 48, 48>}, {pipeline_mode = #tpu.pipeline_mode<synchronous>, transform_indices = @transform_10, window_bounds = array<i64: 4, 1, 48>}, {pipeline_mode = #tpu.pipeline_mode<synchronous>, transform_indices = @transform_11, window_bounds = array<i64: 4, 48, 32>}, {pipeline_mode = #tpu.pipeline_mode<synchronous>, transform_indices = @transform_12, window_bounds = array<i64: 4, 1, 32>}, {pipeline_mode = #tpu.pipeline_mode<synchronous>, transform_indices = @transform_13, window_bounds = array<i64: 32, 128>}, {pipeline_mode = #tpu.pipeline_mode<synchronous>, transform_indices = @transform_14, window_bounds = array<i64: 1, 128>}, {pipeline_mode = #tpu.pipeline_mode<synchronous>, transform_indices = @transform_15, window_bounds = array<i64: 128, 2048>}, {pipeline_mode = #tpu.pipeline_mode<synchronous>, transform_indices = @transform_16, window_bounds = array<i64: 1, 2048>}, {transform_indices = @transform_17, window_bounds = array<i64: 1, 8, 2048>}]} {
    %c0 = arith.constant 0 : index
    %c0_0 = arith.constant 0 : index
    %c0_1 = arith.constant 0 : index
    %0 = vector.load %arg1[%c0, %c0_0, %c0_1] : memref<1x8x8xi32, #tpu.memory_space<vmem>>, vector<1x8x8xi32>
    %1 = vector.shape_cast %0 : vector<1x8x8xi32> to vector<8x8xi32>
    %2 = tpu.iota {dimensions = array<i32: 1>} : vector<8x256xi32>
    %cst = arith.constant 0.000000e+00 : f32
    %3 = vector.broadcast %cst : f32 to vector<8x32xf32>
    %4 = vector.extract_strided_slice %1 {offsets = [0, 0], sizes = [8, 1], strides = [1, 1]} : vector<8x8xi32> to vector<8x1xi32>
    %5 = vector.broadcast %4 : vector<8x1xi32> to vector<8x256xi32>
    %6 = arith.cmpi eq, %5, %2 : vector<8x256xi32>
    %7 = arith.extui %6 : vector<8x256xi1> to vector<8x256xi32>
    %8 = arith.sitofp %7 : vector<8x256xi32> to vector<8x256xf32>
    %9 = arith.truncf %8 : vector<8x256xf32> to vector<8x256xbf16>
    %c0_2 = arith.constant 0 : index
    %c0_3 = arith.constant 0 : index
    %c0_4 = arith.constant 0 : index
    %10 = vector.load %arg3[%c0_2, %c0_3, %c0_4] : memref<8x256x32xbf16, #tpu.memory_space<vmem>>, vector<1x256x32xbf16>
    %11 = vector.shape_cast %10 : vector<1x256x32xbf16> to vector<256x32xbf16>
    %cst_5 = arith.constant dense<0.000000e+00> : vector<8x32xf32>
    %12 = tpu.matmul %9, %11, %cst_5 {dimension_numbers = #tpu.dot_dimension_numbers<[1], [0], [0], [1], [0, 0, 1, 1], [], []>} : vector<8x256xbf16>, vector<256x32xbf16>, vector<8x32xf32> -> vector<8x32xf32>
    %c0_6 = arith.constant 0 : index
    %c0_7 = arith.constant 0 : index
    %c0_8 = arith.constant 0 : index
    %13 = vector.load %arg4[%c0_6, %c0_7, %c0_8] : memref<8x1x32xf32, #tpu.memory_space<vmem>>, vector<1x1x32xf32>
    %14 = vector.shape_cast %13 : vector<1x1x32xf32> to vector<1x32xf32>
    %c0_9 = arith.constant 0 : index
    %c0_10 = arith.constant 0 : index
    %c0_11 = arith.constant 0 : index
    %15 = vector.load %arg5[%c0_9, %c0_10, %c0_11] : memref<8x1x32xf32, #tpu.memory_space<vmem>>, vector<1x1x32xf32>
    %16 = vector.shape_cast %15 : vector<1x1x32xf32> to vector<1x32xf32>
    %cst_12 = arith.constant dense<0.000000e+00> : vector<8xf32>
    %17 = vector.multi_reduction <add>, %12, %cst_12 [1] : vector<8x32xf32> to vector<8xf32>
    %18 = vector.shape_cast %17 : vector<8xf32> to vector<8x1xf32>
    %cst_13 = arith.constant 3.200000e+01 : f32
    %19 = vector.broadcast %cst_13 : f32 to vector<8x1xf32>
    %20 = arith.divf %18, %19 : vector<8x1xf32>
    %21 = vector.broadcast %20 : vector<8x1xf32> to vector<8x32xf32>
    %22 = arith.subf %12, %21 : vector<8x32xf32>
    %23 = arith.mulf %22, %22 : vector<8x32xf32>
    %cst_14 = arith.constant dense<0.000000e+00> : vector<8xf32>
    %24 = vector.multi_reduction <add>, %23, %cst_14 [1] : vector<8x32xf32> to vector<8xf32>
    %25 = vector.shape_cast %24 : vector<8xf32> to vector<8x1xf32>
    %cst_15 = arith.constant 3.200000e+01 : f32
    %26 = vector.broadcast %cst_15 : f32 to vector<8x1xf32>
    %27 = arith.divf %25, %26 : vector<8x1xf32>
    %28 = vector.broadcast %20 : vector<8x1xf32> to vector<8x32xf32>
    %29 = arith.subf %12, %28 : vector<8x32xf32>
    %cst_16 = arith.constant 9.99999974E-6 : f32
    %30 = vector.broadcast %cst_16 : f32 to vector<8x1xf32>
    %31 = arith.addf %27, %30 : vector<8x1xf32>
    %32 = math.rsqrt %31 : vector<8x1xf32>
    %33 = vector.broadcast %32 : vector<8x1xf32> to vector<8x32xf32>
    %34 = arith.mulf %29, %33 : vector<8x32xf32>
    %35 = vector.broadcast %14 : vector<1x32xf32> to vector<8x32xf32>
    %36 = arith.mulf %34, %35 : vector<8x32xf32>
    %37 = vector.broadcast %16 : vector<1x32xf32> to vector<8x32xf32>
    %38 = arith.addf %36, %37 : vector<8x32xf32>
    %39 = arith.addf %3, %38 : vector<8x32xf32>
    %40 = vector.extract_strided_slice %1 {offsets = [0, 1], sizes = [8, 1], strides = [1, 1]} : vector<8x8xi32> to vector<8x1xi32>
    %41 = vector.broadcast %40 : vector<8x1xi32> to vector<8x256xi32>
    %42 = arith.cmpi eq, %41, %2 : vector<8x256xi32>
    %43 = arith.extui %42 : vector<8x256xi1> to vector<8x256xi32>
    %44 = arith.sitofp %43 : vector<8x256xi32> to vector<8x256xf32>
    %45 = arith.truncf %44 : vector<8x256xf32> to vector<8x256xbf16>
    %c1 = arith.constant 1 : index
    %c0_17 = arith.constant 0 : index
    %c0_18 = arith.constant 0 : index
    %46 = vector.load %arg3[%c1, %c0_17, %c0_18] : memref<8x256x32xbf16, #tpu.memory_space<vmem>>, vector<1x256x32xbf16>
    %47 = vector.shape_cast %46 : vector<1x256x32xbf16> to vector<256x32xbf16>
    %cst_19 = arith.constant dense<0.000000e+00> : vector<8x32xf32>
    %48 = tpu.matmul %45, %47, %cst_19 {dimension_numbers = #tpu.dot_dimension_numbers<[1], [0], [0], [1], [0, 0, 1, 1], [], []>} : vector<8x256xbf16>, vector<256x32xbf16>, vector<8x32xf32> -> vector<8x32xf32>
    %c1_20 = arith.constant 1 : index
    %c0_21 = arith.constant 0 : index
    %c0_22 = arith.constant 0 : index
    %49 = vector.load %arg4[%c1_20, %c0_21, %c0_22] : memref<8x1x32xf32, #tpu.memory_space<vmem>>, vector<1x1x32xf32>
    %50 = vector.shape_cast %49 : vector<1x1x32xf32> to vector<1x32xf32>
    %c1_23 = arith.constant 1 : index
    %c0_24 = arith.constant 0 : index
    %c0_25 = arith.constant 0 : index
    %51 = vector.load %arg5[%c1_23, %c0_24, %c0_25] : memref<8x1x32xf32, #tpu.memory_space<vmem>>, vector<1x1x32xf32>
    %52 = vector.shape_cast %51 : vector<1x1x32xf32> to vector<1x32xf32>
    %cst_26 = arith.constant dense<0.000000e+00> : vector<8xf32>
    %53 = vector.multi_reduction <add>, %48, %cst_26 [1] : vector<8x32xf32> to vector<8xf32>
    %54 = vector.shape_cast %53 : vector<8xf32> to vector<8x1xf32>
    %cst_27 = arith.constant 3.200000e+01 : f32
    %55 = vector.broadcast %cst_27 : f32 to vector<8x1xf32>
    %56 = arith.divf %54, %55 : vector<8x1xf32>
    %57 = vector.broadcast %56 : vector<8x1xf32> to vector<8x32xf32>
    %58 = arith.subf %48, %57 : vector<8x32xf32>
    %59 = arith.mulf %58, %58 : vector<8x32xf32>
    %cst_28 = arith.constant dense<0.000000e+00> : vector<8xf32>
    %60 = vector.multi_reduction <add>, %59, %cst_28 [1] : vector<8x32xf32> to vector<8xf32>
    %61 = vector.shape_cast %60 : vector<8xf32> to vector<8x1xf32>
    %cst_29 = arith.constant 3.200000e+01 : f32
    %62 = vector.broadcast %cst_29 : f32 to vector<8x1xf32>
    %63 = arith.divf %61, %62 : vector<8x1xf32>
    %64 = vector.broadcast %56 : vector<8x1xf32> to vector<8x32xf32>
    %65 = arith.subf %48, %64 : vector<8x32xf32>
    %cst_30 = arith.constant 9.99999974E-6 : f32
    %66 = vector.broadcast %cst_30 : f32 to vector<8x1xf32>
    %67 = arith.addf %63, %66 : vector<8x1xf32>
    %68 = math.rsqrt %67 : vector<8x1xf32>
    %69 = vector.broadcast %68 : vector<8x1xf32> to vector<8x32xf32>
    %70 = arith.mulf %65, %69 : vector<8x32xf32>
    %71 = vector.broadcast %50 : vector<1x32xf32> to vector<8x32xf32>
    %72 = arith.mulf %70, %71 : vector<8x32xf32>
    %73 = vector.broadcast %52 : vector<1x32xf32> to vector<8x32xf32>
    %74 = arith.addf %72, %73 : vector<8x32xf32>
    %75 = arith.addf %39, %74 : vector<8x32xf32>
    %76 = vector.extract_strided_slice %1 {offsets = [0, 2], sizes = [8, 1], strides = [1, 1]} : vector<8x8xi32> to vector<8x1xi32>
    %77 = vector.broadcast %76 : vector<8x1xi32> to vector<8x256xi32>
    %78 = arith.cmpi eq, %77, %2 : vector<8x256xi32>
    %79 = arith.extui %78 : vector<8x256xi1> to vector<8x256xi32>
    %80 = arith.sitofp %79 : vector<8x256xi32> to vector<8x256xf32>
    %81 = arith.truncf %80 : vector<8x256xf32> to vector<8x256xbf16>
    %c2 = arith.constant 2 : index
    %c0_31 = arith.constant 0 : index
    %c0_32 = arith.constant 0 : index
    %82 = vector.load %arg3[%c2, %c0_31, %c0_32] : memref<8x256x32xbf16, #tpu.memory_space<vmem>>, vector<1x256x32xbf16>
    %83 = vector.shape_cast %82 : vector<1x256x32xbf16> to vector<256x32xbf16>
    %cst_33 = arith.constant dense<0.000000e+00> : vector<8x32xf32>
    %84 = tpu.matmul %81, %83, %cst_33 {dimension_numbers = #tpu.dot_dimension_numbers<[1], [0], [0], [1], [0, 0, 1, 1], [], []>} : vector<8x256xbf16>, vector<256x32xbf16>, vector<8x32xf32> -> vector<8x32xf32>
    %c2_34 = arith.constant 2 : index
    %c0_35 = arith.constant 0 : index
    %c0_36 = arith.constant 0 : index
    %85 = vector.load %arg4[%c2_34, %c0_35, %c0_36] : memref<8x1x32xf32, #tpu.memory_space<vmem>>, vector<1x1x32xf32>
    %86 = vector.shape_cast %85 : vector<1x1x32xf32> to vector<1x32xf32>
    %c2_37 = arith.constant 2 : index
    %c0_38 = arith.constant 0 : index
    %c0_39 = arith.constant 0 : index
    %87 = vector.load %arg5[%c2_37, %c0_38, %c0_39] : memref<8x1x32xf32, #tpu.memory_space<vmem>>, vector<1x1x32xf32>
    %88 = vector.shape_cast %87 : vector<1x1x32xf32> to vector<1x32xf32>
    %cst_40 = arith.constant dense<0.000000e+00> : vector<8xf32>
    %89 = vector.multi_reduction <add>, %84, %cst_40 [1] : vector<8x32xf32> to vector<8xf32>
    %90 = vector.shape_cast %89 : vector<8xf32> to vector<8x1xf32>
    %cst_41 = arith.constant 3.200000e+01 : f32
    %91 = vector.broadcast %cst_41 : f32 to vector<8x1xf32>
    %92 = arith.divf %90, %91 : vector<8x1xf32>
    %93 = vector.broadcast %92 : vector<8x1xf32> to vector<8x32xf32>
    %94 = arith.subf %84, %93 : vector<8x32xf32>
    %95 = arith.mulf %94, %94 : vector<8x32xf32>
    %cst_42 = arith.constant dense<0.000000e+00> : vector<8xf32>
    %96 = vector.multi_reduction <add>, %95, %cst_42 [1] : vector<8x32xf32> to vector<8xf32>
    %97 = vector.shape_cast %96 : vector<8xf32> to vector<8x1xf32>
    %cst_43 = arith.constant 3.200000e+01 : f32
    %98 = vector.broadcast %cst_43 : f32 to vector<8x1xf32>
    %99 = arith.divf %97, %98 : vector<8x1xf32>
    %100 = vector.broadcast %92 : vector<8x1xf32> to vector<8x32xf32>
    %101 = arith.subf %84, %100 : vector<8x32xf32>
    %cst_44 = arith.constant 9.99999974E-6 : f32
    %102 = vector.broadcast %cst_44 : f32 to vector<8x1xf32>
    %103 = arith.addf %99, %102 : vector<8x1xf32>
    %104 = math.rsqrt %103 : vector<8x1xf32>
    %105 = vector.broadcast %104 : vector<8x1xf32> to vector<8x32xf32>
    %106 = arith.mulf %101, %105 : vector<8x32xf32>
    %107 = vector.broadcast %86 : vector<1x32xf32> to vector<8x32xf32>
    %108 = arith.mulf %106, %107 : vector<8x32xf32>
    %109 = vector.broadcast %88 : vector<1x32xf32> to vector<8x32xf32>
    %110 = arith.addf %108, %109 : vector<8x32xf32>
    %111 = arith.addf %75, %110 : vector<8x32xf32>
    %112 = vector.extract_strided_slice %1 {offsets = [0, 3], sizes = [8, 1], strides = [1, 1]} : vector<8x8xi32> to vector<8x1xi32>
    %113 = vector.broadcast %112 : vector<8x1xi32> to vector<8x256xi32>
    %114 = arith.cmpi eq, %113, %2 : vector<8x256xi32>
    %115 = arith.extui %114 : vector<8x256xi1> to vector<8x256xi32>
    %116 = arith.sitofp %115 : vector<8x256xi32> to vector<8x256xf32>
    %117 = arith.truncf %116 : vector<8x256xf32> to vector<8x256xbf16>
    %c3 = arith.constant 3 : index
    %c0_45 = arith.constant 0 : index
    %c0_46 = arith.constant 0 : index
    %118 = vector.load %arg3[%c3, %c0_45, %c0_46] : memref<8x256x32xbf16, #tpu.memory_space<vmem>>, vector<1x256x32xbf16>
    %119 = vector.shape_cast %118 : vector<1x256x32xbf16> to vector<256x32xbf16>
    %cst_47 = arith.constant dense<0.000000e+00> : vector<8x32xf32>
    %120 = tpu.matmul %117, %119, %cst_47 {dimension_numbers = #tpu.dot_dimension_numbers<[1], [0], [0], [1], [0, 0, 1, 1], [], []>} : vector<8x256xbf16>, vector<256x32xbf16>, vector<8x32xf32> -> vector<8x32xf32>
    %c3_48 = arith.constant 3 : index
    %c0_49 = arith.constant 0 : index
    %c0_50 = arith.constant 0 : index
    %121 = vector.load %arg4[%c3_48, %c0_49, %c0_50] : memref<8x1x32xf32, #tpu.memory_space<vmem>>, vector<1x1x32xf32>
    %122 = vector.shape_cast %121 : vector<1x1x32xf32> to vector<1x32xf32>
    %c3_51 = arith.constant 3 : index
    %c0_52 = arith.constant 0 : index
    %c0_53 = arith.constant 0 : index
    %123 = vector.load %arg5[%c3_51, %c0_52, %c0_53] : memref<8x1x32xf32, #tpu.memory_space<vmem>>, vector<1x1x32xf32>
    %124 = vector.shape_cast %123 : vector<1x1x32xf32> to vector<1x32xf32>
    %cst_54 = arith.constant dense<0.000000e+00> : vector<8xf32>
    %125 = vector.multi_reduction <add>, %120, %cst_54 [1] : vector<8x32xf32> to vector<8xf32>
    %126 = vector.shape_cast %125 : vector<8xf32> to vector<8x1xf32>
    %cst_55 = arith.constant 3.200000e+01 : f32
    %127 = vector.broadcast %cst_55 : f32 to vector<8x1xf32>
    %128 = arith.divf %126, %127 : vector<8x1xf32>
    %129 = vector.broadcast %128 : vector<8x1xf32> to vector<8x32xf32>
    %130 = arith.subf %120, %129 : vector<8x32xf32>
    %131 = arith.mulf %130, %130 : vector<8x32xf32>
    %cst_56 = arith.constant dense<0.000000e+00> : vector<8xf32>
    %132 = vector.multi_reduction <add>, %131, %cst_56 [1] : vector<8x32xf32> to vector<8xf32>
    %133 = vector.shape_cast %132 : vector<8xf32> to vector<8x1xf32>
    %cst_57 = arith.constant 3.200000e+01 : f32
    %134 = vector.broadcast %cst_57 : f32 to vector<8x1xf32>
    %135 = arith.divf %133, %134 : vector<8x1xf32>
    %136 = vector.broadcast %128 : vector<8x1xf32> to vector<8x32xf32>
    %137 = arith.subf %120, %136 : vector<8x32xf32>
    %cst_58 = arith.constant 9.99999974E-6 : f32
    %138 = vector.broadcast %cst_58 : f32 to vector<8x1xf32>
    %139 = arith.addf %135, %138 : vector<8x1xf32>
    %140 = math.rsqrt %139 : vector<8x1xf32>
    %141 = vector.broadcast %140 : vector<8x1xf32> to vector<8x32xf32>
    %142 = arith.mulf %137, %141 : vector<8x32xf32>
    %143 = vector.broadcast %122 : vector<1x32xf32> to vector<8x32xf32>
    %144 = arith.mulf %142, %143 : vector<8x32xf32>
    %145 = vector.broadcast %124 : vector<1x32xf32> to vector<8x32xf32>
    %146 = arith.addf %144, %145 : vector<8x32xf32>
    %147 = arith.addf %111, %146 : vector<8x32xf32>
    %148 = vector.extract_strided_slice %1 {offsets = [0, 4], sizes = [8, 1], strides = [1, 1]} : vector<8x8xi32> to vector<8x1xi32>
    %149 = vector.broadcast %148 : vector<8x1xi32> to vector<8x256xi32>
    %150 = arith.cmpi eq, %149, %2 : vector<8x256xi32>
    %151 = arith.extui %150 : vector<8x256xi1> to vector<8x256xi32>
    %152 = arith.sitofp %151 : vector<8x256xi32> to vector<8x256xf32>
    %153 = arith.truncf %152 : vector<8x256xf32> to vector<8x256xbf16>
    %c4 = arith.constant 4 : index
    %c0_59 = arith.constant 0 : index
    %c0_60 = arith.constant 0 : index
    %154 = vector.load %arg3[%c4, %c0_59, %c0_60] : memref<8x256x32xbf16, #tpu.memory_space<vmem>>, vector<1x256x32xbf16>
    %155 = vector.shape_cast %154 : vector<1x256x32xbf16> to vector<256x32xbf16>
    %cst_61 = arith.constant dense<0.000000e+00> : vector<8x32xf32>
    %156 = tpu.matmul %153, %155, %cst_61 {dimension_numbers = #tpu.dot_dimension_numbers<[1], [0], [0], [1], [0, 0, 1, 1], [], []>} : vector<8x256xbf16>, vector<256x32xbf16>, vector<8x32xf32> -> vector<8x32xf32>
    %c4_62 = arith.constant 4 : index
    %c0_63 = arith.constant 0 : index
    %c0_64 = arith.constant 0 : index
    %157 = vector.load %arg4[%c4_62, %c0_63, %c0_64] : memref<8x1x32xf32, #tpu.memory_space<vmem>>, vector<1x1x32xf32>
    %158 = vector.shape_cast %157 : vector<1x1x32xf32> to vector<1x32xf32>
    %c4_65 = arith.constant 4 : index
    %c0_66 = arith.constant 0 : index
    %c0_67 = arith.constant 0 : index
    %159 = vector.load %arg5[%c4_65, %c0_66, %c0_67] : memref<8x1x32xf32, #tpu.memory_space<vmem>>, vector<1x1x32xf32>
    %160 = vector.shape_cast %159 : vector<1x1x32xf32> to vector<1x32xf32>
    %cst_68 = arith.constant dense<0.000000e+00> : vector<8xf32>
    %161 = vector.multi_reduction <add>, %156, %cst_68 [1] : vector<8x32xf32> to vector<8xf32>
    %162 = vector.shape_cast %161 : vector<8xf32> to vector<8x1xf32>
    %cst_69 = arith.constant 3.200000e+01 : f32
    %163 = vector.broadcast %cst_69 : f32 to vector<8x1xf32>
    %164 = arith.divf %162, %163 : vector<8x1xf32>
    %165 = vector.broadcast %164 : vector<8x1xf32> to vector<8x32xf32>
    %166 = arith.subf %156, %165 : vector<8x32xf32>
    %167 = arith.mulf %166, %166 : vector<8x32xf32>
    %cst_70 = arith.constant dense<0.000000e+00> : vector<8xf32>
    %168 = vector.multi_reduction <add>, %167, %cst_70 [1] : vector<8x32xf32> to vector<8xf32>
    %169 = vector.shape_cast %168 : vector<8xf32> to vector<8x1xf32>
    %cst_71 = arith.constant 3.200000e+01 : f32
    %170 = vector.broadcast %cst_71 : f32 to vector<8x1xf32>
    %171 = arith.divf %169, %170 : vector<8x1xf32>
    %172 = vector.broadcast %164 : vector<8x1xf32> to vector<8x32xf32>
    %173 = arith.subf %156, %172 : vector<8x32xf32>
    %cst_72 = arith.constant 9.99999974E-6 : f32
    %174 = vector.broadcast %cst_72 : f32 to vector<8x1xf32>
    %175 = arith.addf %171, %174 : vector<8x1xf32>
    %176 = math.rsqrt %175 : vector<8x1xf32>
    %177 = vector.broadcast %176 : vector<8x1xf32> to vector<8x32xf32>
    %178 = arith.mulf %173, %177 : vector<8x32xf32>
    %179 = vector.broadcast %158 : vector<1x32xf32> to vector<8x32xf32>
    %180 = arith.mulf %178, %179 : vector<8x32xf32>
    %181 = vector.broadcast %160 : vector<1x32xf32> to vector<8x32xf32>
    %182 = arith.addf %180, %181 : vector<8x32xf32>
    %183 = arith.addf %147, %182 : vector<8x32xf32>
    %184 = vector.extract_strided_slice %1 {offsets = [0, 5], sizes = [8, 1], strides = [1, 1]} : vector<8x8xi32> to vector<8x1xi32>
    %185 = vector.broadcast %184 : vector<8x1xi32> to vector<8x256xi32>
    %186 = arith.cmpi eq, %185, %2 : vector<8x256xi32>
    %187 = arith.extui %186 : vector<8x256xi1> to vector<8x256xi32>
    %188 = arith.sitofp %187 : vector<8x256xi32> to vector<8x256xf32>
    %189 = arith.truncf %188 : vector<8x256xf32> to vector<8x256xbf16>
    %c5 = arith.constant 5 : index
    %c0_73 = arith.constant 0 : index
    %c0_74 = arith.constant 0 : index
    %190 = vector.load %arg3[%c5, %c0_73, %c0_74] : memref<8x256x32xbf16, #tpu.memory_space<vmem>>, vector<1x256x32xbf16>
    %191 = vector.shape_cast %190 : vector<1x256x32xbf16> to vector<256x32xbf16>
    %cst_75 = arith.constant dense<0.000000e+00> : vector<8x32xf32>
    %192 = tpu.matmul %189, %191, %cst_75 {dimension_numbers = #tpu.dot_dimension_numbers<[1], [0], [0], [1], [0, 0, 1, 1], [], []>} : vector<8x256xbf16>, vector<256x32xbf16>, vector<8x32xf32> -> vector<8x32xf32>
    %c5_76 = arith.constant 5 : index
    %c0_77 = arith.constant 0 : index
    %c0_78 = arith.constant 0 : index
    %193 = vector.load %arg4[%c5_76, %c0_77, %c0_78] : memref<8x1x32xf32, #tpu.memory_space<vmem>>, vector<1x1x32xf32>
    %194 = vector.shape_cast %193 : vector<1x1x32xf32> to vector<1x32xf32>
    %c5_79 = arith.constant 5 : index
    %c0_80 = arith.constant 0 : index
    %c0_81 = arith.constant 0 : index
    %195 = vector.load %arg5[%c5_79, %c0_80, %c0_81] : memref<8x1x32xf32, #tpu.memory_space<vmem>>, vector<1x1x32xf32>
    %196 = vector.shape_cast %195 : vector<1x1x32xf32> to vector<1x32xf32>
    %cst_82 = arith.constant dense<0.000000e+00> : vector<8xf32>
    %197 = vector.multi_reduction <add>, %192, %cst_82 [1] : vector<8x32xf32> to vector<8xf32>
    %198 = vector.shape_cast %197 : vector<8xf32> to vector<8x1xf32>
    %cst_83 = arith.constant 3.200000e+01 : f32
    %199 = vector.broadcast %cst_83 : f32 to vector<8x1xf32>
    %200 = arith.divf %198, %199 : vector<8x1xf32>
    %201 = vector.broadcast %200 : vector<8x1xf32> to vector<8x32xf32>
    %202 = arith.subf %192, %201 : vector<8x32xf32>
    %203 = arith.mulf %202, %202 : vector<8x32xf32>
    %cst_84 = arith.constant dense<0.000000e+00> : vector<8xf32>
    %204 = vector.multi_reduction <add>, %203, %cst_84 [1] : vector<8x32xf32> to vector<8xf32>
    %205 = vector.shape_cast %204 : vector<8xf32> to vector<8x1xf32>
    %cst_85 = arith.constant 3.200000e+01 : f32
    %206 = vector.broadcast %cst_85 : f32 to vector<8x1xf32>
    %207 = arith.divf %205, %206 : vector<8x1xf32>
    %208 = vector.broadcast %200 : vector<8x1xf32> to vector<8x32xf32>
    %209 = arith.subf %192, %208 : vector<8x32xf32>
    %cst_86 = arith.constant 9.99999974E-6 : f32
    %210 = vector.broadcast %cst_86 : f32 to vector<8x1xf32>
    %211 = arith.addf %207, %210 : vector<8x1xf32>
    %212 = math.rsqrt %211 : vector<8x1xf32>
    %213 = vector.broadcast %212 : vector<8x1xf32> to vector<8x32xf32>
    %214 = arith.mulf %209, %213 : vector<8x32xf32>
    %215 = vector.broadcast %194 : vector<1x32xf32> to vector<8x32xf32>
    %216 = arith.mulf %214, %215 : vector<8x32xf32>
    %217 = vector.broadcast %196 : vector<1x32xf32> to vector<8x32xf32>
    %218 = arith.addf %216, %217 : vector<8x32xf32>
    %219 = arith.addf %183, %218 : vector<8x32xf32>
    %220 = vector.extract_strided_slice %1 {offsets = [0, 6], sizes = [8, 1], strides = [1, 1]} : vector<8x8xi32> to vector<8x1xi32>
    %221 = vector.broadcast %220 : vector<8x1xi32> to vector<8x256xi32>
    %222 = arith.cmpi eq, %221, %2 : vector<8x256xi32>
    %223 = arith.extui %222 : vector<8x256xi1> to vector<8x256xi32>
    %224 = arith.sitofp %223 : vector<8x256xi32> to vector<8x256xf32>
    %225 = arith.truncf %224 : vector<8x256xf32> to vector<8x256xbf16>
    %c6 = arith.constant 6 : index
    %c0_87 = arith.constant 0 : index
    %c0_88 = arith.constant 0 : index
    %226 = vector.load %arg3[%c6, %c0_87, %c0_88] : memref<8x256x32xbf16, #tpu.memory_space<vmem>>, vector<1x256x32xbf16>
    %227 = vector.shape_cast %226 : vector<1x256x32xbf16> to vector<256x32xbf16>
    %cst_89 = arith.constant dense<0.000000e+00> : vector<8x32xf32>
    %228 = tpu.matmul %225, %227, %cst_89 {dimension_numbers = #tpu.dot_dimension_numbers<[1], [0], [0], [1], [0, 0, 1, 1], [], []>} : vector<8x256xbf16>, vector<256x32xbf16>, vector<8x32xf32> -> vector<8x32xf32>
    %c6_90 = arith.constant 6 : index
    %c0_91 = arith.constant 0 : index
    %c0_92 = arith.constant 0 : index
    %229 = vector.load %arg4[%c6_90, %c0_91, %c0_92] : memref<8x1x32xf32, #tpu.memory_space<vmem>>, vector<1x1x32xf32>
    %230 = vector.shape_cast %229 : vector<1x1x32xf32> to vector<1x32xf32>
    %c6_93 = arith.constant 6 : index
    %c0_94 = arith.constant 0 : index
    %c0_95 = arith.constant 0 : index
    %231 = vector.load %arg5[%c6_93, %c0_94, %c0_95] : memref<8x1x32xf32, #tpu.memory_space<vmem>>, vector<1x1x32xf32>
    %232 = vector.shape_cast %231 : vector<1x1x32xf32> to vector<1x32xf32>
    %cst_96 = arith.constant dense<0.000000e+00> : vector<8xf32>
    %233 = vector.multi_reduction <add>, %228, %cst_96 [1] : vector<8x32xf32> to vector<8xf32>
    %234 = vector.shape_cast %233 : vector<8xf32> to vector<8x1xf32>
    %cst_97 = arith.constant 3.200000e+01 : f32
    %235 = vector.broadcast %cst_97 : f32 to vector<8x1xf32>
    %236 = arith.divf %234, %235 : vector<8x1xf32>
    %237 = vector.broadcast %236 : vector<8x1xf32> to vector<8x32xf32>
    %238 = arith.subf %228, %237 : vector<8x32xf32>
    %239 = arith.mulf %238, %238 : vector<8x32xf32>
    %cst_98 = arith.constant dense<0.000000e+00> : vector<8xf32>
    %240 = vector.multi_reduction <add>, %239, %cst_98 [1] : vector<8x32xf32> to vector<8xf32>
    %241 = vector.shape_cast %240 : vector<8xf32> to vector<8x1xf32>
    %cst_99 = arith.constant 3.200000e+01 : f32
    %242 = vector.broadcast %cst_99 : f32 to vector<8x1xf32>
    %243 = arith.divf %241, %242 : vector<8x1xf32>
    %244 = vector.broadcast %236 : vector<8x1xf32> to vector<8x32xf32>
    %245 = arith.subf %228, %244 : vector<8x32xf32>
    %cst_100 = arith.constant 9.99999974E-6 : f32
    %246 = vector.broadcast %cst_100 : f32 to vector<8x1xf32>
    %247 = arith.addf %243, %246 : vector<8x1xf32>
    %248 = math.rsqrt %247 : vector<8x1xf32>
    %249 = vector.broadcast %248 : vector<8x1xf32> to vector<8x32xf32>
    %250 = arith.mulf %245, %249 : vector<8x32xf32>
    %251 = vector.broadcast %230 : vector<1x32xf32> to vector<8x32xf32>
    %252 = arith.mulf %250, %251 : vector<8x32xf32>
    %253 = vector.broadcast %232 : vector<1x32xf32> to vector<8x32xf32>
    %254 = arith.addf %252, %253 : vector<8x32xf32>
    %255 = arith.addf %219, %254 : vector<8x32xf32>
    %256 = vector.extract_strided_slice %1 {offsets = [0, 7], sizes = [8, 1], strides = [1, 1]} : vector<8x8xi32> to vector<8x1xi32>
    %257 = vector.broadcast %256 : vector<8x1xi32> to vector<8x256xi32>
    %258 = arith.cmpi eq, %257, %2 : vector<8x256xi32>
    %259 = arith.extui %258 : vector<8x256xi1> to vector<8x256xi32>
    %260 = arith.sitofp %259 : vector<8x256xi32> to vector<8x256xf32>
    %261 = arith.truncf %260 : vector<8x256xf32> to vector<8x256xbf16>
    %c7 = arith.constant 7 : index
    %c0_101 = arith.constant 0 : index
    %c0_102 = arith.constant 0 : index
    %262 = vector.load %arg3[%c7, %c0_101, %c0_102] : memref<8x256x32xbf16, #tpu.memory_space<vmem>>, vector<1x256x32xbf16>
    %263 = vector.shape_cast %262 : vector<1x256x32xbf16> to vector<256x32xbf16>
    %cst_103 = arith.constant dense<0.000000e+00> : vector<8x32xf32>
    %264 = tpu.matmul %261, %263, %cst_103 {dimension_numbers = #tpu.dot_dimension_numbers<[1], [0], [0], [1], [0, 0, 1, 1], [], []>} : vector<8x256xbf16>, vector<256x32xbf16>, vector<8x32xf32> -> vector<8x32xf32>
    %c7_104 = arith.constant 7 : index
    %c0_105 = arith.constant 0 : index
    %c0_106 = arith.constant 0 : index
    %265 = vector.load %arg4[%c7_104, %c0_105, %c0_106] : memref<8x1x32xf32, #tpu.memory_space<vmem>>, vector<1x1x32xf32>
    %266 = vector.shape_cast %265 : vector<1x1x32xf32> to vector<1x32xf32>
    %c7_107 = arith.constant 7 : index
    %c0_108 = arith.constant 0 : index
    %c0_109 = arith.constant 0 : index
    %267 = vector.load %arg5[%c7_107, %c0_108, %c0_109] : memref<8x1x32xf32, #tpu.memory_space<vmem>>, vector<1x1x32xf32>
    %268 = vector.shape_cast %267 : vector<1x1x32xf32> to vector<1x32xf32>
    %cst_110 = arith.constant dense<0.000000e+00> : vector<8xf32>
    %269 = vector.multi_reduction <add>, %264, %cst_110 [1] : vector<8x32xf32> to vector<8xf32>
    %270 = vector.shape_cast %269 : vector<8xf32> to vector<8x1xf32>
    %cst_111 = arith.constant 3.200000e+01 : f32
    %271 = vector.broadcast %cst_111 : f32 to vector<8x1xf32>
    %272 = arith.divf %270, %271 : vector<8x1xf32>
    %273 = vector.broadcast %272 : vector<8x1xf32> to vector<8x32xf32>
    %274 = arith.subf %264, %273 : vector<8x32xf32>
    %275 = arith.mulf %274, %274 : vector<8x32xf32>
    %cst_112 = arith.constant dense<0.000000e+00> : vector<8xf32>
    %276 = vector.multi_reduction <add>, %275, %cst_112 [1] : vector<8x32xf32> to vector<8xf32>
    %277 = vector.shape_cast %276 : vector<8xf32> to vector<8x1xf32>
    %cst_113 = arith.constant 3.200000e+01 : f32
    %278 = vector.broadcast %cst_113 : f32 to vector<8x1xf32>
    %279 = arith.divf %277, %278 : vector<8x1xf32>
    %280 = vector.broadcast %272 : vector<8x1xf32> to vector<8x32xf32>
    %281 = arith.subf %264, %280 : vector<8x32xf32>
    %cst_114 = arith.constant 9.99999974E-6 : f32
    %282 = vector.broadcast %cst_114 : f32 to vector<8x1xf32>
    %283 = arith.addf %279, %282 : vector<8x1xf32>
    %284 = math.rsqrt %283 : vector<8x1xf32>
    %285 = vector.broadcast %284 : vector<8x1xf32> to vector<8x32xf32>
    %286 = arith.mulf %281, %285 : vector<8x32xf32>
    %287 = vector.broadcast %266 : vector<1x32xf32> to vector<8x32xf32>
    %288 = arith.mulf %286, %287 : vector<8x32xf32>
    %289 = vector.broadcast %268 : vector<1x32xf32> to vector<8x32xf32>
    %290 = arith.addf %288, %289 : vector<8x32xf32>
    %291 = arith.addf %255, %290 : vector<8x32xf32>
    %c0_115 = arith.constant 0 : index
    %c0_116 = arith.constant 0 : index
    %c0_117 = arith.constant 0 : index
    %292 = vector.load %arg2[%c0_115, %c0_116, %c0_117] : memref<1x1x32xf32, #tpu.memory_space<vmem>>, vector<1x1x32xf32>
    %293 = vector.shape_cast %292 : vector<1x1x32xf32> to vector<1x1x32xf32>
    %294 = vector.broadcast %293 : vector<1x1x32xf32> to vector<1x8x32xf32>
    %295 = vector.shape_cast %294 : vector<1x8x32xf32> to vector<8x32xf32>
    %cst_118 = arith.constant 1.250000e-01 : f32
    %296 = vector.broadcast %cst_118 : f32 to vector<8x32xf32>
    %297 = arith.mulf %291, %296 : vector<8x32xf32>
    %298 = arith.addf %297, %295 : vector<8x32xf32>
    %299 = tpu.iota {dimensions = array<i32: 1>} : vector<1x8x48xi32>
    %300 = vector.shape_cast %299 : vector<1x8x48xi32> to vector<8x48xi32>
    %c0_i32 = arith.constant 0 : i32
    %301 = vector.broadcast %c0_i32 : i32 to vector<8x48xi32>
    %302 = arith.cmpi eq, %300, %301 : vector<8x48xi32>
    %c7_i32 = arith.constant 7 : i32
    %303 = vector.broadcast %c7_i32 : i32 to vector<8x48xi32>
    %304 = arith.cmpi eq, %300, %303 : vector<8x48xi32>
    %c0_119 = arith.constant 0 : index
    %c0_120 = arith.constant 0 : index
    %c0_121 = arith.constant 0 : index
    %305 = vector.load %arg6[%c0_119, %c0_120, %c0_121] : memref<4x1x32xf32, #tpu.memory_space<vmem>>, vector<1x1x32xf32>
    %306 = vector.shape_cast %305 : vector<1x1x32xf32> to vector<1x32xf32>
    %c0_122 = arith.constant 0 : index
    %c0_123 = arith.constant 0 : index
    %c0_124 = arith.constant 0 : index
    %307 = vector.load %arg7[%c0_122, %c0_123, %c0_124] : memref<4x1x32xf32, #tpu.memory_space<vmem>>, vector<1x1x32xf32>
    %308 = vector.shape_cast %307 : vector<1x1x32xf32> to vector<1x32xf32>
    %cst_125 = arith.constant dense<0.000000e+00> : vector<8xf32>
    %309 = vector.multi_reduction <add>, %298, %cst_125 [1] : vector<8x32xf32> to vector<8xf32>
    %310 = vector.shape_cast %309 : vector<8xf32> to vector<8x1xf32>
    %cst_126 = arith.constant 3.200000e+01 : f32
    %311 = vector.broadcast %cst_126 : f32 to vector<8x1xf32>
    %312 = arith.divf %310, %311 : vector<8x1xf32>
    %313 = vector.broadcast %312 : vector<8x1xf32> to vector<8x32xf32>
    %314 = arith.subf %298, %313 : vector<8x32xf32>
    %315 = arith.mulf %314, %314 : vector<8x32xf32>
    %cst_127 = arith.constant dense<0.000000e+00> : vector<8xf32>
    %316 = vector.multi_reduction <add>, %315, %cst_127 [1] : vector<8x32xf32> to vector<8xf32>
    %317 = vector.shape_cast %316 : vector<8xf32> to vector<8x1xf32>
    %cst_128 = arith.constant 3.200000e+01 : f32
    %318 = vector.broadcast %cst_128 : f32 to vector<8x1xf32>
    %319 = arith.divf %317, %318 : vector<8x1xf32>
    %320 = vector.broadcast %312 : vector<8x1xf32> to vector<8x32xf32>
    %321 = arith.subf %298, %320 : vector<8x32xf32>
    %cst_129 = arith.constant 9.99999974E-6 : f32
    %322 = vector.broadcast %cst_129 : f32 to vector<8x1xf32>
    %323 = arith.addf %319, %322 : vector<8x1xf32>
    %324 = math.rsqrt %323 : vector<8x1xf32>
    %325 = vector.broadcast %324 : vector<8x1xf32> to vector<8x32xf32>
    %326 = arith.mulf %321, %325 : vector<8x32xf32>
    %327 = vector.broadcast %306 : vector<1x32xf32> to vector<8x32xf32>
    %328 = arith.mulf %326, %327 : vector<8x32xf32>
    %329 = vector.broadcast %308 : vector<1x32xf32> to vector<8x32xf32>
    %330 = arith.addf %328, %329 : vector<8x32xf32>
    %331 = arith.truncf %330 : vector<8x32xf32> to vector<8x32xbf16>
    %c0_130 = arith.constant 0 : index
    %c0_131 = arith.constant 0 : index
    %c0_132 = arith.constant 0 : index
    %332 = vector.load %arg8[%c0_130, %c0_131, %c0_132] : memref<4x32x96xbf16, #tpu.memory_space<vmem>>, vector<1x32x96xbf16>
    %333 = vector.shape_cast %332 : vector<1x32x96xbf16> to vector<32x96xbf16>
    %cst_133 = arith.constant dense<0.000000e+00> : vector<8x96xf32>
    %334 = tpu.matmul %331, %333, %cst_133 {dimension_numbers = #tpu.dot_dimension_numbers<[1], [0], [0], [1], [0, 0, 1, 1], [], []>} : vector<8x32xbf16>, vector<32x96xbf16>, vector<8x96xf32> -> vector<8x96xf32>
    %335 = vector.extract_strided_slice %334 {offsets = [0, 0], sizes = [8, 48], strides = [1, 1]} : vector<8x96xf32> to vector<8x48xf32>
    %336 = vector.extract_strided_slice %334 {offsets = [0, 48], sizes = [8, 48], strides = [1, 1]} : vector<8x96xf32> to vector<8x48xf32>
    %c1_i32 = arith.constant 1 : i32
    %337 = tpu.dynamic_rotate %335 by %c1_i32 dim 0 : vector<8x48xf32>, i32 -> vector<8x48xf32>
    %cst_134 = arith.constant 0.000000e+00 : f32
    %338 = vector.broadcast %cst_134 : f32 to vector<8x48xf32>
    %339 = arith.select %302, %338, %337 : vector<8x48xi1>, vector<8x48xf32>
    %c7_i32_135 = arith.constant 7 : i32
    %340 = tpu.dynamic_rotate %335 by %c7_i32_135 dim 0 : vector<8x48xf32>, i32 -> vector<8x48xf32>
    %cst_136 = arith.constant 0.000000e+00 : f32
    %341 = vector.broadcast %cst_136 : f32 to vector<8x48xf32>
    %342 = arith.select %304, %341, %340 : vector<8x48xi1>, vector<8x48xf32>
    %c0_137 = arith.constant 0 : index
    %c0_138 = arith.constant 0 : index
    %c0_139 = arith.constant 0 : index
    %343 = vector.load %arg9[%c0_137, %c0_138, %c0_139] : memref<4x3x48xf32, #tpu.memory_space<vmem>>, vector<1x3x48xf32>
    %344 = vector.shape_cast %343 : vector<1x3x48xf32> to vector<3x48xf32>
    %345 = vector.extract_strided_slice %344 {offsets = [0, 0], sizes = [1, 48], strides = [1, 1]} : vector<3x48xf32> to vector<1x48xf32>
    %346 = vector.broadcast %345 : vector<1x48xf32> to vector<8x48xf32>
    %347 = arith.mulf %339, %346 : vector<8x48xf32>
    %348 = vector.extract_strided_slice %344 {offsets = [1, 0], sizes = [1, 48], strides = [1, 1]} : vector<3x48xf32> to vector<1x48xf32>
    %349 = vector.broadcast %348 : vector<1x48xf32> to vector<8x48xf32>
    %350 = arith.mulf %335, %349 : vector<8x48xf32>
    %351 = arith.addf %347, %350 : vector<8x48xf32>
    %352 = vector.extract_strided_slice %344 {offsets = [2, 0], sizes = [1, 48], strides = [1, 1]} : vector<3x48xf32> to vector<1x48xf32>
    %353 = vector.broadcast %352 : vector<1x48xf32> to vector<8x48xf32>
    %354 = arith.mulf %342, %353 : vector<8x48xf32>
    %355 = arith.addf %351, %354 : vector<8x48xf32>
    %cst_140 = arith.constant 0.000000e+00 : f32
    %356 = vector.broadcast %cst_140 : f32 to vector<8x48xf32>
    %357 = arith.subf %356, %355 : vector<8x48xf32>
    %358 = math.exp %357 : vector<8x48xf32>
    %cst_141 = arith.constant 1.000000e+00 : f32
    %359 = vector.broadcast %cst_141 : f32 to vector<8x48xf32>
    %360 = arith.addf %359, %358 : vector<8x48xf32>
    %361 = tpu.reciprocal %360 {approx = true} : vector<8x48xf32> -> vector<8x48xf32>
    %362 = arith.mulf %355, %361 : vector<8x48xf32>
    %363 = arith.truncf %362 : vector<8x48xf32> to vector<8x48xbf16>
    %c0_142 = arith.constant 0 : index
    %c0_143 = arith.constant 0 : index
    %c0_144 = arith.constant 0 : index
    %364 = vector.load %arg10[%c0_142, %c0_143, %c0_144] : memref<4x48x48xbf16, #tpu.memory_space<vmem>>, vector<1x48x48xbf16>
    %365 = vector.shape_cast %364 : vector<1x48x48xbf16> to vector<48x48xbf16>
    %cst_145 = arith.constant dense<0.000000e+00> : vector<8x48xf32>
    %366 = tpu.matmul %363, %365, %cst_145 {dimension_numbers = #tpu.dot_dimension_numbers<[1], [0], [0], [1], [0, 0, 1, 1], [], []>} : vector<8x48xbf16>, vector<48x48xbf16>, vector<8x48xf32> -> vector<8x48xf32>
    %c0_146 = arith.constant 0 : index
    %c0_147 = arith.constant 0 : index
    %c0_148 = arith.constant 0 : index
    %367 = vector.load %arg11[%c0_146, %c0_147, %c0_148] : memref<4x1x48xf32, #tpu.memory_space<vmem>>, vector<1x1x48xf32>
    %368 = vector.shape_cast %367 : vector<1x1x48xf32> to vector<1x48xf32>
    %369 = vector.broadcast %368 : vector<1x48xf32> to vector<8x48xf32>
    %370 = arith.addf %366, %369 : vector<8x48xf32>
    %cst_149 = arith.constant 3.000000e+01 : f32
    %371 = vector.broadcast %cst_149 : f32 to vector<8x48xf32>
    %372 = arith.minimumf %370, %371 : vector<8x48xf32>
    %373 = math.exp %372 : vector<8x48xf32>
    %cst_150 = arith.constant 2.000000e+00 : f32
    %374 = vector.broadcast %cst_150 : f32 to vector<8x48xf32>
    %375 = arith.addf %374, %373 : vector<8x48xf32>
    %376 = tpu.reciprocal %375 {approx = true} : vector<8x48xf32> -> vector<8x48xf32>
    %cst_151 = arith.constant 1.000000e+00 : f32
    %377 = vector.broadcast %cst_151 : f32 to vector<8x48xf32>
    %378 = arith.subf %377, %376 : vector<8x48xf32>
    %379 = arith.mulf %362, %378 : vector<8x48xf32>
    %cst_152 = arith.constant 0.000000e+00 : f32
    %380 = vector.broadcast %cst_152 : f32 to vector<8x48xf32>
    %381 = arith.subf %380, %336 : vector<8x48xf32>
    %382 = math.exp %381 : vector<8x48xf32>
    %cst_153 = arith.constant 1.000000e+00 : f32
    %383 = vector.broadcast %cst_153 : f32 to vector<8x48xf32>
    %384 = arith.addf %383, %382 : vector<8x48xf32>
    %385 = tpu.reciprocal %384 {approx = true} : vector<8x48xf32> -> vector<8x48xf32>
    %386 = arith.mulf %379, %385 : vector<8x48xf32>
    %387 = arith.truncf %386 : vector<8x48xf32> to vector<8x48xbf16>
    %c0_154 = arith.constant 0 : index
    %c0_155 = arith.constant 0 : index
    %c0_156 = arith.constant 0 : index
    %388 = vector.load %arg12[%c0_154, %c0_155, %c0_156] : memref<4x48x32xbf16, #tpu.memory_space<vmem>>, vector<1x48x32xbf16>
    %389 = vector.shape_cast %388 : vector<1x48x32xbf16> to vector<48x32xbf16>
    %cst_157 = arith.constant dense<0.000000e+00> : vector<8x32xf32>
    %390 = tpu.matmul %387, %389, %cst_157 {dimension_numbers = #tpu.dot_dimension_numbers<[1], [0], [0], [1], [0, 0, 1, 1], [], []>} : vector<8x48xbf16>, vector<48x32xbf16>, vector<8x32xf32> -> vector<8x32xf32>
    %c0_158 = arith.constant 0 : index
    %c0_159 = arith.constant 0 : index
    %c0_160 = arith.constant 0 : index
    %391 = vector.load %arg13[%c0_158, %c0_159, %c0_160] : memref<4x1x32xf32, #tpu.memory_space<vmem>>, vector<1x1x32xf32>
    %392 = vector.shape_cast %391 : vector<1x1x32xf32> to vector<1x32xf32>
    %393 = vector.broadcast %392 : vector<1x32xf32> to vector<8x32xf32>
    %394 = arith.mulf %390, %393 : vector<8x32xf32>
    %395 = arith.addf %394, %298 : vector<8x32xf32>
    %c1_161 = arith.constant 1 : index
    %c0_162 = arith.constant 0 : index
    %c0_163 = arith.constant 0 : index
    %396 = vector.load %arg6[%c1_161, %c0_162, %c0_163] : memref<4x1x32xf32, #tpu.memory_space<vmem>>, vector<1x1x32xf32>
    %397 = vector.shape_cast %396 : vector<1x1x32xf32> to vector<1x32xf32>
    %c1_164 = arith.constant 1 : index
    %c0_165 = arith.constant 0 : index
    %c0_166 = arith.constant 0 : index
    %398 = vector.load %arg7[%c1_164, %c0_165, %c0_166] : memref<4x1x32xf32, #tpu.memory_space<vmem>>, vector<1x1x32xf32>
    %399 = vector.shape_cast %398 : vector<1x1x32xf32> to vector<1x32xf32>
    %cst_167 = arith.constant dense<0.000000e+00> : vector<8xf32>
    %400 = vector.multi_reduction <add>, %395, %cst_167 [1] : vector<8x32xf32> to vector<8xf32>
    %401 = vector.shape_cast %400 : vector<8xf32> to vector<8x1xf32>
    %cst_168 = arith.constant 3.200000e+01 : f32
    %402 = vector.broadcast %cst_168 : f32 to vector<8x1xf32>
    %403 = arith.divf %401, %402 : vector<8x1xf32>
    %404 = vector.broadcast %403 : vector<8x1xf32> to vector<8x32xf32>
    %405 = arith.subf %395, %404 : vector<8x32xf32>
    %406 = arith.mulf %405, %405 : vector<8x32xf32>
    %cst_169 = arith.constant dense<0.000000e+00> : vector<8xf32>
    %407 = vector.multi_reduction <add>, %406, %cst_169 [1] : vector<8x32xf32> to vector<8xf32>
    %408 = vector.shape_cast %407 : vector<8xf32> to vector<8x1xf32>
    %cst_170 = arith.constant 3.200000e+01 : f32
    %409 = vector.broadcast %cst_170 : f32 to vector<8x1xf32>
    %410 = arith.divf %408, %409 : vector<8x1xf32>
    %411 = vector.broadcast %403 : vector<8x1xf32> to vector<8x32xf32>
    %412 = arith.subf %395, %411 : vector<8x32xf32>
    %cst_171 = arith.constant 9.99999974E-6 : f32
    %413 = vector.broadcast %cst_171 : f32 to vector<8x1xf32>
    %414 = arith.addf %410, %413 : vector<8x1xf32>
    %415 = math.rsqrt %414 : vector<8x1xf32>
    %416 = vector.broadcast %415 : vector<8x1xf32> to vector<8x32xf32>
    %417 = arith.mulf %412, %416 : vector<8x32xf32>
    %418 = vector.broadcast %397 : vector<1x32xf32> to vector<8x32xf32>
    %419 = arith.mulf %417, %418 : vector<8x32xf32>
    %420 = vector.broadcast %399 : vector<1x32xf32> to vector<8x32xf32>
    %421 = arith.addf %419, %420 : vector<8x32xf32>
    %422 = arith.truncf %421 : vector<8x32xf32> to vector<8x32xbf16>
    %c1_172 = arith.constant 1 : index
    %c0_173 = arith.constant 0 : index
    %c0_174 = arith.constant 0 : index
    %423 = vector.load %arg8[%c1_172, %c0_173, %c0_174] : memref<4x32x96xbf16, #tpu.memory_space<vmem>>, vector<1x32x96xbf16>
    %424 = vector.shape_cast %423 : vector<1x32x96xbf16> to vector<32x96xbf16>
    %cst_175 = arith.constant dense<0.000000e+00> : vector<8x96xf32>
    %425 = tpu.matmul %422, %424, %cst_175 {dimension_numbers = #tpu.dot_dimension_numbers<[1], [0], [0], [1], [0, 0, 1, 1], [], []>} : vector<8x32xbf16>, vector<32x96xbf16>, vector<8x96xf32> -> vector<8x96xf32>
    %426 = vector.extract_strided_slice %425 {offsets = [0, 0], sizes = [8, 48], strides = [1, 1]} : vector<8x96xf32> to vector<8x48xf32>
    %427 = vector.extract_strided_slice %425 {offsets = [0, 48], sizes = [8, 48], strides = [1, 1]} : vector<8x96xf32> to vector<8x48xf32>
    %c1_i32_176 = arith.constant 1 : i32
    %428 = tpu.dynamic_rotate %426 by %c1_i32_176 dim 0 : vector<8x48xf32>, i32 -> vector<8x48xf32>
    %cst_177 = arith.constant 0.000000e+00 : f32
    %429 = vector.broadcast %cst_177 : f32 to vector<8x48xf32>
    %430 = arith.select %302, %429, %428 : vector<8x48xi1>, vector<8x48xf32>
    %c7_i32_178 = arith.constant 7 : i32
    %431 = tpu.dynamic_rotate %426 by %c7_i32_178 dim 0 : vector<8x48xf32>, i32 -> vector<8x48xf32>
    %cst_179 = arith.constant 0.000000e+00 : f32
    %432 = vector.broadcast %cst_179 : f32 to vector<8x48xf32>
    %433 = arith.select %304, %432, %431 : vector<8x48xi1>, vector<8x48xf32>
    %c1_180 = arith.constant 1 : index
    %c0_181 = arith.constant 0 : index
    %c0_182 = arith.constant 0 : index
    %434 = vector.load %arg9[%c1_180, %c0_181, %c0_182] : memref<4x3x48xf32, #tpu.memory_space<vmem>>, vector<1x3x48xf32>
    %435 = vector.shape_cast %434 : vector<1x3x48xf32> to vector<3x48xf32>
    %436 = vector.extract_strided_slice %435 {offsets = [0, 0], sizes = [1, 48], strides = [1, 1]} : vector<3x48xf32> to vector<1x48xf32>
    %437 = vector.broadcast %436 : vector<1x48xf32> to vector<8x48xf32>
    %438 = arith.mulf %430, %437 : vector<8x48xf32>
    %439 = vector.extract_strided_slice %435 {offsets = [1, 0], sizes = [1, 48], strides = [1, 1]} : vector<3x48xf32> to vector<1x48xf32>
    %440 = vector.broadcast %439 : vector<1x48xf32> to vector<8x48xf32>
    %441 = arith.mulf %426, %440 : vector<8x48xf32>
    %442 = arith.addf %438, %441 : vector<8x48xf32>
    %443 = vector.extract_strided_slice %435 {offsets = [2, 0], sizes = [1, 48], strides = [1, 1]} : vector<3x48xf32> to vector<1x48xf32>
    %444 = vector.broadcast %443 : vector<1x48xf32> to vector<8x48xf32>
    %445 = arith.mulf %433, %444 : vector<8x48xf32>
    %446 = arith.addf %442, %445 : vector<8x48xf32>
    %cst_183 = arith.constant 0.000000e+00 : f32
    %447 = vector.broadcast %cst_183 : f32 to vector<8x48xf32>
    %448 = arith.subf %447, %446 : vector<8x48xf32>
    %449 = math.exp %448 : vector<8x48xf32>
    %cst_184 = arith.constant 1.000000e+00 : f32
    %450 = vector.broadcast %cst_184 : f32 to vector<8x48xf32>
    %451 = arith.addf %450, %449 : vector<8x48xf32>
    %452 = tpu.reciprocal %451 {approx = true} : vector<8x48xf32> -> vector<8x48xf32>
    %453 = arith.mulf %446, %452 : vector<8x48xf32>
    %454 = arith.truncf %453 : vector<8x48xf32> to vector<8x48xbf16>
    %c1_185 = arith.constant 1 : index
    %c0_186 = arith.constant 0 : index
    %c0_187 = arith.constant 0 : index
    %455 = vector.load %arg10[%c1_185, %c0_186, %c0_187] : memref<4x48x48xbf16, #tpu.memory_space<vmem>>, vector<1x48x48xbf16>
    %456 = vector.shape_cast %455 : vector<1x48x48xbf16> to vector<48x48xbf16>
    %cst_188 = arith.constant dense<0.000000e+00> : vector<8x48xf32>
    %457 = tpu.matmul %454, %456, %cst_188 {dimension_numbers = #tpu.dot_dimension_numbers<[1], [0], [0], [1], [0, 0, 1, 1], [], []>} : vector<8x48xbf16>, vector<48x48xbf16>, vector<8x48xf32> -> vector<8x48xf32>
    %c1_189 = arith.constant 1 : index
    %c0_190 = arith.constant 0 : index
    %c0_191 = arith.constant 0 : index
    %458 = vector.load %arg11[%c1_189, %c0_190, %c0_191] : memref<4x1x48xf32, #tpu.memory_space<vmem>>, vector<1x1x48xf32>
    %459 = vector.shape_cast %458 : vector<1x1x48xf32> to vector<1x48xf32>
    %460 = vector.broadcast %459 : vector<1x48xf32> to vector<8x48xf32>
    %461 = arith.addf %457, %460 : vector<8x48xf32>
    %cst_192 = arith.constant 3.000000e+01 : f32
    %462 = vector.broadcast %cst_192 : f32 to vector<8x48xf32>
    %463 = arith.minimumf %461, %462 : vector<8x48xf32>
    %464 = math.exp %463 : vector<8x48xf32>
    %cst_193 = arith.constant 2.000000e+00 : f32
    %465 = vector.broadcast %cst_193 : f32 to vector<8x48xf32>
    %466 = arith.addf %465, %464 : vector<8x48xf32>
    %467 = tpu.reciprocal %466 {approx = true} : vector<8x48xf32> -> vector<8x48xf32>
    %cst_194 = arith.constant 1.000000e+00 : f32
    %468 = vector.broadcast %cst_194 : f32 to vector<8x48xf32>
    %469 = arith.subf %468, %467 : vector<8x48xf32>
    %470 = arith.mulf %453, %469 : vector<8x48xf32>
    %cst_195 = arith.constant 0.000000e+00 : f32
    %471 = vector.broadcast %cst_195 : f32 to vector<8x48xf32>
    %472 = arith.subf %471, %427 : vector<8x48xf32>
    %473 = math.exp %472 : vector<8x48xf32>
    %cst_196 = arith.constant 1.000000e+00 : f32
    %474 = vector.broadcast %cst_196 : f32 to vector<8x48xf32>
    %475 = arith.addf %474, %473 : vector<8x48xf32>
    %476 = tpu.reciprocal %475 {approx = true} : vector<8x48xf32> -> vector<8x48xf32>
    %477 = arith.mulf %470, %476 : vector<8x48xf32>
    %478 = arith.truncf %477 : vector<8x48xf32> to vector<8x48xbf16>
    %c1_197 = arith.constant 1 : index
    %c0_198 = arith.constant 0 : index
    %c0_199 = arith.constant 0 : index
    %479 = vector.load %arg12[%c1_197, %c0_198, %c0_199] : memref<4x48x32xbf16, #tpu.memory_space<vmem>>, vector<1x48x32xbf16>
    %480 = vector.shape_cast %479 : vector<1x48x32xbf16> to vector<48x32xbf16>
    %cst_200 = arith.constant dense<0.000000e+00> : vector<8x32xf32>
    %481 = tpu.matmul %478, %480, %cst_200 {dimension_numbers = #tpu.dot_dimension_numbers<[1], [0], [0], [1], [0, 0, 1, 1], [], []>} : vector<8x48xbf16>, vector<48x32xbf16>, vector<8x32xf32> -> vector<8x32xf32>
    %c1_201 = arith.constant 1 : index
    %c0_202 = arith.constant 0 : index
    %c0_203 = arith.constant 0 : index
    %482 = vector.load %arg13[%c1_201, %c0_202, %c0_203] : memref<4x1x32xf32, #tpu.memory_space<vmem>>, vector<1x1x32xf32>
    %483 = vector.shape_cast %482 : vector<1x1x32xf32> to vector<1x32xf32>
    %484 = vector.broadcast %483 : vector<1x32xf32> to vector<8x32xf32>
    %485 = arith.mulf %481, %484 : vector<8x32xf32>
    %486 = arith.addf %485, %395 : vector<8x32xf32>
    %c2_204 = arith.constant 2 : index
    %c0_205 = arith.constant 0 : index
    %c0_206 = arith.constant 0 : index
    %487 = vector.load %arg6[%c2_204, %c0_205, %c0_206] : memref<4x1x32xf32, #tpu.memory_space<vmem>>, vector<1x1x32xf32>
    %488 = vector.shape_cast %487 : vector<1x1x32xf32> to vector<1x32xf32>
    %c2_207 = arith.constant 2 : index
    %c0_208 = arith.constant 0 : index
    %c0_209 = arith.constant 0 : index
    %489 = vector.load %arg7[%c2_207, %c0_208, %c0_209] : memref<4x1x32xf32, #tpu.memory_space<vmem>>, vector<1x1x32xf32>
    %490 = vector.shape_cast %489 : vector<1x1x32xf32> to vector<1x32xf32>
    %cst_210 = arith.constant dense<0.000000e+00> : vector<8xf32>
    %491 = vector.multi_reduction <add>, %486, %cst_210 [1] : vector<8x32xf32> to vector<8xf32>
    %492 = vector.shape_cast %491 : vector<8xf32> to vector<8x1xf32>
    %cst_211 = arith.constant 3.200000e+01 : f32
    %493 = vector.broadcast %cst_211 : f32 to vector<8x1xf32>
    %494 = arith.divf %492, %493 : vector<8x1xf32>
    %495 = vector.broadcast %494 : vector<8x1xf32> to vector<8x32xf32>
    %496 = arith.subf %486, %495 : vector<8x32xf32>
    %497 = arith.mulf %496, %496 : vector<8x32xf32>
    %cst_212 = arith.constant dense<0.000000e+00> : vector<8xf32>
    %498 = vector.multi_reduction <add>, %497, %cst_212 [1] : vector<8x32xf32> to vector<8xf32>
    %499 = vector.shape_cast %498 : vector<8xf32> to vector<8x1xf32>
    %cst_213 = arith.constant 3.200000e+01 : f32
    %500 = vector.broadcast %cst_213 : f32 to vector<8x1xf32>
    %501 = arith.divf %499, %500 : vector<8x1xf32>
    %502 = vector.broadcast %494 : vector<8x1xf32> to vector<8x32xf32>
    %503 = arith.subf %486, %502 : vector<8x32xf32>
    %cst_214 = arith.constant 9.99999974E-6 : f32
    %504 = vector.broadcast %cst_214 : f32 to vector<8x1xf32>
    %505 = arith.addf %501, %504 : vector<8x1xf32>
    %506 = math.rsqrt %505 : vector<8x1xf32>
    %507 = vector.broadcast %506 : vector<8x1xf32> to vector<8x32xf32>
    %508 = arith.mulf %503, %507 : vector<8x32xf32>
    %509 = vector.broadcast %488 : vector<1x32xf32> to vector<8x32xf32>
    %510 = arith.mulf %508, %509 : vector<8x32xf32>
    %511 = vector.broadcast %490 : vector<1x32xf32> to vector<8x32xf32>
    %512 = arith.addf %510, %511 : vector<8x32xf32>
    %513 = arith.truncf %512 : vector<8x32xf32> to vector<8x32xbf16>
    %c2_215 = arith.constant 2 : index
    %c0_216 = arith.constant 0 : index
    %c0_217 = arith.constant 0 : index
    %514 = vector.load %arg8[%c2_215, %c0_216, %c0_217] : memref<4x32x96xbf16, #tpu.memory_space<vmem>>, vector<1x32x96xbf16>
    %515 = vector.shape_cast %514 : vector<1x32x96xbf16> to vector<32x96xbf16>
    %cst_218 = arith.constant dense<0.000000e+00> : vector<8x96xf32>
    %516 = tpu.matmul %513, %515, %cst_218 {dimension_numbers = #tpu.dot_dimension_numbers<[1], [0], [0], [1], [0, 0, 1, 1], [], []>} : vector<8x32xbf16>, vector<32x96xbf16>, vector<8x96xf32> -> vector<8x96xf32>
    %517 = vector.extract_strided_slice %516 {offsets = [0, 0], sizes = [8, 48], strides = [1, 1]} : vector<8x96xf32> to vector<8x48xf32>
    %518 = vector.extract_strided_slice %516 {offsets = [0, 48], sizes = [8, 48], strides = [1, 1]} : vector<8x96xf32> to vector<8x48xf32>
    %c1_i32_219 = arith.constant 1 : i32
    %519 = tpu.dynamic_rotate %517 by %c1_i32_219 dim 0 : vector<8x48xf32>, i32 -> vector<8x48xf32>
    %cst_220 = arith.constant 0.000000e+00 : f32
    %520 = vector.broadcast %cst_220 : f32 to vector<8x48xf32>
    %521 = arith.select %302, %520, %519 : vector<8x48xi1>, vector<8x48xf32>
    %c7_i32_221 = arith.constant 7 : i32
    %522 = tpu.dynamic_rotate %517 by %c7_i32_221 dim 0 : vector<8x48xf32>, i32 -> vector<8x48xf32>
    %cst_222 = arith.constant 0.000000e+00 : f32
    %523 = vector.broadcast %cst_222 : f32 to vector<8x48xf32>
    %524 = arith.select %304, %523, %522 : vector<8x48xi1>, vector<8x48xf32>
    %c2_223 = arith.constant 2 : index
    %c0_224 = arith.constant 0 : index
    %c0_225 = arith.constant 0 : index
    %525 = vector.load %arg9[%c2_223, %c0_224, %c0_225] : memref<4x3x48xf32, #tpu.memory_space<vmem>>, vector<1x3x48xf32>
    %526 = vector.shape_cast %525 : vector<1x3x48xf32> to vector<3x48xf32>
    %527 = vector.extract_strided_slice %526 {offsets = [0, 0], sizes = [1, 48], strides = [1, 1]} : vector<3x48xf32> to vector<1x48xf32>
    %528 = vector.broadcast %527 : vector<1x48xf32> to vector<8x48xf32>
    %529 = arith.mulf %521, %528 : vector<8x48xf32>
    %530 = vector.extract_strided_slice %526 {offsets = [1, 0], sizes = [1, 48], strides = [1, 1]} : vector<3x48xf32> to vector<1x48xf32>
    %531 = vector.broadcast %530 : vector<1x48xf32> to vector<8x48xf32>
    %532 = arith.mulf %517, %531 : vector<8x48xf32>
    %533 = arith.addf %529, %532 : vector<8x48xf32>
    %534 = vector.extract_strided_slice %526 {offsets = [2, 0], sizes = [1, 48], strides = [1, 1]} : vector<3x48xf32> to vector<1x48xf32>
    %535 = vector.broadcast %534 : vector<1x48xf32> to vector<8x48xf32>
    %536 = arith.mulf %524, %535 : vector<8x48xf32>
    %537 = arith.addf %533, %536 : vector<8x48xf32>
    %cst_226 = arith.constant 0.000000e+00 : f32
    %538 = vector.broadcast %cst_226 : f32 to vector<8x48xf32>
    %539 = arith.subf %538, %537 : vector<8x48xf32>
    %540 = math.exp %539 : vector<8x48xf32>
    %cst_227 = arith.constant 1.000000e+00 : f32
    %541 = vector.broadcast %cst_227 : f32 to vector<8x48xf32>
    %542 = arith.addf %541, %540 : vector<8x48xf32>
    %543 = tpu.reciprocal %542 {approx = true} : vector<8x48xf32> -> vector<8x48xf32>
    %544 = arith.mulf %537, %543 : vector<8x48xf32>
    %545 = arith.truncf %544 : vector<8x48xf32> to vector<8x48xbf16>
    %c2_228 = arith.constant 2 : index
    %c0_229 = arith.constant 0 : index
    %c0_230 = arith.constant 0 : index
    %546 = vector.load %arg10[%c2_228, %c0_229, %c0_230] : memref<4x48x48xbf16, #tpu.memory_space<vmem>>, vector<1x48x48xbf16>
    %547 = vector.shape_cast %546 : vector<1x48x48xbf16> to vector<48x48xbf16>
    %cst_231 = arith.constant dense<0.000000e+00> : vector<8x48xf32>
    %548 = tpu.matmul %545, %547, %cst_231 {dimension_numbers = #tpu.dot_dimension_numbers<[1], [0], [0], [1], [0, 0, 1, 1], [], []>} : vector<8x48xbf16>, vector<48x48xbf16>, vector<8x48xf32> -> vector<8x48xf32>
    %c2_232 = arith.constant 2 : index
    %c0_233 = arith.constant 0 : index
    %c0_234 = arith.constant 0 : index
    %549 = vector.load %arg11[%c2_232, %c0_233, %c0_234] : memref<4x1x48xf32, #tpu.memory_space<vmem>>, vector<1x1x48xf32>
    %550 = vector.shape_cast %549 : vector<1x1x48xf32> to vector<1x48xf32>
    %551 = vector.broadcast %550 : vector<1x48xf32> to vector<8x48xf32>
    %552 = arith.addf %548, %551 : vector<8x48xf32>
    %cst_235 = arith.constant 3.000000e+01 : f32
    %553 = vector.broadcast %cst_235 : f32 to vector<8x48xf32>
    %554 = arith.minimumf %552, %553 : vector<8x48xf32>
    %555 = math.exp %554 : vector<8x48xf32>
    %cst_236 = arith.constant 2.000000e+00 : f32
    %556 = vector.broadcast %cst_236 : f32 to vector<8x48xf32>
    %557 = arith.addf %556, %555 : vector<8x48xf32>
    %558 = tpu.reciprocal %557 {approx = true} : vector<8x48xf32> -> vector<8x48xf32>
    %cst_237 = arith.constant 1.000000e+00 : f32
    %559 = vector.broadcast %cst_237 : f32 to vector<8x48xf32>
    %560 = arith.subf %559, %558 : vector<8x48xf32>
    %561 = arith.mulf %544, %560 : vector<8x48xf32>
    %cst_238 = arith.constant 0.000000e+00 : f32
    %562 = vector.broadcast %cst_238 : f32 to vector<8x48xf32>
    %563 = arith.subf %562, %518 : vector<8x48xf32>
    %564 = math.exp %563 : vector<8x48xf32>
    %cst_239 = arith.constant 1.000000e+00 : f32
    %565 = vector.broadcast %cst_239 : f32 to vector<8x48xf32>
    %566 = arith.addf %565, %564 : vector<8x48xf32>
    %567 = tpu.reciprocal %566 {approx = true} : vector<8x48xf32> -> vector<8x48xf32>
    %568 = arith.mulf %561, %567 : vector<8x48xf32>
    %569 = arith.truncf %568 : vector<8x48xf32> to vector<8x48xbf16>
    %c2_240 = arith.constant 2 : index
    %c0_241 = arith.constant 0 : index
    %c0_242 = arith.constant 0 : index
    %570 = vector.load %arg12[%c2_240, %c0_241, %c0_242] : memref<4x48x32xbf16, #tpu.memory_space<vmem>>, vector<1x48x32xbf16>
    %571 = vector.shape_cast %570 : vector<1x48x32xbf16> to vector<48x32xbf16>
    %cst_243 = arith.constant dense<0.000000e+00> : vector<8x32xf32>
    %572 = tpu.matmul %569, %571, %cst_243 {dimension_numbers = #tpu.dot_dimension_numbers<[1], [0], [0], [1], [0, 0, 1, 1], [], []>} : vector<8x48xbf16>, vector<48x32xbf16>, vector<8x32xf32> -> vector<8x32xf32>
    %c2_244 = arith.constant 2 : index
    %c0_245 = arith.constant 0 : index
    %c0_246 = arith.constant 0 : index
    %573 = vector.load %arg13[%c2_244, %c0_245, %c0_246] : memref<4x1x32xf32, #tpu.memory_space<vmem>>, vector<1x1x32xf32>
    %574 = vector.shape_cast %573 : vector<1x1x32xf32> to vector<1x32xf32>
    %575 = vector.broadcast %574 : vector<1x32xf32> to vector<8x32xf32>
    %576 = arith.mulf %572, %575 : vector<8x32xf32>
    %577 = arith.addf %576, %486 : vector<8x32xf32>
    %c3_247 = arith.constant 3 : index
    %c0_248 = arith.constant 0 : index
    %c0_249 = arith.constant 0 : index
    %578 = vector.load %arg6[%c3_247, %c0_248, %c0_249] : memref<4x1x32xf32, #tpu.memory_space<vmem>>, vector<1x1x32xf32>
    %579 = vector.shape_cast %578 : vector<1x1x32xf32> to vector<1x32xf32>
    %c3_250 = arith.constant 3 : index
    %c0_251 = arith.constant 0 : index
    %c0_252 = arith.constant 0 : index
    %580 = vector.load %arg7[%c3_250, %c0_251, %c0_252] : memref<4x1x32xf32, #tpu.memory_space<vmem>>, vector<1x1x32xf32>
    %581 = vector.shape_cast %580 : vector<1x1x32xf32> to vector<1x32xf32>
    %cst_253 = arith.constant dense<0.000000e+00> : vector<8xf32>
    %582 = vector.multi_reduction <add>, %577, %cst_253 [1] : vector<8x32xf32> to vector<8xf32>
    %583 = vector.shape_cast %582 : vector<8xf32> to vector<8x1xf32>
    %cst_254 = arith.constant 3.200000e+01 : f32
    %584 = vector.broadcast %cst_254 : f32 to vector<8x1xf32>
    %585 = arith.divf %583, %584 : vector<8x1xf32>
    %586 = vector.broadcast %585 : vector<8x1xf32> to vector<8x32xf32>
    %587 = arith.subf %577, %586 : vector<8x32xf32>
    %588 = arith.mulf %587, %587 : vector<8x32xf32>
    %cst_255 = arith.constant dense<0.000000e+00> : vector<8xf32>
    %589 = vector.multi_reduction <add>, %588, %cst_255 [1] : vector<8x32xf32> to vector<8xf32>
    %590 = vector.shape_cast %589 : vector<8xf32> to vector<8x1xf32>
    %cst_256 = arith.constant 3.200000e+01 : f32
    %591 = vector.broadcast %cst_256 : f32 to vector<8x1xf32>
    %592 = arith.divf %590, %591 : vector<8x1xf32>
    %593 = vector.broadcast %585 : vector<8x1xf32> to vector<8x32xf32>
    %594 = arith.subf %577, %593 : vector<8x32xf32>
    %cst_257 = arith.constant 9.99999974E-6 : f32
    %595 = vector.broadcast %cst_257 : f32 to vector<8x1xf32>
    %596 = arith.addf %592, %595 : vector<8x1xf32>
    %597 = math.rsqrt %596 : vector<8x1xf32>
    %598 = vector.broadcast %597 : vector<8x1xf32> to vector<8x32xf32>
    %599 = arith.mulf %594, %598 : vector<8x32xf32>
    %600 = vector.broadcast %579 : vector<1x32xf32> to vector<8x32xf32>
    %601 = arith.mulf %599, %600 : vector<8x32xf32>
    %602 = vector.broadcast %581 : vector<1x32xf32> to vector<8x32xf32>
    %603 = arith.addf %601, %602 : vector<8x32xf32>
    %604 = arith.truncf %603 : vector<8x32xf32> to vector<8x32xbf16>
    %c3_258 = arith.constant 3 : index
    %c0_259 = arith.constant 0 : index
    %c0_260 = arith.constant 0 : index
    %605 = vector.load %arg8[%c3_258, %c0_259, %c0_260] : memref<4x32x96xbf16, #tpu.memory_space<vmem>>, vector<1x32x96xbf16>
    %606 = vector.shape_cast %605 : vector<1x32x96xbf16> to vector<32x96xbf16>
    %cst_261 = arith.constant dense<0.000000e+00> : vector<8x96xf32>
    %607 = tpu.matmul %604, %606, %cst_261 {dimension_numbers = #tpu.dot_dimension_numbers<[1], [0], [0], [1], [0, 0, 1, 1], [], []>} : vector<8x32xbf16>, vector<32x96xbf16>, vector<8x96xf32> -> vector<8x96xf32>
    %608 = vector.extract_strided_slice %607 {offsets = [0, 0], sizes = [8, 48], strides = [1, 1]} : vector<8x96xf32> to vector<8x48xf32>
    %609 = vector.extract_strided_slice %607 {offsets = [0, 48], sizes = [8, 48], strides = [1, 1]} : vector<8x96xf32> to vector<8x48xf32>
    %c1_i32_262 = arith.constant 1 : i32
    %610 = tpu.dynamic_rotate %608 by %c1_i32_262 dim 0 : vector<8x48xf32>, i32 -> vector<8x48xf32>
    %cst_263 = arith.constant 0.000000e+00 : f32
    %611 = vector.broadcast %cst_263 : f32 to vector<8x48xf32>
    %612 = arith.select %302, %611, %610 : vector<8x48xi1>, vector<8x48xf32>
    %c7_i32_264 = arith.constant 7 : i32
    %613 = tpu.dynamic_rotate %608 by %c7_i32_264 dim 0 : vector<8x48xf32>, i32 -> vector<8x48xf32>
    %cst_265 = arith.constant 0.000000e+00 : f32
    %614 = vector.broadcast %cst_265 : f32 to vector<8x48xf32>
    %615 = arith.select %304, %614, %613 : vector<8x48xi1>, vector<8x48xf32>
    %c3_266 = arith.constant 3 : index
    %c0_267 = arith.constant 0 : index
    %c0_268 = arith.constant 0 : index
    %616 = vector.load %arg9[%c3_266, %c0_267, %c0_268] : memref<4x3x48xf32, #tpu.memory_space<vmem>>, vector<1x3x48xf32>
    %617 = vector.shape_cast %616 : vector<1x3x48xf32> to vector<3x48xf32>
    %618 = vector.extract_strided_slice %617 {offsets = [0, 0], sizes = [1, 48], strides = [1, 1]} : vector<3x48xf32> to vector<1x48xf32>
    %619 = vector.broadcast %618 : vector<1x48xf32> to vector<8x48xf32>
    %620 = arith.mulf %612, %619 : vector<8x48xf32>
    %621 = vector.extract_strided_slice %617 {offsets = [1, 0], sizes = [1, 48], strides = [1, 1]} : vector<3x48xf32> to vector<1x48xf32>
    %622 = vector.broadcast %621 : vector<1x48xf32> to vector<8x48xf32>
    %623 = arith.mulf %608, %622 : vector<8x48xf32>
    %624 = arith.addf %620, %623 : vector<8x48xf32>
    %625 = vector.extract_strided_slice %617 {offsets = [2, 0], sizes = [1, 48], strides = [1, 1]} : vector<3x48xf32> to vector<1x48xf32>
    %626 = vector.broadcast %625 : vector<1x48xf32> to vector<8x48xf32>
    %627 = arith.mulf %615, %626 : vector<8x48xf32>
    %628 = arith.addf %624, %627 : vector<8x48xf32>
    %cst_269 = arith.constant 0.000000e+00 : f32
    %629 = vector.broadcast %cst_269 : f32 to vector<8x48xf32>
    %630 = arith.subf %629, %628 : vector<8x48xf32>
    %631 = math.exp %630 : vector<8x48xf32>
    %cst_270 = arith.constant 1.000000e+00 : f32
    %632 = vector.broadcast %cst_270 : f32 to vector<8x48xf32>
    %633 = arith.addf %632, %631 : vector<8x48xf32>
    %634 = tpu.reciprocal %633 {approx = true} : vector<8x48xf32> -> vector<8x48xf32>
    %635 = arith.mulf %628, %634 : vector<8x48xf32>
    %636 = arith.truncf %635 : vector<8x48xf32> to vector<8x48xbf16>
    %c3_271 = arith.constant 3 : index
    %c0_272 = arith.constant 0 : index
    %c0_273 = arith.constant 0 : index
    %637 = vector.load %arg10[%c3_271, %c0_272, %c0_273] : memref<4x48x48xbf16, #tpu.memory_space<vmem>>, vector<1x48x48xbf16>
    %638 = vector.shape_cast %637 : vector<1x48x48xbf16> to vector<48x48xbf16>
    %cst_274 = arith.constant dense<0.000000e+00> : vector<8x48xf32>
    %639 = tpu.matmul %636, %638, %cst_274 {dimension_numbers = #tpu.dot_dimension_numbers<[1], [0], [0], [1], [0, 0, 1, 1], [], []>} : vector<8x48xbf16>, vector<48x48xbf16>, vector<8x48xf32> -> vector<8x48xf32>
    %c3_275 = arith.constant 3 : index
    %c0_276 = arith.constant 0 : index
    %c0_277 = arith.constant 0 : index
    %640 = vector.load %arg11[%c3_275, %c0_276, %c0_277] : memref<4x1x48xf32, #tpu.memory_space<vmem>>, vector<1x1x48xf32>
    %641 = vector.shape_cast %640 : vector<1x1x48xf32> to vector<1x48xf32>
    %642 = vector.broadcast %641 : vector<1x48xf32> to vector<8x48xf32>
    %643 = arith.addf %639, %642 : vector<8x48xf32>
    %cst_278 = arith.constant 3.000000e+01 : f32
    %644 = vector.broadcast %cst_278 : f32 to vector<8x48xf32>
    %645 = arith.minimumf %643, %644 : vector<8x48xf32>
    %646 = math.exp %645 : vector<8x48xf32>
    %cst_279 = arith.constant 2.000000e+00 : f32
    %647 = vector.broadcast %cst_279 : f32 to vector<8x48xf32>
    %648 = arith.addf %647, %646 : vector<8x48xf32>
    %649 = tpu.reciprocal %648 {approx = true} : vector<8x48xf32> -> vector<8x48xf32>
    %cst_280 = arith.constant 1.000000e+00 : f32
    %650 = vector.broadcast %cst_280 : f32 to vector<8x48xf32>
    %651 = arith.subf %650, %649 : vector<8x48xf32>
    %652 = arith.mulf %635, %651 : vector<8x48xf32>
    %cst_281 = arith.constant 0.000000e+00 : f32
    %653 = vector.broadcast %cst_281 : f32 to vector<8x48xf32>
    %654 = arith.subf %653, %609 : vector<8x48xf32>
    %655 = math.exp %654 : vector<8x48xf32>
    %cst_282 = arith.constant 1.000000e+00 : f32
    %656 = vector.broadcast %cst_282 : f32 to vector<8x48xf32>
    %657 = arith.addf %656, %655 : vector<8x48xf32>
    %658 = tpu.reciprocal %657 {approx = true} : vector<8x48xf32> -> vector<8x48xf32>
    %659 = arith.mulf %652, %658 : vector<8x48xf32>
    %660 = arith.truncf %659 : vector<8x48xf32> to vector<8x48xbf16>
    %c3_283 = arith.constant 3 : index
    %c0_284 = arith.constant 0 : index
    %c0_285 = arith.constant 0 : index
    %661 = vector.load %arg12[%c3_283, %c0_284, %c0_285] : memref<4x48x32xbf16, #tpu.memory_space<vmem>>, vector<1x48x32xbf16>
    %662 = vector.shape_cast %661 : vector<1x48x32xbf16> to vector<48x32xbf16>
    %cst_286 = arith.constant dense<0.000000e+00> : vector<8x32xf32>
    %663 = tpu.matmul %660, %662, %cst_286 {dimension_numbers = #tpu.dot_dimension_numbers<[1], [0], [0], [1], [0, 0, 1, 1], [], []>} : vector<8x48xbf16>, vector<48x32xbf16>, vector<8x32xf32> -> vector<8x32xf32>
    %c3_287 = arith.constant 3 : index
    %c0_288 = arith.constant 0 : index
    %c0_289 = arith.constant 0 : index
    %664 = vector.load %arg13[%c3_287, %c0_288, %c0_289] : memref<4x1x32xf32, #tpu.memory_space<vmem>>, vector<1x1x32xf32>
    %665 = vector.shape_cast %664 : vector<1x1x32xf32> to vector<1x32xf32>
    %666 = vector.broadcast %665 : vector<1x32xf32> to vector<8x32xf32>
    %667 = arith.mulf %663, %666 : vector<8x32xf32>
    %668 = arith.addf %667, %577 : vector<8x32xf32>
    %cst_290 = arith.constant dense<0.000000e+00> : vector<8xf32>
    %669 = vector.multi_reduction <add>, %668, %cst_290 [1] : vector<8x32xf32> to vector<8xf32>
    %670 = vector.shape_cast %669 : vector<8xf32> to vector<8x1xf32>
    %cst_291 = arith.constant 3.200000e+01 : f32
    %671 = vector.broadcast %cst_291 : f32 to vector<8x1xf32>
    %672 = arith.divf %670, %671 : vector<8x1xf32>
    %673 = vector.broadcast %672 : vector<8x1xf32> to vector<8x32xf32>
    %674 = arith.subf %668, %673 : vector<8x32xf32>
    %675 = arith.mulf %674, %674 : vector<8x32xf32>
    %cst_292 = arith.constant dense<0.000000e+00> : vector<8xf32>
    %676 = vector.multi_reduction <add>, %675, %cst_292 [1] : vector<8x32xf32> to vector<8xf32>
    %677 = vector.shape_cast %676 : vector<8xf32> to vector<8x1xf32>
    %cst_293 = arith.constant 3.200000e+01 : f32
    %678 = vector.broadcast %cst_293 : f32 to vector<8x1xf32>
    %679 = arith.divf %677, %678 : vector<8x1xf32>
    %680 = vector.broadcast %672 : vector<8x1xf32> to vector<8x32xf32>
    %681 = arith.subf %668, %680 : vector<8x32xf32>
    %cst_294 = arith.constant 9.99999974E-6 : f32
    %682 = vector.broadcast %cst_294 : f32 to vector<8x1xf32>
    %683 = arith.addf %679, %682 : vector<8x1xf32>
    %684 = math.rsqrt %683 : vector<8x1xf32>
    %685 = vector.broadcast %684 : vector<8x1xf32> to vector<8x32xf32>
    %686 = arith.mulf %681, %685 : vector<8x32xf32>
    %687 = arith.truncf %686 : vector<8x32xf32> to vector<8x32xbf16>
    %c0_295 = arith.constant 0 : index
    %c0_296 = arith.constant 0 : index
    %688 = vector.load %arg14[%c0_295, %c0_296] : memref<32x128xbf16, #tpu.memory_space<vmem>>, vector<32x128xbf16>
    %cst_297 = arith.constant dense<0.000000e+00> : vector<8x128xf32>
    %689 = tpu.matmul %687, %688, %cst_297 {dimension_numbers = #tpu.dot_dimension_numbers<[1], [0], [0], [1], [0, 0, 1, 1], [], []>} : vector<8x32xbf16>, vector<32x128xbf16>, vector<8x128xf32> -> vector<8x128xf32>
    %c0_298 = arith.constant 0 : index
    %c0_299 = arith.constant 0 : index
    %690 = vector.load %arg15[%c0_298, %c0_299] : memref<1x128xf32, #tpu.memory_space<vmem>>, vector<1x128xf32>
    %691 = vector.broadcast %690 : vector<1x128xf32> to vector<8x128xf32>
    %692 = arith.addf %689, %691 : vector<8x128xf32>
    %cst_300 = arith.constant 5.000000e-01 : f32
    %693 = vector.broadcast %cst_300 : f32 to vector<8x128xf32>
    %694 = arith.mulf %693, %692 : vector<8x128xf32>
    %cst_301 = arith.constant 4.471500e-02 : f32
    %695 = vector.broadcast %cst_301 : f32 to vector<8x128xf32>
    %696 = arith.mulf %695, %692 : vector<8x128xf32>
    %697 = arith.mulf %696, %692 : vector<8x128xf32>
    %698 = arith.mulf %697, %692 : vector<8x128xf32>
    %699 = arith.addf %692, %698 : vector<8x128xf32>
    %cst_302 = arith.constant 0.797884583 : f32
    %700 = vector.broadcast %cst_302 : f32 to vector<8x128xf32>
    %701 = arith.mulf %700, %699 : vector<8x128xf32>
    %702 = math.tanh %701 : vector<8x128xf32>
    %cst_303 = arith.constant 1.000000e+00 : f32
    %703 = vector.broadcast %cst_303 : f32 to vector<8x128xf32>
    %704 = arith.addf %703, %702 : vector<8x128xf32>
    %705 = arith.mulf %694, %704 : vector<8x128xf32>
    %706 = arith.truncf %705 : vector<8x128xf32> to vector<8x128xbf16>
    %c0_304 = arith.constant 0 : index
    %c0_305 = arith.constant 0 : index
    %707 = vector.load %arg16[%c0_304, %c0_305] : memref<128x2048xbf16, #tpu.memory_space<vmem>>, vector<128x2048xbf16>
    %cst_306 = arith.constant dense<0.000000e+00> : vector<8x2048xf32>
    %708 = tpu.matmul %706, %707, %cst_306 {dimension_numbers = #tpu.dot_dimension_numbers<[1], [0], [0], [1], [0, 0, 1, 1], [], []>} : vector<8x128xbf16>, vector<128x2048xbf16>, vector<8x2048xf32> -> vector<8x2048xf32>
    %c0_307 = arith.constant 0 : index
    %c0_308 = arith.constant 0 : index
    %709 = vector.load %arg17[%c0_307, %c0_308] : memref<1x2048xf32, #tpu.memory_space<vmem>>, vector<1x2048xf32>
    %710 = vector.broadcast %709 : vector<1x2048xf32> to vector<8x2048xf32>
    %711 = arith.addf %708, %710 : vector<8x2048xf32>
    %712 = vector.shape_cast %711 : vector<8x2048xf32> to vector<1x8x2048xf32>
    %c0_309 = arith.constant 0 : index
    %c0_310 = arith.constant 0 : index
    %c0_311 = arith.constant 0 : index
    %713 = vector.load %arg18[%c0_309, %c0_310, %c0_311] : memref<1x8x2048xf32, #tpu.memory_space<vmem>>, vector<1x8x2048xf32>
    tpu.vector_store %arg18[%c0_309, %c0_310, %c0_311], %712 {strides = array<i32>} : memref<1x8x2048xf32, #tpu.memory_space<vmem>>, vector<1x8x2048xf32>,
    return
  }
  func.func @transform_0(%arg0: i32) -> (i32, i32, i32) {
    %c0_i32 = arith.constant 0 : i32
    %c0_i32_0 = arith.constant 0 : i32
    %c0_i32_1 = arith.constant 0 : i32
    return %arg0, %c0_i32, %c0_i32_0 : i32, i32, i32
  }
  func.func @transform_1(%arg0: i32) -> (i32, i32, i32) {
    %c0_i32 = arith.constant 0 : i32
    %c0_i32_0 = arith.constant 0 : i32
    %c0_i32_1 = arith.constant 0 : i32
    return %arg0, %c0_i32, %c0_i32_0 : i32, i32, i32
  }
  func.func @transform_2(%arg0: i32) -> (i32, i32, i32) {
    %c0_i32 = arith.constant 0 : i32
    %c0_i32_0 = arith.constant 0 : i32
    %c0_i32_1 = arith.constant 0 : i32
    %c0_i32_2 = arith.constant 0 : i32
    return %c0_i32, %c0_i32_0, %c0_i32_1 : i32, i32, i32
  }
  func.func @transform_3(%arg0: i32) -> (i32, i32, i32) {
    %c0_i32 = arith.constant 0 : i32
    %c0_i32_0 = arith.constant 0 : i32
    %c0_i32_1 = arith.constant 0 : i32
    %c0_i32_2 = arith.constant 0 : i32
    return %c0_i32, %c0_i32_0, %c0_i32_1 : i32, i32, i32
  }
  func.func @transform_4(%arg0: i32) -> (i32, i32, i32) {
    %c0_i32 = arith.constant 0 : i32
    %c0_i32_0 = arith.constant 0 : i32
    %c0_i32_1 = arith.constant 0 : i32
    %c0_i32_2 = arith.constant 0 : i32
    return %c0_i32, %c0_i32_0, %c0_i32_1 : i32, i32, i32
  }
  func.func @transform_5(%arg0: i32) -> (i32, i32, i32) {
    %c0_i32 = arith.constant 0 : i32
    %c0_i32_0 = arith.constant 0 : i32
    %c0_i32_1 = arith.constant 0 : i32
    %c0_i32_2 = arith.constant 0 : i32
    return %c0_i32, %c0_i32_0, %c0_i32_1 : i32, i32, i32
  }
  func.func @transform_6(%arg0: i32) -> (i32, i32, i32) {
    %c0_i32 = arith.constant 0 : i32
    %c0_i32_0 = arith.constant 0 : i32
    %c0_i32_1 = arith.constant 0 : i32
    %c0_i32_2 = arith.constant 0 : i32
    return %c0_i32, %c0_i32_0, %c0_i32_1 : i32, i32, i32
  }
  func.func @transform_7(%arg0: i32) -> (i32, i32, i32) {
    %c0_i32 = arith.constant 0 : i32
    %c0_i32_0 = arith.constant 0 : i32
    %c0_i32_1 = arith.constant 0 : i32
    %c0_i32_2 = arith.constant 0 : i32
    return %c0_i32, %c0_i32_0, %c0_i32_1 : i32, i32, i32
  }
  func.func @transform_8(%arg0: i32) -> (i32, i32, i32) {
    %c0_i32 = arith.constant 0 : i32
    %c0_i32_0 = arith.constant 0 : i32
    %c0_i32_1 = arith.constant 0 : i32
    %c0_i32_2 = arith.constant 0 : i32
    return %c0_i32, %c0_i32_0, %c0_i32_1 : i32, i32, i32
  }
  func.func @transform_9(%arg0: i32) -> (i32, i32, i32) {
    %c0_i32 = arith.constant 0 : i32
    %c0_i32_0 = arith.constant 0 : i32
    %c0_i32_1 = arith.constant 0 : i32
    %c0_i32_2 = arith.constant 0 : i32
    return %c0_i32, %c0_i32_0, %c0_i32_1 : i32, i32, i32
  }
  func.func @transform_10(%arg0: i32) -> (i32, i32, i32) {
    %c0_i32 = arith.constant 0 : i32
    %c0_i32_0 = arith.constant 0 : i32
    %c0_i32_1 = arith.constant 0 : i32
    %c0_i32_2 = arith.constant 0 : i32
    return %c0_i32, %c0_i32_0, %c0_i32_1 : i32, i32, i32
  }
  func.func @transform_11(%arg0: i32) -> (i32, i32, i32) {
    %c0_i32 = arith.constant 0 : i32
    %c0_i32_0 = arith.constant 0 : i32
    %c0_i32_1 = arith.constant 0 : i32
    %c0_i32_2 = arith.constant 0 : i32
    return %c0_i32, %c0_i32_0, %c0_i32_1 : i32, i32, i32
  }
  func.func @transform_12(%arg0: i32) -> (i32, i32, i32) {
    %c0_i32 = arith.constant 0 : i32
    %c0_i32_0 = arith.constant 0 : i32
    %c0_i32_1 = arith.constant 0 : i32
    %c0_i32_2 = arith.constant 0 : i32
    return %c0_i32, %c0_i32_0, %c0_i32_1 : i32, i32, i32
  }
  func.func @transform_13(%arg0: i32) -> (i32, i32) {
    %c0_i32 = arith.constant 0 : i32
    %c0_i32_0 = arith.constant 0 : i32
    %c0_i32_1 = arith.constant 0 : i32
    return %c0_i32, %c0_i32_0 : i32, i32
  }
  func.func @transform_14(%arg0: i32) -> (i32, i32) {
    %c0_i32 = arith.constant 0 : i32
    %c0_i32_0 = arith.constant 0 : i32
    %c0_i32_1 = arith.constant 0 : i32
    return %c0_i32, %c0_i32_0 : i32, i32
  }
  func.func @transform_15(%arg0: i32) -> (i32, i32) {
    %c0_i32 = arith.constant 0 : i32
    %c0_i32_0 = arith.constant 0 : i32
    %c0_i32_1 = arith.constant 0 : i32
    return %c0_i32, %c0_i32_0 : i32, i32
  }
  func.func @transform_16(%arg0: i32) -> (i32, i32) {
    %c0_i32 = arith.constant 0 : i32
    %c0_i32_0 = arith.constant 0 : i32
    %c0_i32_1 = arith.constant 0 : i32
    return %c0_i32, %c0_i32_0 : i32, i32
  }
  func.func @transform_17(%arg0: i32) -> (i32, i32, i32) {
    %c0_i32 = arith.constant 0 : i32
    %c0_i32_0 = arith.constant 0 : i32
    %c0_i32_1 = arith.constant 0 : i32
    return %arg0, %c0_i32, %c0_i32_0 : i32, i32, i32
  }
}

</mosaic_0001>

<llo_original>
// kernel: tpu_custom_call.1
$region0: #{tpu_custom_call.1}
  #allocation0 [shape = 'u32[]', space=smem, size = 0x4, offset = 0x4, fixed_abs, tag = 'smem constant byte address 0x4 - core index']
  #allocation1 [shape = 'u32[144,128]{1,0:T(1,128)}', space=vmem, size = 0x12000, scoped, tag = 'internal scratch']
  %s0 = inlined_call_operand.vmem [shape: s32[2,8,8], index: 0, kind: input, shape index: {}]
  %s1 = inlined_call_operand.vmem [shape: f32[2,1,32], index: 1, kind: input, shape index: {}]
  %s2 = inlined_call_operand.vmem [shape: bf16[8,256,32], index: 2, kind: input, shape index: {}]
  %s3 = inlined_call_operand.vmem [shape: f32[8,1,32], index: 3, kind: input, shape index: {}]
  %s4 = inlined_call_operand.vmem [shape: f32[8,1,32], index: 4, kind: input, shape index: {}]
  %s5 = inlined_call_operand.vmem [shape: f32[4,1,32], index: 5, kind: input, shape index: {}]
  %s6 = inlined_call_operand.vmem [shape: f32[4,1,32], index: 6, kind: input, shape index: {}]
  %s7 = inlined_call_operand.vmem [shape: bf16[4,32,96], index: 7, kind: input, shape index: {}]
  %s8 = inlined_call_operand.vmem [shape: f32[4,3,48], index: 8, kind: input, shape index: {}]
  %s9 = inlined_call_operand.vmem [shape: bf16[4,48,48], index: 9, kind: input, shape index: {}]
  %s10 = inlined_call_operand.vmem [shape: f32[4,1,48], index: 10, kind: input, shape index: {}]
  %s11 = inlined_call_operand.vmem [shape: bf16[4,48,32], index: 11, kind: input, shape index: {}]
  %s12 = inlined_call_operand.vmem [shape: f32[4,1,32], index: 12, kind: input, shape index: {}]
  %s13 = inlined_call_operand.vmem [shape: bf16[32,128], index: 13, kind: input, shape index: {}]
  %s14 = inlined_call_operand.vmem [shape: f32[1,128], index: 14, kind: input, shape index: {}]
  %s15 = inlined_call_operand.vmem [shape: bf16[128,2048], index: 15, kind: input, shape index: {}]
  %s16 = inlined_call_operand.vmem [shape: f32[1,2048], index: 16, kind: input, shape index: {}]
  %s17 = inlined_call_operand.hbm [shape: f32[2,8,2048], index: 17, kind: output, shape index: {}]
  %s18 = sld [smem:[#allocation0]]
  $region101: #{tpu_custom_call.1} parent=0
    _
  %s20 = ssub.s32 1, %s18
  %s21 = scalar_select 0, %s20, %s18
  $region1: #{tpu_custom_call.1} parent=0
    #allocation2 [shape = 'u8[131072]{0}', space=vmem, size = 0x20000, scoped, tag = 'output window, operand 0']
    #allocation3 [shape = 's32[2]{0}', space=sflag, size = 0x8, scoped, tag = 'scoped memory for tpu_custom_call.1']
    %22 = vsyncpa [#allocation3], 0
    %s23 = scalar_lea.sflag [#allocation3], 1
    %24 = vsyncpa %s23, 0
    loop: start=0, step=1, limit=4
    $region2: #{tpu_custom_call.1} parent=1 // loop_pre_header
      _
    $region3: #{tpu_custom_call.1} parent=1 // loop_header
      %s26 = sphi 0, %s30
      %p27 = scmp.ge.s32.totalorder %s26, 4
      %s36 = sphi 0, %s38
      %s39 = sphi 0, %s36
      %s40 = sphi 0, %s39
      %s56 = sphi 0, %s40
      %s62 = sphi 0, %s64
      %s65 = sphi 0, %s62
      %s66 = sphi 0, %s65
      %s82 = sphi 0, %s66
      %s86 = sphi 0, %s86
      %s88 = sphi 0, %s86
      %s89 = sphi 0, %s88
      %s103 = sphi 0, %s89
      %s107 = sphi 0, %s107
      %s109 = sphi 0, %s107
      %s110 = sphi 0, %s109
      %s124 = sphi 0, %s110
      %s128 = sphi 0, %s128
      %s130 = sphi 0, %s128
      %s131 = sphi 0, %s130
      %s145 = sphi 0, %s131
      %s149 = sphi 0, %s149
      %s151 = sphi 0, %s149
      %s152 = sphi 0, %s151
      %s166 = sphi 0, %s152
      %s170 = sphi 0, %s170
      %s172 = sphi 0, %s170
      %s173 = sphi 0, %s172
      %s187 = sphi 0, %s173
      %s191 = sphi 0, %s191
      %s193 = sphi 0, %s191
      %s194 = sphi 0, %s193
      %s208 = sphi 0, %s194
      %s212 = sphi 0, %s212
      %s214 = sphi 0, %s212
      %s215 = sphi 0, %s214
      %s229 = sphi 0, %s215
      %s233 = sphi 0, %s233
      %s235 = sphi 0, %s233
      %s236 = sphi 0, %s235
      %s250 = sphi 0, %s236
      %s254 = sphi 0, %s254
      %s256 = sphi 0, %s254
      %s257 = sphi 0, %s256
      %s271 = sphi 0, %s257
      %s275 = sphi 0, %s275
      %s277 = sphi 0, %s275
      %s278 = sphi 0, %s277
      %s292 = sphi 0, %s278
      %s296 = sphi 0, %s296
      %s298 = sphi 0, %s296
      %s299 = sphi 0, %s298
      %s313 = sphi 0, %s299
      %s317 = sphi 0, %s317
      %s319 = sphi 0, %s317
      %s320 = sphi 0, %s319
      %s334 = sphi 0, %s320
      %s338 = sphi 0, %s338
      %s340 = sphi 0, %s338
      %s341 = sphi 0, %s340
      %s355 = sphi 0, %s341
      %s359 = sphi 0, %s359
      %s361 = sphi 0, %s359
      %s362 = sphi 0, %s361
      %s376 = sphi 0, %s362
      %s380 = sphi 0, %s380
      %s382 = sphi 0, %s380
      %s383 = sphi 0, %s382
      %s397 = sphi 0, %s383
      %s403 = sphi 0, %s405
      %s406 = sphi 0, %s403
      %s407 = sphi 0, %s406
      %s423 = sphi 0, %s407
    $region4: #{tpu_custom_call.1} parent=1 // loop_header_branch
      %29 = sbr.rel (%p27) target = $region8
    $region5: #{tpu_custom_call.1} parent=1 // loop_body
      %s31 = ssub.s32 %s26, 1
      %s32 = ssub.s32 %s26, 2
      %s33 = sadd.s32 %s26, 1
      %s34 = ssub.s32 %s26, %s33
      %p35 = scmp.eq.s32.totalorder %s34, 0
      %s37 = sadd.s32 %s36, 1
      %s38 = scalar_select %p35, %s36, %s37
      %p41 = pneg %p35
      %p42 = scmp.eq.s32.totalorder %s26, 1
      %p43 = por %p41, %p42
      %p44 = scmp.ne.s32.totalorder %s36, %s39
      %p45 = scmp.eq.s32.totalorder %s26, 0
      %p46 = por %p44, %p45
      %p47 = scmp.ne.s32.totalorder %s36, %s39
      %p48 = scmp.eq.s32.totalorder %s31, 1
      %p49 = por %p47, %p48
      %p50 = scmp.ne.s32.totalorder %s39, %s40
      %p51 = scmp.eq.s32.totalorder %s31, 0
      %p52 = por %p50, %p51
      %p53 = scmp.ne.s32.totalorder %s39, %s40
      %p54 = scmp.eq.s32.totalorder %s32, 1
      %p55 = por %p53, %p54
      %p57 = scmp.ne.s32.totalorder %s40, %s56
      %p58 = scmp.eq.s32.totalorder %s32, 0
      %p59 = por %p57, %p58
      %s60 = ssub.s32 %s26, %s33
      %p61 = scmp.eq.s32.totalorder %s60, 0
      %s63 = sadd.s32 %s62, 1
      %s64 = scalar_select %p61, %s62, %s63
      %p67 = pneg %p61
      %p68 = scmp.eq.s32.totalorder %s26, 1
      %p69 = por %p67, %p68
      %p70 = scmp.ne.s32.totalorder %s62, %s65
      %p71 = scmp.eq.s32.totalorder %s26, 0
      %p72 = por %p70, %p71
      %p73 = scmp.ne.s32.totalorder %s62, %s65
      %p74 = scmp.eq.s32.totalorder %s31, 1
      %p75 = por %p73, %p74
      %p76 = scmp.ne.s32.totalorder %s65, %s66
      %p77 = scmp.eq.s32.totalorder %s31, 0
      %p78 = por %p76, %p77
      %p79 = scmp.ne.s32.totalorder %s65, %s66
      %p80 = scmp.eq.s32.totalorder %s32, 1
      %p81 = por %p79, %p80
      %p83 = scmp.ne.s32.totalorder %s66, %s82
      %p84 = scmp.eq.s32.totalorder %s32, 0
      %p85 = por %p83, %p84
      %s87 = sadd.s32 %s86, 1
      %p90 = scmp.eq.s32.totalorder %s26, 1
      %p91 = scmp.ne.s32.totalorder %s86, %s88
      %p92 = scmp.eq.s32.totalorder %s26, 0
      %p93 = por %p91, %p92
      %p94 = scmp.ne.s32.totalorder %s86, %s88
      %p95 = scmp.eq.s32.totalorder %s31, 1
      %p96 = por %p94, %p95
      %p97 = scmp.ne.s32.totalorder %s88, %s89
      %p98 = scmp.eq.s32.totalorder %s31, 0
      %p99 = por %p97, %p98
      %p100 = scmp.ne.s32.totalorder %s88, %s89
      %p101 = scmp.eq.s32.totalorder %s32, 1
      %p102 = por %p100, %p101
      %p104 = scmp.ne.s32.totalorder %s89, %s103
      %p105 = scmp.eq.s32.totalorder %s32, 0
      %p106 = por %p104, %p105
      %s108 = sadd.s32 %s107, 1
      %p111 = scmp.eq.s32.totalorder %s26, 1
      %p112 = scmp.ne.s32.totalorder %s107, %s109
      %p113 = scmp.eq.s32.totalorder %s26, 0
      %p114 = por %p112, %p113
      %p115 = scmp.ne.s32.totalorder %s107, %s109
      %p116 = scmp.eq.s32.totalorder %s31, 1
      %p117 = por %p115, %p116
      %p118 = scmp.ne.s32.totalorder %s109, %s110
      %p119 = scmp.eq.s32.totalorder %s31, 0
      %p120 = por %p118, %p119
      %p121 = scmp.ne.s32.totalorder %s109, %s110
      %p122 = scmp.eq.s32.totalorder %s32, 1
      %p123 = por %p121, %p122
      %p125 = scmp.ne.s32.totalorder %s110, %s124
      %p126 = scmp.eq.s32.totalorder %s32, 0
      %p127 = por %p125, %p126
      %s129 = sadd.s32 %s128, 1
      %p132 = scmp.eq.s32.totalorder %s26, 1
      %p133 = scmp.ne.s32.totalorder %s128, %s130
      %p134 = scmp.eq.s32.totalorder %s26, 0
      %p135 = por %p133, %p134
      %p136 = scmp.ne.s32.totalorder %s128, %s130
      %p137 = scmp.eq.s32.totalorder %s31, 1
      %p138 = por %p136, %p137
      %p139 = scmp.ne.s32.totalorder %s130, %s131
      %p140 = scmp.eq.s32.totalorder %s31, 0
      %p141 = por %p139, %p140
      %p142 = scmp.ne.s32.totalorder %s130, %s131
      %p143 = scmp.eq.s32.totalorder %s32, 1
      %p144 = por %p142, %p143
      %p146 = scmp.ne.s32.totalorder %s131, %s145
      %p147 = scmp.eq.s32.totalorder %s32, 0
      %p148 = por %p146, %p147
      %s150 = sadd.s32 %s149, 1
      %p153 = scmp.eq.s32.totalorder %s26, 1
      %p154 = scmp.ne.s32.totalorder %s149, %s151
      %p155 = scmp.eq.s32.totalorder %s26, 0
      %p156 = por %p154, %p155
      %p157 = scmp.ne.s32.totalorder %s149, %s151
      %p158 = scmp.eq.s32.totalorder %s31, 1
      %p159 = por %p157, %p158
      %p160 = scmp.ne.s32.totalorder %s151, %s152
      %p161 = scmp.eq.s32.totalorder %s31, 0
      %p162 = por %p160, %p161
      %p163 = scmp.ne.s32.totalorder %s151, %s152
      %p164 = scmp.eq.s32.totalorder %s32, 1
      %p165 = por %p163, %p164
      %p167 = scmp.ne.s32.totalorder %s152, %s166
      %p168 = scmp.eq.s32.totalorder %s32, 0
      %p169 = por %p167, %p168
      %s171 = sadd.s32 %s170, 1
      %p174 = scmp.eq.s32.totalorder %s26, 1
      %p175 = scmp.ne.s32.totalorder %s170, %s172
      %p176 = scmp.eq.s32.totalorder %s26, 0
      %p177 = por %p175, %p176
      %p178 = scmp.ne.s32.totalorder %s170, %s172
      %p179 = scmp.eq.s32.totalorder %s31, 1
      %p180 = por %p178, %p179
      %p181 = scmp.ne.s32.totalorder %s172, %s173
      %p182 = scmp.eq.s32.totalorder %s31, 0
      %p183 = por %p181, %p182
      %p184 = scmp.ne.s32.totalorder %s172, %s173
      %p185 = scmp.eq.s32.totalorder %s32, 1
      %p186 = por %p184, %p185
      %p188 = scmp.ne.s32.totalorder %s173, %s187
      %p189 = scmp.eq.s32.totalorder %s32, 0
      %p190 = por %p188, %p189
      %s192 = sadd.s32 %s191, 1
      %p195 = scmp.eq.s32.totalorder %s26, 1
      %p196 = scmp.ne.s32.totalorder %s191, %s193
      %p197 = scmp.eq.s32.totalorder %s26, 0
      %p198 = por %p196, %p197
      %p199 = scmp.ne.s32.totalorder %s191, %s193
      %p200 = scmp.eq.s32.totalorder %s31, 1
      %p201 = por %p199, %p200
      %p202 = scmp.ne.s32.totalorder %s193, %s194
      %p203 = scmp.eq.s32.totalorder %s31, 0
      %p204 = por %p202, %p203
      %p205 = scmp.ne.s32.totalorder %s193, %s194
      %p206 = scmp.eq.s32.totalorder %s32, 1
      %p207 = por %p205, %p206
      %p209 = scmp.ne.s32.totalorder %s194, %s208
      %p210 = scmp.eq.s32.totalorder %s32, 0
      %p211 = por %p209, %p210
      %s213 = sadd.s32 %s212, 1
      %p216 = scmp.eq.s32.totalorder %s26, 1
      %p217 = scmp.ne.s32.totalorder %s212, %s214
      %p218 = scmp.eq.s32.totalorder %s26, 0
      %p219 = por %p217, %p218
      %p220 = scmp.ne.s32.totalorder %s212, %s214
      %p221 = scmp.eq.s32.totalorder %s31, 1
      %p222 = por %p220, %p221
      %p223 = scmp.ne.s32.totalorder %s214, %s215
      %p224 = scmp.eq.s32.totalorder %s31, 0
      %p225 = por %p223, %p224
      %p226 = scmp.ne.s32.totalorder %s214, %s215
      %p227 = scmp.eq.s32.totalorder %s32, 1
      %p228 = por %p226, %p227
      %p230 = scmp.ne.s32.totalorder %s215, %s229
      %p231 = scmp.eq.s32.totalorder %s32, 0
      %p232 = por %p230, %p231
      %s234 = sadd.s32 %s233, 1
      %p237 = scmp.eq.s32.totalorder %s26, 1
      %p238 = scmp.ne.s32.totalorder %s233, %s235
      %p239 = scmp.eq.s32.totalorder %s26, 0
      %p240 = por %p238, %p239
      %p241 = scmp.ne.s32.totalorder %s233, %s235
      %p242 = scmp.eq.s32.totalorder %s31, 1
      %p243 = por %p241, %p242
      %p244 = scmp.ne.s32.totalorder %s235, %s236
      %p245 = scmp.eq.s32.totalorder %s31, 0
      %p246 = por %p244, %p245
      %p247 = scmp.ne.s32.totalorder %s235, %s236
      %p248 = scmp.eq.s32.totalorder %s32, 1
      %p249 = por %p247, %p248
      %p251 = scmp.ne.s32.totalorder %s236, %s250
      %p252 = scmp.eq.s32.totalorder %s32, 0
      %p253 = por %p251, %p252
      %s255 = sadd.s32 %s254, 1
      %p258 = scmp.eq.s32.totalorder %s26, 1
      %p259 = scmp.ne.s32.totalorder %s254, %s256
      %p260 = scmp.eq.s32.totalorder %s26, 0
      %p261 = por %p259, %p260
      %p262 = scmp.ne.s32.totalorder %s254, %s256
      %p263 = scmp.eq.s32.totalorder %s31, 1
      %p264 = por %p262, %p263
      %p265 = scmp.ne.s32.totalorder %s256, %s257
      %p266 = scmp.eq.s32.totalorder %s31, 0
      %p267 = por %p265, %p266
      %p268 = scmp.ne.s32.totalorder %s256, %s257
      %p269 = scmp.eq.s32.totalorder %s32, 1
      %p270 = por %p268, %p269
      %p272 = scmp.ne.s32.totalorder %s257, %s271
      %p273 = scmp.eq.s32.totalorder %s32, 0
      %p274 = por %p272, %p273
      %s276 = sadd.s32 %s275, 1
      %p279 = scmp.eq.s32.totalorder %s26, 1
      %p280 = scmp.ne.s32.totalorder %s275, %s277
      %p281 = scmp.eq.s32.totalorder %s26, 0
      %p282 = por %p280, %p281
      %p283 = scmp.ne.s32.totalorder %s275, %s277
      %p284 = scmp.eq.s32.totalorder %s31, 1
      %p285 = por %p283, %p284
      %p286 = scmp.ne.s32.totalorder %s277, %s278
      %p287 = scmp.eq.s32.totalorder %s31, 0
      %p288 = por %p286, %p287
      %p289 = scmp.ne.s32.totalorder %s277, %s278
      %p290 = scmp.eq.s32.totalorder %s32, 1
      %p291 = por %p289, %p290
      %p293 = scmp.ne.s32.totalorder %s278, %s292
      %p294 = scmp.eq.s32.totalorder %s32, 0
      %p295 = por %p293, %p294
      %s297 = sadd.s32 %s296, 1
      %p300 = scmp.eq.s32.totalorder %s26, 1
      %p301 = scmp.ne.s32.totalorder %s296, %s298
      %p302 = scmp.eq.s32.totalorder %s26, 0
      %p303 = por %p301, %p302
      %p304 = scmp.ne.s32.totalorder %s296, %s298
      %p305 = scmp.eq.s32.totalorder %s31, 1
      %p306 = por %p304, %p305
      %p307 = scmp.ne.s32.totalorder %s298, %s299
      %p308 = scmp.eq.s32.totalorder %s31, 0
      %p309 = por %p307, %p308
      %p310 = scmp.ne.s32.totalorder %s298, %s299
      %p311 = scmp.eq.s32.totalorder %s32, 1
      %p312 = por %p310, %p311
      %p314 = scmp.ne.s32.totalorder %s299, %s313
      %p315 = scmp.eq.s32.totalorder %s32, 0
      %p316 = por %p314, %p315
      %s318 = sadd.s32 %s317, 1
      %p321 = scmp.eq.s32.totalorder %s26, 1
      %p322 = scmp.ne.s32.totalorder %s317, %s319
      %p323 = scmp.eq.s32.totalorder %s26, 0
      %p324 = por %p322, %p323
      %p325 = scmp.ne.s32.totalorder %s317, %s319
      %p326 = scmp.eq.s32.totalorder %s31, 1
      %p327 = por %p325, %p326
      %p328 = scmp.ne.s32.totalorder %s319, %s320
      %p329 = scmp.eq.s32.totalorder %s31, 0
      %p330 = por %p328, %p329
      %p331 = scmp.ne.s32.totalorder %s319, %s320
      %p332 = scmp.eq.s32.totalorder %s32, 1
      %p333 = por %p331, %p332
      %p335 = scmp.ne.s32.totalorder %s320, %s334
      %p336 = scmp.eq.s32.totalorder %s32, 0
      %p337 = por %p335, %p336
      %s339 = sadd.s32 %s338, 1
      %p342 = scmp.eq.s32.totalorder %s26, 1
      %p343 = scmp.ne.s32.totalorder %s338, %s340
      %p344 = scmp.eq.s32.totalorder %s26, 0
      %p345 = por %p343, %p344
      %p346 = scmp.ne.s32.totalorder %s338, %s340
      %p347 = scmp.eq.s32.totalorder %s31, 1
      %p348 = por %p346, %p347
      %p349 = scmp.ne.s32.totalorder %s340, %s341
      %p350 = scmp.eq.s32.totalorder %s31, 0
      %p351 = por %p349, %p350
      %p352 = scmp.ne.s32.totalorder %s340, %s341
      %p353 = scmp.eq.s32.totalorder %s32, 1
      %p354 = por %p352, %p353
      %p356 = scmp.ne.s32.totalorder %s341, %s355
      %p357 = scmp.eq.s32.totalorder %s32, 0
      %p358 = por %p356, %p357
      %s360 = sadd.s32 %s359, 1
      %p363 = scmp.eq.s32.totalorder %s26, 1
      %p364 = scmp.ne.s32.totalorder %s359, %s361
      %p365 = scmp.eq.s32.totalorder %s26, 0
      %p366 = por %p364, %p365
      %p367 = scmp.ne.s32.totalorder %s359, %s361
      %p368 = scmp.eq.s32.totalorder %s31, 1
      %p369 = por %p367, %p368
      %p370 = scmp.ne.s32.totalorder %s361, %s362
      %p371 = scmp.eq.s32.totalorder %s31, 0
      %p372 = por %p370, %p371
      %p373 = scmp.ne.s32.totalorder %s361, %s362
      %p374 = scmp.eq.s32.totalorder %s32, 1
      %p375 = por %p373, %p374
      %p377 = scmp.ne.s32.totalorder %s362, %s376
      %p378 = scmp.eq.s32.totalorder %s32, 0
      %p379 = por %p377, %p378
      %s381 = sadd.s32 %s380, 1
      %p384 = scmp.eq.s32.totalorder %s26, 1
      %p385 = scmp.ne.s32.totalorder %s380, %s382
      %p386 = scmp.eq.s32.totalorder %s26, 0
      %p387 = por %p385, %p386
      %p388 = scmp.ne.s32.totalorder %s380, %s382
      %p389 = scmp.eq.s32.totalorder %s31, 1
      %p390 = por %p388, %p389
      %p391 = scmp.ne.s32.totalorder %s382, %s383
      %p392 = scmp.eq.s32.totalorder %s31, 0
      %p393 = por %p391, %p392
      %p394 = scmp.ne.s32.totalorder %s382, %s383
      %p395 = scmp.eq.s32.totalorder %s32, 1
      %p396 = por %p394, %p395
      %p398 = scmp.ne.s32.totalorder %s383, %s397
      %p399 = scmp.eq.s32.totalorder %s32, 0
      %p400 = por %p398, %p399
      %s401 = ssub.s32 %s26, %s33
      %p402 = scmp.eq.s32.totalorder %s401, 0
      %s404 = sadd.s32 %s403, 1
      %s405 = scalar_select %p402, %s403, %s404
      %p408 = pneg %p402
      %p409 = scmp.eq.s32.totalorder %s26, 1
      %p410 = por %p408, %p409
      %p411 = scmp.ne.s32.totalorder %s403, %s406
      %p412 = scmp.eq.s32.totalorder %s26, 0
      %p413 = por %p411, %p412
      %p414 = scmp.ne.s32.totalorder %s403, %s406
      %p415 = scmp.eq.s32.totalorder %s31, 1
      %p416 = por %p414, %p415
      %p417 = scmp.ne.s32.totalorder %s406, %s407
      %p418 = scmp.eq.s32.totalorder %s31, 0
      %p419 = por %p417, %p418
      %p420 = scmp.ne.s32.totalorder %s406, %s407
      %p421 = scmp.eq.s32.totalorder %s32, 1
      %p422 = por %p420, %p421
      %p424 = scmp.ne.s32.totalorder %s407, %s423
      %p425 = scmp.eq.s32.totalorder %s32, 0
      %p426 = por %p424, %p425
      %p427 = scmp.le.s32.totalorder 1, %s26
      %p428 = scmp.lt.s32.totalorder %s26, 3
      %p429 = pnand %p427, %p428
      %p430 = pneg %p429
      // Predicated region
      $region9: #{tpu_custom_call.1} parent=5 // pred_check
        _
      $region10: #{tpu_custom_call.1} parent=5 // pred_check_branch
        %432 = sbr.rel (%p429) target = $region12
      $region11: #{tpu_custom_call.1} parent=5 // pred_region
        %s433 = ssub.s32 %s26, 1
        // Predicated region
        $region13: #{tpu_custom_call.1} parent=11 // pred_check
          %p434 = pneg %p99
        $region14: #{tpu_custom_call.1} parent=11 // pred_check_branch
          %436 = sbr.rel (%p434) target = $region16
        $region15: #{tpu_custom_call.1} parent=11 // pred_region
          _
        $region16: #{tpu_custom_call.1} parent=11 // pred_fallthru
          _
        // Predicated region
        $region17: #{tpu_custom_call.1} parent=11 // pred_check
          %p437 = pneg %p120
        $region18: #{tpu_custom_call.1} parent=11 // pred_check_branch
          %439 = sbr.rel (%p437) target = $region20
        $region19: #{tpu_custom_call.1} parent=11 // pred_region
          _
        $region20: #{tpu_custom_call.1} parent=11 // pred_fallthru
          _
        // Predicated region
        $region21: #{tpu_custom_call.1} parent=11 // pred_check
          %p440 = pneg %p141
        $region22: #{tpu_custom_call.1} parent=11 // pred_check_branch
          %442 = sbr.rel (%p440) target = $region24
        $region23: #{tpu_custom_call.1} parent=11 // pred_region
          _
        $region24: #{tpu_custom_call.1} parent=11 // pred_fallthru
          _
        // Predicated region
        $region25: #{tpu_custom_call.1} parent=11 // pred_check
          %p443 = pneg %p162
        $region26: #{tpu_custom_call.1} parent=11 // pred_check_branch
          %445 = sbr.rel (%p443) target = $region28
        $region27: #{tpu_custom_call.1} parent=11 // pred_region
          _
        $region28: #{tpu_custom_call.1} parent=11 // pred_fallthru
          _
        // Predicated region
        $region29: #{tpu_custom_call.1} parent=11 // pred_check
          %p446 = pneg %p183
        $region30: #{tpu_custom_call.1} parent=11 // pred_check_branch
          %448 = sbr.rel (%p446) target = $region32
        $region31: #{tpu_custom_call.1} parent=11 // pred_region
          _
        $region32: #{tpu_custom_call.1} parent=11 // pred_fallthru
          _
        // Predicated region
        $region33: #{tpu_custom_call.1} parent=11 // pred_check
          %p449 = pneg %p204
        $region34: #{tpu_custom_call.1} parent=11 // pred_check_branch
          %451 = sbr.rel (%p449) target = $region36
        $region35: #{tpu_custom_call.1} parent=11 // pred_region
          _
        $region36: #{tpu_custom_call.1} parent=11 // pred_fallthru
          _
        // Predicated region
        $region37: #{tpu_custom_call.1} parent=11 // pred_check
          %p452 = pneg %p225
        $region38: #{tpu_custom_call.1} parent=11 // pred_check_branch
          %454 = sbr.rel (%p452) target = $region40
        $region39: #{tpu_custom_call.1} parent=11 // pred_region
          _
        $region40: #{tpu_custom_call.1} parent=11 // pred_fallthru
          _
        // Predicated region
        $region41: #{tpu_custom_call.1} parent=11 // pred_check
          %p455 = pneg %p246
        $region42: #{tpu_custom_call.1} parent=11 // pred_check_branch
          %457 = sbr.rel (%p455) target = $region44
        $region43: #{tpu_custom_call.1} parent=11 // pred_region
          _
        $region44: #{tpu_custom_call.1} parent=11 // pred_fallthru
          _
        // Predicated region
        $region45: #{tpu_custom_call.1} parent=11 // pred_check
          %p458 = pneg %p267
        $region46: #{tpu_custom_call.1} parent=11 // pred_check_branch
          %460 = sbr.rel (%p458) target = $region48
        $region47: #{tpu_custom_call.1} parent=11 // pred_region
          _
        $region48: #{tpu_custom_call.1} parent=11 // pred_fallthru
          _
        // Predicated region
        $region49: #{tpu_custom_call.1} parent=11 // pred_check
          %p461 = pneg %p288
        $region50: #{tpu_custom_call.1} parent=11 // pred_check_branch
          %463 = sbr.rel (%p461) target = $region52
        $region51: #{tpu_custom_call.1} parent=11 // pred_region
          _
        $region52: #{tpu_custom_call.1} parent=11 // pred_fallthru
          _
        // Predicated region
        $region53: #{tpu_custom_call.1} parent=11 // pred_check
          %p464 = pneg %p309
        $region54: #{tpu_custom_call.1} parent=11 // pred_check_branch
          %466 = sbr.rel (%p464) target = $region56
        $region55: #{tpu_custom_call.1} parent=11 // pred_region
          _
        $region56: #{tpu_custom_call.1} parent=11 // pred_fallthru
          _
        // Predicated region
        $region57: #{tpu_custom_call.1} parent=11 // pred_check
          %p467 = pneg %p330
        $region58: #{tpu_custom_call.1} parent=11 // pred_check_branch
          %469 = sbr.rel (%p467) target = $region60
        $region59: #{tpu_custom_call.1} parent=11 // pred_region
          _
        $region60: #{tpu_custom_call.1} parent=11 // pred_fallthru
          _
        // Predicated region
        $region61: #{tpu_custom_call.1} parent=11 // pred_check
          %p470 = pneg %p351
        $region62: #{tpu_custom_call.1} parent=11 // pred_check_branch
          %472 = sbr.rel (%p470) target = $region64
        $region63: #{tpu_custom_call.1} parent=11 // pred_region
          _
        $region64: #{tpu_custom_call.1} parent=11 // pred_fallthru
          _
        // Predicated region
        $region65: #{tpu_custom_call.1} parent=11 // pred_check
          %p473 = pneg %p372
        $region66: #{tpu_custom_call.1} parent=11 // pred_check_branch
          %475 = sbr.rel (%p473) target = $region68
        $region67: #{tpu_custom_call.1} parent=11 // pred_region
          _
        $region68: #{tpu_custom_call.1} parent=11 // pred_fallthru
          _
        // Predicated region
        $region69: #{tpu_custom_call.1} parent=11 // pred_check
          %p476 = pneg %p393
        $region70: #{tpu_custom_call.1} parent=11 // pred_check_branch
          %478 = sbr.rel (%p476) target = $region72
        $region71: #{tpu_custom_call.1} parent=11 // pred_region
          _
        $region72: #{tpu_custom_call.1} parent=11 // pred_fallthru
          _
      $region12: #{tpu_custom_call.1} parent=5 // pred_fallthru
        _
      %p479 = scmp.lt.s32.totalorder %s26, 2
      // Predicated region
      $region73: #{tpu_custom_call.1} parent=5 // pred_check
        %p480 = pneg %p479
      $region74: #{tpu_custom_call.1} parent=5 // pred_check_branch
        %482 = sbr.rel (%p480) target = $region76
      $region75: #{tpu_custom_call.1} parent=5 // pred_region
        // Predicated region
        $region77: #{tpu_custom_call.1} parent=75 // pred_check
          %p483 = pneg %p46
        $region78: #{tpu_custom_call.1} parent=75 // pred_check_branch
          %485 = sbr.rel (%p483) target = $region80
        $region79: #{tpu_custom_call.1} parent=75 // pred_region
          %p486 = scmp.lt.s32.totalorder %s26, 1
          %s487 = scalar_select %p486, %s26, 1
          %s488 = smul.addr %s487, 8
          %s489 = scalar_lea.vmem %s0, %s488
        $region80: #{tpu_custom_call.1} parent=75 // pred_fallthru
          _
        // Predicated region
        $region81: #{tpu_custom_call.1} parent=75 // pred_check
          %p490 = pneg %p72
        $region82: #{tpu_custom_call.1} parent=75 // pred_check_branch
          %492 = sbr.rel (%p490) target = $region84
        $region83: #{tpu_custom_call.1} parent=75 // pred_region
          %p493 = scmp.lt.s32.totalorder %s26, 1
          %s494 = scalar_select %p493, %s26, 1
          %s495 = scalar_lea.vmem %s1, %s494
        $region84: #{tpu_custom_call.1} parent=75 // pred_fallthru
          _
      $region76: #{tpu_custom_call.1} parent=5 // pred_fallthru
        _
      %p496 = scmp.le.s32.totalorder 1, %s26
      %p497 = scmp.lt.s32.totalorder %s26, 3
      %p498 = pnand %p496, %p497
      %p499 = pneg %p498
      // Predicated region
      $region85: #{tpu_custom_call.1} parent=5 // pred_check
        _
      $region86: #{tpu_custom_call.1} parent=5 // pred_check_branch
        %501 = sbr.rel (%p498) target = $region88
      $region87: #{tpu_custom_call.1} parent=5 // pred_region
        %s502 = ssub.s32 %s26, 1
        %p503 = scmp.lt.s32.totalorder %s31, 1
        %s504 = scalar_select %p503, %s31, 1
        %s505 = smul.addr %s504, 8
        %s506 = scalar_lea.vmem %s0, %s505
        %p507 = pneg %p52
        %p508 = pneg %p49
        %p509 = scmp.lt.s32.totalorder %s31, 1
        %s510 = scalar_select %p509, %s31, 1
        %s511 = scalar_lea.vmem %s1, %s510
        %p512 = pneg %p78
        %p513 = pneg %p75
        %p514 = pneg %p99
        %p515 = pneg %p96
        %p516 = pneg %p120
        %p517 = pneg %p117
        %p518 = pneg %p141
        %p519 = pneg %p138
        %p520 = pneg %p162
        %p521 = pneg %p159
        %p522 = pneg %p183
        %p523 = pneg %p180
        %p524 = pneg %p204
        %p525 = pneg %p201
        %p526 = pneg %p225
        %p527 = pneg %p222
        %p528 = pneg %p246
        %p529 = pneg %p243
        %p530 = pneg %p267
        %p531 = pneg %p264
        %p532 = pneg %p288
        %p533 = pneg %p285
        %p534 = pneg %p309
        %p535 = pneg %p306
        %p536 = pneg %p330
        %p537 = pneg %p327
        %p538 = pneg %p351
        %p539 = pneg %p348
        %p540 = pneg %p372
        %p541 = pneg %p369
        %p542 = pneg %p393
        %p543 = pneg %p390
        %p544 = pneg %p419
        %p545 = pneg %p416
        %s546 = sand.u32 %s406, 1
        %s547 = scalar_lea.sflag [#allocation3], %s546
        %s548 = sand.u32 %s406, 1
        %s549 = smul.addr %s548, 128
        %s550 = scalar_lea.vmem [#allocation2], %s549
        %p551 = scmp.lt.s32.totalorder %s31, 1
        %s552 = scalar_select %p551, %s31, 1
        %s553 = smul.addr %s552, 8
        %s554 = scalar_lea.vmem %s0, %s553
        %p555 = scmp.lt.s32.totalorder %s31, 1
        %s556 = scalar_select %p555, %s31, 1
        %s557 = scalar_lea.vmem %s1, %s556
        %v559 = vld [vmem:[%s554] sm:$0xff]
        %v560 = vlaneseq
        %v561 = vand.u32 %v560, 127
        %v562 = vadd.s32 %v561, 128
        %563 = vset.pattern.permute.xlu0 0
        %564 = vperm.xlu0 %563, %v559
        %v565 = vpop.permute.xlu0 %564
        %vm566 = vcmp.eq.s32.totalorder %v565, %v561
        %vm567 = vcmp.eq.s32.totalorder %v565, %v562
        %v568 = vsel %vm566, 1, 0
        %v569 = vsel %vm567, 1, 0
        %v570 = vcvt.s32.f32 %v568
        %v571 = vcvt.s32.f32 %v569
        %v572 = vpack.c.bf16 %v570, %v570
        %v573 = vpack.c.bf16 %v571, %v571
        %v574 = vld [vmem:[%s2] sm:$0xf]
        %v575 = vld [vmem:[%s2 + $0x4] sm:$0xf]
        %v576 = vld [vmem:[%s2 + $0x8] sm:$0xf]
        %v577 = vld [vmem:[%s2 + $0xc] sm:$0xf]
        %v578 = vld [vmem:[%s2 + $0x10] sm:$0xf]
        %v579 = vld [vmem:[%s2 + $0x14] sm:$0xf]
        %v580 = vld [vmem:[%s2 + $0x18] sm:$0xf]
        %v581 = vld [vmem:[%s2 + $0x1c] sm:$0xf]
        %v582 = vld [vmem:[%s2 + $0x20] sm:$0xf]
        %v583 = vld [vmem:[%s2 + $0x24] sm:$0xf]
        %v584 = vld [vmem:[%s2 + $0x28] sm:$0xf]
        %v585 = vld [vmem:[%s2 + $0x2c] sm:$0xf]
        %v586 = vld [vmem:[%s2 + $0x30] sm:$0xf]
        %v587 = vld [vmem:[%s2 + $0x34] sm:$0xf]
        %v588 = vld [vmem:[%s2 + $0x38] sm:$0xf]
        %v589 = vld [vmem:[%s2 + $0x3c] sm:$0xf]
        %v590 = vld [vmem:[%s2 + $0x40] sm:$0xf]
        %v591 = vld [vmem:[%s2 + $0x44] sm:$0xf]
        %v592 = vld [vmem:[%s2 + $0x48] sm:$0xf]
        %v593 = vld [vmem:[%s2 + $0x4c] sm:$0xf]
        %v594 = vld [vmem:[%s2 + $0x50] sm:$0xf]
        %v595 = vld [vmem:[%s2 + $0x54] sm:$0xf]
        %v596 = vld [vmem:[%s2 + $0x58] sm:$0xf]
        %v597 = vld [vmem:[%s2 + $0x5c] sm:$0xf]
        %v598 = vld [vmem:[%s2 + $0x60] sm:$0xf]
        %v599 = vld [vmem:[%s2 + $0x64] sm:$0xf]
        %v600 = vld [vmem:[%s2 + $0x68] sm:$0xf]
        %v601 = vld [vmem:[%s2 + $0x6c] sm:$0xf]
        %v602 = vld [vmem:[%s2 + $0x70] sm:$0xf]
        %v603 = vld [vmem:[%s2 + $0x74] sm:$0xf]
        %v604 = vld [vmem:[%s2 + $0x78] sm:$0xf]
        %v605 = vld [vmem:[%s2 + $0x7c] sm:$0xf]
        %v638 = vunpack.c.l.b16 %v574
        %v639 = vunpack.c.l.b16 %v575
        %v640 = vunpack.c.l.b16 %v576
        %v641 = vunpack.c.l.b16 %v577
        %v642 = vunpack.c.l.b16 %v578
        %v643 = vunpack.c.l.b16 %v579
        %v644 = vunpack.c.l.b16 %v580
        %v645 = vunpack.c.l.b16 %v581
        %v646 = vunpack.c.l.b16 %v582
        %v647 = vunpack.c.l.b16 %v583
        %v648 = vunpack.c.l.b16 %v584
        %v649 = vunpack.c.l.b16 %v585
        %v650 = vunpack.c.l.b16 %v586
        %v651 = vunpack.c.l.b16 %v587
        %v652 = vunpack.c.l.b16 %v588
        %v653 = vunpack.c.l.b16 %v589
        %v654 = vunpack.c.l.b16 %v590
        %v655 = vunpack.c.l.b16 %v591
        %v656 = vunpack.c.l.b16 %v592
        %v657 = vunpack.c.l.b16 %v593
        %v658 = vunpack.c.l.b16 %v594
        %v659 = vunpack.c.l.b16 %v595
        %v660 = vunpack.c.l.b16 %v596
        %v661 = vunpack.c.l.b16 %v597
        %v662 = vunpack.c.l.b16 %v598
        %v663 = vunpack.c.l.b16 %v599
        %v664 = vunpack.c.l.b16 %v600
        %v665 = vunpack.c.l.b16 %v601
        %v666 = vunpack.c.l.b16 %v602
        %v667 = vunpack.c.l.b16 %v603
        %v668 = vunpack.c.l.b16 %v604
        %v669 = vunpack.c.l.b16 %v605
        %v670 = vpack.c.b16 %v639, %v638
        %v671 = vpack.c.b16 %v641, %v640
        %v672 = vpack.c.b16 %v643, %v642
        %v673 = vpack.c.b16 %v645, %v644
        %v674 = vpack.c.b16 %v647, %v646
        %v675 = vpack.c.b16 %v649, %v648
        %v676 = vpack.c.b16 %v651, %v650
        %v677 = vpack.c.b16 %v653, %v652
        %v678 = vpack.c.b16 %v655, %v654
        %v679 = vpack.c.b16 %v657, %v656
        %v680 = vpack.c.b16 %v659, %v658
        %v681 = vpack.c.b16 %v661, %v660
        %v682 = vpack.c.b16 %v663, %v662
        %v683 = vpack.c.b16 %v665, %v664
        %v684 = vpack.c.b16 %v667, %v666
        %v685 = vpack.c.b16 %v669, %v668
        %702 = vmatprep.subr.bf16.mxu0 0
        %703 = vmatpush1.bf16.msra.mxu0 %v670
        %704 = vmatprep.subr.bf16.mxu0 0
        %705 = vmatpush1.bf16.msra.mxu0 %v671
        %706 = vmatprep.subr.bf16.mxu0 0
        %707 = vmatpush1.bf16.msra.mxu0 %v672
        %708 = vmatprep.subr.bf16.mxu0 0
        %709 = vmatpush1.bf16.msra.mxu0 %v673
        %710 = vmatprep.subr.bf16.mxu0 0
        %711 = vmatpush1.bf16.msra.mxu0 %v674
        %712 = vmatprep.subr.bf16.mxu0 0
        %713 = vmatpush1.bf16.msra.mxu0 %v675
        %714 = vmatprep.subr.bf16.mxu0 0
        %715 = vmatpush1.bf16.msra.mxu0 %v676
        %716 = vmatprep.subr.bf16.mxu0 0
        %717 = vmatpush1.bf16.msra.mxu0 %v677
        %718 = vmatprep.subr.bf16.mxu0 0
        %719 = vmatpush1.bf16.msra.mxu0 %v678
        %720 = vmatprep.subr.bf16.mxu0 0
        %721 = vmatpush1.bf16.msra.mxu0 %v679
        %722 = vmatprep.subr.bf16.mxu0 0
        %723 = vmatpush1.bf16.msra.mxu0 %v680
        %724 = vmatprep.subr.bf16.mxu0 0
        %725 = vmatpush1.bf16.msra.mxu0 %v681
        %726 = vmatprep.subr.bf16.mxu0 0
        %727 = vmatpush1.bf16.msra.mxu0 %v682
        %728 = vmatprep.subr.bf16.mxu0 0
        %729 = vmatpush1.bf16.msra.mxu0 %v683
        %730 = vmatprep.subr.bf16.mxu0 0
        %731 = vmatpush1.bf16.msra.mxu0 %v684
        %732 = vmatprep.subr.bf16.mxu0 0
        %733 = vmatpush1.bf16.msra.mxu0 %v685
        %734 = vmatprep.mubr.bf16.mxu0 %v573
        %735 = vmatmul.mubr.bf16.gmra.mrb[0].mxu0 %v572
        %v736 = vpop.f32.mrb[0].mxu0
        %v737 = vadd.f32 0.0, %v736
        %v738 = vpop.f32.mrb[0].mxu0
        %v739 = vpop.f32.mrb[0].mxu0
        %v740 = vpop.f32.mrb[0].mxu0
        %741 = vdwg.mxu0
        %v742 = vld [vmem:[%s3] sm:$0x1]
        %v743 = vld [vmem:[%s4] sm:$0x1]
        %vm744 = vcmask 261120
        %v745 = vsel %vm744, %v737, 0.0
        %746 = vadd.xlane.f32.xlu0 %v745
        %v747 = vpop.xlane.xlu0 %746
        %v748 = vrcp.pop 32.0
        %v749 = vmul.f32 %v747, %v748
        %v750 = vsub.f32 %v737, %v749
        %v751 = vmul.f32 %v750, %v750
        %v752 = vsel %vm744, %v751, 0.0
        %753 = vadd.xlane.f32.xlu0 %v752
        %v754 = vpop.xlane.xlu0 %753
        %v755 = vmul.f32 %v754, %v748
        %v756 = vadd.f32 %v755, 1e-05
        %v757 = vrsqrt.pop %v756
        %v758 = vmul.f32 %v750, %v757
        %v760 = vlaneseq
        %v761 = vshrl.u32 %v760, 7
        %v762 = vsub.s32 0, %v761
        %v763 = vrot.slane %v742, %v762
        %v765 = vmul.f32 %v758, %v763
        %v767 = vlaneseq
        %v768 = vshrl.u32 %v767, 7
        %v769 = vsub.s32 0, %v768
        %v770 = vrot.slane %v743, %v769
        %v772 = vadd.f32 %v765, %v770
        %v773 = vadd.f32 %v772, 0.0
        %774 = vset.pattern.permute.xlu0 1
        %775 = vperm.xlu0 %774, %v559
        %v776 = vpop.permute.xlu0 %775
        %vm777 = vcmp.eq.s32.totalorder %v776, %v561
        %vm778 = vcmp.eq.s32.totalorder %v776, %v562
        %v779 = vsel %vm777, 1, 0
        %v780 = vsel %vm778, 1, 0
        %v781 = vcvt.s32.f32 %v779
        %v782 = vcvt.s32.f32 %v780
        %v783 = vpack.c.bf16 %v781, %v781
        %v784 = vpack.c.bf16 %v782, %v782
        %s785 = scalar_lea.vmem %s2, 128
        %v786 = vld [vmem:[%s785] sm:$0xf]
        %v787 = vld [vmem:[%s785 + $0x4] sm:$0xf]
        %v788 = vld [vmem:[%s785 + $0x8] sm:$0xf]
        %v789 = vld [vmem:[%s785 + $0xc] sm:$0xf]
        %v790 = vld [vmem:[%s785 + $0x10] sm:$0xf]
        %v791 = vld [vmem:[%s785 + $0x14] sm:$0xf]
        %v792 = vld [vmem:[%s785 + $0x18] sm:$0xf]
        %v793 = vld [vmem:[%s785 + $0x1c] sm:$0xf]
        %v794 = vld [vmem:[%s785 + $0x20] sm:$0xf]
        %v795 = vld [vmem:[%s785 + $0x24] sm:$0xf]
        %v796 = vld [vmem:[%s785 + $0x28] sm:$0xf]
        %v797 = vld [vmem:[%s785 + $0x2c] sm:$0xf]
        %v798 = vld [vmem:[%s785 + $0x30] sm:$0xf]
        %v799 = vld [vmem:[%s785 + $0x34] sm:$0xf]
        %v800 = vld [vmem:[%s785 + $0x38] sm:$0xf]
        %v801 = vld [vmem:[%s785 + $0x3c] sm:$0xf]
        %v802 = vld [vmem:[%s785 + $0x40] sm:$0xf]
        %v803 = vld [vmem:[%s785 + $0x44] sm:$0xf]
        %v804 = vld [vmem:[%s785 + $0x48] sm:$0xf]
        %v805 = vld [vmem:[%s785 + $0x4c] sm:$0xf]
        %v806 = vld [vmem:[%s785 + $0x50] sm:$0xf]
        %v807 = vld [vmem:[%s785 + $0x54] sm:$0xf]
        %v808 = vld [vmem:[%s785 + $0x58] sm:$0xf]
        %v809 = vld [vmem:[%s785 + $0x5c] sm:$0xf]
        %v810 = vld [vmem:[%s785 + $0x60] sm:$0xf]
        %v811 = vld [vmem:[%s785 + $0x64] sm:$0xf]
        %v812 = vld [vmem:[%s785 + $0x68] sm:$0xf]
        %v813 = vld [vmem:[%s785 + $0x6c] sm:$0xf]
        %v814 = vld [vmem:[%s785 + $0x70] sm:$0xf]
        %v815 = vld [vmem:[%s785 + $0x74] sm:$0xf]
        %v816 = vld [vmem:[%s785 + $0x78] sm:$0xf]
        %v817 = vld [vmem:[%s785 + $0x7c] sm:$0xf]
        %v850 = vunpack.c.l.b16 %v786
        %v851 = vunpack.c.l.b16 %v787
        %v852 = vunpack.c.l.b16 %v788
        %v853 = vunpack.c.l.b16 %v789
        %v854 = vunpack.c.l.b16 %v790
        %v855 = vunpack.c.l.b16 %v791
        %v856 = vunpack.c.l.b16 %v792
        %v857 = vunpack.c.l.b16 %v793
        %v858 = vunpack.c.l.b16 %v794
        %v859 = vunpack.c.l.b16 %v795
        %v860 = vunpack.c.l.b16 %v796
        %v861 = vunpack.c.l.b16 %v797
        %v862 = vunpack.c.l.b16 %v798
        %v863 = vunpack.c.l.b16 %v799
        %v864 = vunpack.c.l.b16 %v800
        %v865 = vunpack.c.l.b16 %v801
        %v866 = vunpack.c.l.b16 %v802
        %v867 = vunpack.c.l.b16 %v803
        %v868 = vunpack.c.l.b16 %v804
        %v869 = vunpack.c.l.b16 %v805
        %v870 = vunpack.c.l.b16 %v806
        %v871 = vunpack.c.l.b16 %v807
        %v872 = vunpack.c.l.b16 %v808
        %v873 = vunpack.c.l.b16 %v809
        %v874 = vunpack.c.l.b16 %v810
        %v875 = vunpack.c.l.b16 %v811
        %v876 = vunpack.c.l.b16 %v812
        %v877 = vunpack.c.l.b16 %v813
        %v878 = vunpack.c.l.b16 %v814
        %v879 = vunpack.c.l.b16 %v815
        %v880 = vunpack.c.l.b16 %v816
        %v881 = vunpack.c.l.b16 %v817
        %v882 = vpack.c.b16 %v851, %v850
        %v883 = vpack.c.b16 %v853, %v852
        %v884 = vpack.c.b16 %v855, %v854
        %v885 = vpack.c.b16 %v857, %v856
        %v886 = vpack.c.b16 %v859, %v858
        %v887 = vpack.c.b16 %v861, %v860
        %v888 = vpack.c.b16 %v863, %v862
        %v889 = vpack.c.b16 %v865, %v864
        %v890 = vpack.c.b16 %v867, %v866
        %v891 = vpack.c.b16 %v869, %v868
        %v892 = vpack.c.b16 %v871, %v870
        %v893 = vpack.c.b16 %v873, %v872
        %v894 = vpack.c.b16 %v875, %v874
        %v895 = vpack.c.b16 %v877, %v876
        %v896 = vpack.c.b16 %v879, %v878
        %v897 = vpack.c.b16 %v881, %v880
        %914 = vmatprep.subr.bf16.mxu0 0
        %915 = vmatpush1.bf16.msra.mxu0 %v882
        %916 = vmatprep.subr.bf16.mxu0 0
        %917 = vmatpush1.bf16.msra.mxu0 %v883
        %918 = vmatprep.subr.bf16.mxu0 0
        %919 = vmatpush1.bf16.msra.mxu0 %v884
        %920 = vmatprep.subr.bf16.mxu0 0
        %921 = vmatpush1.bf16.msra.mxu0 %v885
        %922 = vmatprep.subr.bf16.mxu0 0
        %923 = vmatpush1.bf16.msra.mxu0 %v886
        %924 = vmatprep.subr.bf16.mxu0 0
        %925 = vmatpush1.bf16.msra.mxu0 %v887
        %926 = vmatprep.subr.bf16.mxu0 0
        %927 = vmatpush1.bf16.msra.mxu0 %v888
        %928 = vmatprep.subr.bf16.mxu0 0
        %929 = vmatpush1.bf16.msra.mxu0 %v889
        %930 = vmatprep.subr.bf16.mxu0 0
        %931 = vmatpush1.bf16.msra.mxu0 %v890
        %932 = vmatprep.subr.bf16.mxu0 0
        %933 = vmatpush1.bf16.msra.mxu0 %v891
        %934 = vmatprep.subr.bf16.mxu0 0
        %935 = vmatpush1.bf16.msra.mxu0 %v892
        %936 = vmatprep.subr.bf16.mxu0 0
        %937 = vmatpush1.bf16.msra.mxu0 %v893
        %938 = vmatprep.subr.bf16.mxu0 0
        %939 = vmatpush1.bf16.msra.mxu0 %v894
        %940 = vmatprep.subr.bf16.mxu0 0
        %941 = vmatpush1.bf16.msra.mxu0 %v895
        %942 = vmatprep.subr.bf16.mxu0 0
        %943 = vmatpush1.bf16.msra.mxu0 %v896
        %944 = vmatprep.subr.bf16.mxu0 0
        %945 = vmatpush1.bf16.msra.mxu0 %v897
        %946 = vmatprep.mubr.bf16.mxu0 %v784
        %947 = vmatmul.mubr.bf16.gmra.mrb[0].mxu0 %v783
        %v948 = vpop.f32.mrb[0].mxu0
        %v949 = vadd.f32 0.0, %v948
        %v950 = vpop.f32.mrb[0].mxu0
        %v951 = vpop.f32.mrb[0].mxu0
        %v952 = vpop.f32.mrb[0].mxu0
        %953 = vdwg.mxu0
        %s954 = scalar_lea.vmem %s3, 1
        %v955 = vld [vmem:[%s954] sm:$0x1]
        %s956 = scalar_lea.vmem %s4, 1
        %v957 = vld [vmem:[%s956] sm:$0x1]
        %v958 = vsel %vm744, %v949, 0.0
        %959 = vadd.xlane.f32.xlu0 %v958
        %v960 = vpop.xlane.xlu0 %959
        %v961 = vmul.f32 %v960, %v748
        %v962 = vsub.f32 %v949, %v961
        %v963 = vmul.f32 %v962, %v962
        %v964 = vsel %vm744, %v963, 0.0
        %965 = vadd.xlane.f32.xlu0 %v964
        %v966 = vpop.xlane.xlu0 %965
        %v967 = vmul.f32 %v966, %v748
        %v968 = vadd.f32 %v967, 1e-05
        %v969 = vrsqrt.pop %v968
        %v970 = vmul.f32 %v962, %v969
        %v972 = vlaneseq
        %v973 = vshrl.u32 %v972, 7
        %v974 = vsub.s32 0, %v973
        %v975 = vrot.slane %v955, %v974
        %v977 = vmul.f32 %v970, %v975
        %v979 = vlaneseq
        %v980 = vshrl.u32 %v979, 7
        %v981 = vsub.s32 0, %v980
        %v982 = vrot.slane %v957, %v981
        %v984 = vadd.f32 %v977, %v982
        %v985 = vadd.f32 %v773, %v984
        %986 = vset.pattern.permute.xlu0 2
        %987 = vperm.xlu0 %986, %v559
        %v988 = vpop.permute.xlu0 %987
        %vm989 = vcmp.eq.s32.totalorder %v988, %v561
        %vm990 = vcmp.eq.s32.totalorder %v988, %v562
        %v991 = vsel %vm989, 1, 0
        %v992 = vsel %vm990, 1, 0
        %v993 = vcvt.s32.f32 %v991
        %v994 = vcvt.s32.f32 %v992
        %v995 = vpack.c.bf16 %v993, %v993
        %v996 = vpack.c.bf16 %v994, %v994
        %s997 = scalar_lea.vmem %s2, 256
        %v998 = vld [vmem:[%s997] sm:$0xf]
        %v999 = vld [vmem:[%s997 + $0x4] sm:$0xf]
        %v1000 = vld [vmem:[%s997 + $0x8] sm:$0xf]
        %v1001 = vld [vmem:[%s997 + $0xc] sm:$0xf]
        %v1002 = vld [vmem:[%s997 + $0x10] sm:$0xf]
        %v1003 = vld [vmem:[%s997 + $0x14] sm:$0xf]
        %v1004 = vld [vmem:[%s997 + $0x18] sm:$0xf]
        %v1005 = vld [vmem:[%s997 + $0x1c] sm:$0xf]
        %v1006 = vld [vmem:[%s997 + $0x20] sm:$0xf]
        %v1007 = vld [vmem:[%s997 + $0x24] sm:$0xf]
        %v1008 = vld [vmem:[%s997 + $0x28] sm:$0xf]
        %v1009 = vld [vmem:[%s997 + $0x2c] sm:$0xf]
        %v1010 = vld [vmem:[%s997 + $0x30] sm:$0xf]
        %v1011 = vld [vmem:[%s997 + $0x34] sm:$0xf]
        %v1012 = vld [vmem:[%s997 + $0x38] sm:$0xf]
        %v1013 = vld [vmem:[%s997 + $0x3c] sm:$0xf]
        %v1014 = vld [vmem:[%s997 + $0x40] sm:$0xf]
        %v1015 = vld [vmem:[%s997 + $0x44] sm:$0xf]
        %v1016 = vld [vmem:[%s997 + $0x48] sm:$0xf]
        %v1017 = vld [vmem:[%s997 + $0x4c] sm:$0xf]
        %v1018 = vld [vmem:[%s997 + $0x50] sm:$0xf]
        %v1019 = vld [vmem:[%s997 + $0x54] sm:$0xf]
        %v1020 = vld [vmem:[%s997 + $0x58] sm:$0xf]
        %v1021 = vld [vmem:[%s997 + $0x5c] sm:$0xf]
        %v1022 = vld [vmem:[%s997 + $0x60] sm:$0xf]
        %v1023 = vld [vmem:[%s997 + $0x64] sm:$0xf]
        %v1024 = vld [vmem:[%s997 + $0x68] sm:$0xf]
        %v1025 = vld [vmem:[%s997 + $0x6c] sm:$0xf]
        %v1026 = vld [vmem:[%s997 + $0x70] sm:$0xf]
        %v1027 = vld [vmem:[%s997 + $0x74] sm:$0xf]
        %v1028 = vld [vmem:[%s997 + $0x78] sm:$0xf]
        %v1029 = vld [vmem:[%s997 + $0x7c] sm:$0xf]
        %v1062 = vunpack.c.l.b16 %v998
        %v1063 = vunpack.c.l.b16 %v999
        %v1064 = vunpack.c.l.b16 %v1000
        %v1065 = vunpack.c.l.b16 %v1001
        %v1066 = vunpack.c.l.b16 %v1002
        %v1067 = vunpack.c.l.b16 %v1003
        %v1068 = vunpack.c.l.b16 %v1004
        %v1069 = vunpack.c.l.b16 %v1005
        %v1070 = vunpack.c.l.b16 %v1006
        %v1071 = vunpack.c.l.b16 %v1007
        %v1072 = vunpack.c.l.b16 %v1008
        %v1073 = vunpack.c.l.b16 %v1009
        %v1074 = vunpack.c.l.b16 %v1010
        %v1075 = vunpack.c.l.b16 %v1011
        %v1076 = vunpack.c.l.b16 %v1012
        %v1077 = vunpack.c.l.b16 %v1013
        %v1078 = vunpack.c.l.b16 %v1014
        %v1079 = vunpack.c.l.b16 %v1015
        %v1080 = vunpack.c.l.b16 %v1016
        %v1081 = vunpack.c.l.b16 %v1017
        %v1082 = vunpack.c.l.b16 %v1018
        %v1083 = vunpack.c.l.b16 %v1019
        %v1084 = vunpack.c.l.b16 %v1020
        %v1085 = vunpack.c.l.b16 %v1021
        %v1086 = vunpack.c.l.b16 %v1022
        %v1087 = vunpack.c.l.b16 %v1023
        %v1088 = vunpack.c.l.b16 %v1024
        %v1089 = vunpack.c.l.b16 %v1025
        %v1090 = vunpack.c.l.b16 %v1026
        %v1091 = vunpack.c.l.b16 %v1027
        %v1092 = vunpack.c.l.b16 %v1028
        %v1093 = vunpack.c.l.b16 %v1029
        %v1094 = vpack.c.b16 %v1063, %v1062
        %v1095 = vpack.c.b16 %v1065, %v1064
        %v1096 = vpack.c.b16 %v1067, %v1066
        %v1097 = vpack.c.b16 %v1069, %v1068
        %v1098 = vpack.c.b16 %v1071, %v1070
        %v1099 = vpack.c.b16 %v1073, %v1072
        %v1100 = vpack.c.b16 %v1075, %v1074
        %v1101 = vpack.c.b16 %v1077, %v1076
        %v1102 = vpack.c.b16 %v1079, %v1078
        %v1103 = vpack.c.b16 %v1081, %v1080
        %v1104 = vpack.c.b16 %v1083, %v1082
        %v1105 = vpack.c.b16 %v1085, %v1084
        %v1106 = vpack.c.b16 %v1087, %v1086
        %v1107 = vpack.c.b16 %v1089, %v1088
        %v1108 = vpack.c.b16 %v1091, %v1090
        %v1109 = vpack.c.b16 %v1093, %v1092
        %1126 = vmatprep.subr.bf16.mxu0 0
        %1127 = vmatpush1.bf16.msra.mxu0 %v1094
        %1128 = vmatprep.subr.bf16.mxu0 0
        %1129 = vmatpush1.bf16.msra.mxu0 %v1095
        %1130 = vmatprep.subr.bf16.mxu0 0
        %1131 = vmatpush1.bf16.msra.mxu0 %v1096
        %1132 = vmatprep.subr.bf16.mxu0 0
        %1133 = vmatpush1.bf16.msra.mxu0 %v1097
        %1134 = vmatprep.subr.bf16.mxu0 0
        %1135 = vmatpush1.bf16.msra.mxu0 %v1098
        %1136 = vmatprep.subr.bf16.mxu0 0
        %1137 = vmatpush1.bf16.msra.mxu0 %v1099
        %1138 = vmatprep.subr.bf16.mxu0 0
        %1139 = vmatpush1.bf16.msra.mxu0 %v1100
        %1140 = vmatprep.subr.bf16.mxu0 0
        %1141 = vmatpush1.bf16.msra.mxu0 %v1101
        %1142 = vmatprep.subr.bf16.mxu0 0
        %1143 = vmatpush1.bf16.msra.mxu0 %v1102
        %1144 = vmatprep.subr.bf16.mxu0 0
        %1145 = vmatpush1.bf16.msra.mxu0 %v1103
        %1146 = vmatprep.subr.bf16.mxu0 0
        %1147 = vmatpush1.bf16.msra.mxu0 %v1104
        %1148 = vmatprep.subr.bf16.mxu0 0
        %1149 = vmatpush1.bf16.msra.mxu0 %v1105
        %1150 = vmatprep.subr.bf16.mxu0 0
        %1151 = vmatpush1.bf16.msra.mxu0 %v1106
        %1152 = vmatprep.subr.bf16.mxu0 0
        %1153 = vmatpush1.bf16.msra.mxu0 %v1107
        %1154 = vmatprep.subr.bf16.mxu0 0
        %1155 = vmatpush1.bf16.msra.mxu0 %v1108
        %1156 = vmatprep.subr.bf16.mxu0 0
        %1157 = vmatpush1.bf16.msra.mxu0 %v1109
        %1158 = vmatprep.mubr.bf16.mxu0 %v996
        %1159 = vmatmul.mubr.bf16.gmra.mrb[0].mxu0 %v995
        %v1160 = vpop.f32.mrb[0].mxu0
        %v1161 = vadd.f32 0.0, %v1160
        %v1162 = vpop.f32.mrb[0].mxu0
        %v1163 = vpop.f32.mrb[0].mxu0
        %v1164 = vpop.f32.mrb[0].mxu0
        %1165 = vdwg.mxu0
        %s1166 = scalar_lea.vmem %s3, 2
        %v1167 = vld [vmem:[%s1166] sm:$0x1]
        %s1168 = scalar_lea.vmem %s4, 2
        %v1169 = vld [vmem:[%s1168] sm:$0x1]
        %v1170 = vsel %vm744, %v1161, 0.0
        %1171 = vadd.xlane.f32.xlu0 %v1170
        %v1172 = vpop.xlane.xlu0 %1171
        %v1173 = vmul.f32 %v1172, %v748
        %v1174 = vsub.f32 %v1161, %v1173
        %v1175 = vmul.f32 %v1174, %v1174
        %v1176 = vsel %vm744, %v1175, 0.0
        %1177 = vadd.xlane.f32.xlu0 %v1176
        %v1178 = vpop.xlane.xlu0 %1177
        %v1179 = vmul.f32 %v1178, %v748
        %v1180 = vadd.f32 %v1179, 1e-05
        %v1181 = vrsqrt.pop %v1180
        %v1182 = vmul.f32 %v1174, %v1181
        %v1184 = vlaneseq
        %v1185 = vshrl.u32 %v1184, 7
        %v1186 = vsub.s32 0, %v1185
        %v1187 = vrot.slane %v1167, %v1186
        %v1189 = vmul.f32 %v1182, %v1187
        %v1191 = vlaneseq
        %v1192 = vshrl.u32 %v1191, 7
        %v1193 = vsub.s32 0, %v1192
        %v1194 = vrot.slane %v1169, %v1193
        %v1196 = vadd.f32 %v1189, %v1194
        %v1197 = vadd.f32 %v985, %v1196
        %1198 = vset.pattern.permute.xlu0 3
        %1199 = vperm.xlu0 %1198, %v559
        %v1200 = vpop.permute.xlu0 %1199
        %vm1201 = vcmp.eq.s32.totalorder %v1200, %v561
        %vm1202 = vcmp.eq.s32.totalorder %v1200, %v562
        %v1203 = vsel %vm1201, 1, 0
        %v1204 = vsel %vm1202, 1, 0
        %v1205 = vcvt.s32.f32 %v1203
        %v1206 = vcvt.s32.f32 %v1204
        %v1207 = vpack.c.bf16 %v1205, %v1205
        %v1208 = vpack.c.bf16 %v1206, %v1206
        %s1209 = scalar_lea.vmem %s2, 384
        %v1210 = vld [vmem:[%s1209] sm:$0xf]
        %v1211 = vld [vmem:[%s1209 + $0x4] sm:$0xf]
        %v1212 = vld [vmem:[%s1209 + $0x8] sm:$0xf]
        %v1213 = vld [vmem:[%s1209 + $0xc] sm:$0xf]
        %v1214 = vld [vmem:[%s1209 + $0x10] sm:$0xf]
        %v1215 = vld [vmem:[%s1209 + $0x14] sm:$0xf]
        %v1216 = vld [vmem:[%s1209 + $0x18] sm:$0xf]
        %v1217 = vld [vmem:[%s1209 + $0x1c] sm:$0xf]
        %v1218 = vld [vmem:[%s1209 + $0x20] sm:$0xf]
        %v1219 = vld [vmem:[%s1209 + $0x24] sm:$0xf]
        %v1220 = vld [vmem:[%s1209 + $0x28] sm:$0xf]
        %v1221 = vld [vmem:[%s1209 + $0x2c] sm:$0xf]
        %v1222 = vld [vmem:[%s1209 + $0x30] sm:$0xf]
        %v1223 = vld [vmem:[%s1209 + $0x34] sm:$0xf]
        %v1224 = vld [vmem:[%s1209 + $0x38] sm:$0xf]
        %v1225 = vld [vmem:[%s1209 + $0x3c] sm:$0xf]
        %v1226 = vld [vmem:[%s1209 + $0x40] sm:$0xf]
        %v1227 = vld [vmem:[%s1209 + $0x44] sm:$0xf]
        %v1228 = vld [vmem:[%s1209 + $0x48] sm:$0xf]
        %v1229 = vld [vmem:[%s1209 + $0x4c] sm:$0xf]
        %v1230 = vld [vmem:[%s1209 + $0x50] sm:$0xf]
        %v1231 = vld [vmem:[%s1209 + $0x54] sm:$0xf]
        %v1232 = vld [vmem:[%s1209 + $0x58] sm:$0xf]
        %v1233 = vld [vmem:[%s1209 + $0x5c] sm:$0xf]
        %v1234 = vld [vmem:[%s1209 + $0x60] sm:$0xf]
        %v1235 = vld [vmem:[%s1209 + $0x64] sm:$0xf]
        %v1236 = vld [vmem:[%s1209 + $0x68] sm:$0xf]
        %v1237 = vld [vmem:[%s1209 + $0x6c] sm:$0xf]
        %v1238 = vld [vmem:[%s1209 + $0x70] sm:$0xf]
        %v1239 = vld [vmem:[%s1209 + $0x74] sm:$0xf]
        %v1240 = vld [vmem:[%s1209 + $0x78] sm:$0xf]
        %v1241 = vld [vmem:[%s1209 + $0x7c] sm:$0xf]
        %v1274 = vunpack.c.l.b16 %v1210
        %v1275 = vunpack.c.l.b16 %v1211
        %v1276 = vunpack.c.l.b16 %v1212
        %v1277 = vunpack.c.l.b16 %v1213
        %v1278 = vunpack.c.l.b16 %v1214
        %v1279 = vunpack.c.l.b16 %v1215
        %v1280 = vunpack.c.l.b16 %v1216
        %v1281 = vunpack.c.l.b16 %v1217
        %v1282 = vunpack.c.l.b16 %v1218
        %v1283 = vunpack.c.l.b16 %v1219
        %v1284 = vunpack.c.l.b16 %v1220
        %v1285 = vunpack.c.l.b16 %v1221
        %v1286 = vunpack.c.l.b16 %v1222
        %v1287 = vunpack.c.l.b16 %v1223
        %v1288 = vunpack.c.l.b16 %v1224
        %v1289 = vunpack.c.l.b16 %v1225
        %v1290 = vunpack.c.l.b16 %v1226
        %v1291 = vunpack.c.l.b16 %v1227
        %v1292 = vunpack.c.l.b16 %v1228
        %v1293 = vunpack.c.l.b16 %v1229
        %v1294 = vunpack.c.l.b16 %v1230
        %v1295 = vunpack.c.l.b16 %v1231
        %v1296 = vunpack.c.l.b16 %v1232
        %v1297 = vunpack.c.l.b16 %v1233
        %v1298 = vunpack.c.l.b16 %v1234
        %v1299 = vunpack.c.l.b16 %v1235
        %v1300 = vunpack.c.l.b16 %v1236
        %v1301 = vunpack.c.l.b16 %v1237
        %v1302 = vunpack.c.l.b16 %v1238
        %v1303 = vunpack.c.l.b16 %v1239
        %v1304 = vunpack.c.l.b16 %v1240
        %v1305 = vunpack.c.l.b16 %v1241
        %v1306 = vpack.c.b16 %v1275, %v1274
        %v1307 = vpack.c.b16 %v1277, %v1276
        %v1308 = vpack.c.b16 %v1279, %v1278
        %v1309 = vpack.c.b16 %v1281, %v1280
        %v1310 = vpack.c.b16 %v1283, %v1282
        %v1311 = vpack.c.b16 %v1285, %v1284
        %v1312 = vpack.c.b16 %v1287, %v1286
        %v1313 = vpack.c.b16 %v1289, %v1288
        %v1314 = vpack.c.b16 %v1291, %v1290
        %v1315 = vpack.c.b16 %v1293, %v1292
        %v1316 = vpack.c.b16 %v1295, %v1294
        %v1317 = vpack.c.b16 %v1297, %v1296
        %v1318 = vpack.c.b16 %v1299, %v1298
        %v1319 = vpack.c.b16 %v1301, %v1300
        %v1320 = vpack.c.b16 %v1303, %v1302
        %v1321 = vpack.c.b16 %v1305, %v1304
        %1338 = vmatprep.subr.bf16.mxu0 0
        %1339 = vmatpush1.bf16.msra.mxu0 %v1306
        %1340 = vmatprep.subr.bf16.mxu0 0
        %1341 = vmatpush1.bf16.msra.mxu0 %v1307
        %1342 = vmatprep.subr.bf16.mxu0 0
        %1343 = vmatpush1.bf16.msra.mxu0 %v1308
        %1344 = vmatprep.subr.bf16.mxu0 0
        %1345 = vmatpush1.bf16.msra.mxu0 %v1309
        %1346 = vmatprep.subr.bf16.mxu0 0
        %1347 = vmatpush1.bf16.msra.mxu0 %v1310
        %1348 = vmatprep.subr.bf16.mxu0 0
        %1349 = vmatpush1.bf16.msra.mxu0 %v1311
        %1350 = vmatprep.subr.bf16.mxu0 0
        %1351 = vmatpush1.bf16.msra.mxu0 %v1312
        %1352 = vmatprep.subr.bf16.mxu0 0
        %1353 = vmatpush1.bf16.msra.mxu0 %v1313
        %1354 = vmatprep.subr.bf16.mxu0 0
        %1355 = vmatpush1.bf16.msra.mxu0 %v1314
        %1356 = vmatprep.subr.bf16.mxu0 0
        %1357 = vmatpush1.bf16.msra.mxu0 %v1315
        %1358 = vmatprep.subr.bf16.mxu0 0
        %1359 = vmatpush1.bf16.msra.mxu0 %v1316
        %1360 = vmatprep.subr.bf16.mxu0 0
        %1361 = vmatpush1.bf16.msra.mxu0 %v1317
        %1362 = vmatprep.subr.bf16.mxu0 0
        %1363 = vmatpush1.bf16.msra.mxu0 %v1318
        %1364 = vmatprep.subr.bf16.mxu0 0
        %1365 = vmatpush1.bf16.msra.mxu0 %v1319
        %1366 = vmatprep.subr.bf16.mxu0 0
        %1367 = vmatpush1.bf16.msra.mxu0 %v1320
        %1368 = vmatprep.subr.bf16.mxu0 0
        %1369 = vmatpush1.bf16.msra.mxu0 %v1321
        %1370 = vmatprep.mubr.bf16.mxu0 %v1208
        %1371 = vmatmul.mubr.bf16.gmra.mrb[0].mxu0 %v1207
        %v1372 = vpop.f32.mrb[0].mxu0
        %v1373 = vadd.f32 0.0, %v1372
        %v1374 = vpop.f32.mrb[0].mxu0
        %v1375 = vpop.f32.mrb[0].mxu0
        %v1376 = vpop.f32.mrb[0].mxu0
        %1377 = vdwg.mxu0
        %s1378 = scalar_lea.vmem %s3, 3
        %v1379 = vld [vmem:[%s1378] sm:$0x1]
        %s1380 = scalar_lea.vmem %s4, 3
        %v1381 = vld [vmem:[%s1380] sm:$0x1]
        %v1382 = vsel %vm744, %v1373, 0.0
        %1383 = vadd.xlane.f32.xlu0 %v1382
        %v1384 = vpop.xlane.xlu0 %1383
        %v1385 = vmul.f32 %v1384, %v748
        %v1386 = vsub.f32 %v1373, %v1385
        %v1387 = vmul.f32 %v1386, %v1386
        %v1388 = vsel %vm744, %v1387, 0.0
        %1389 = vadd.xlane.f32.xlu0 %v1388
        %v1390 = vpop.xlane.xlu0 %1389
        %v1391 = vmul.f32 %v1390, %v748
        %v1392 = vadd.f32 %v1391, 1e-05
        %v1393 = vrsqrt.pop %v1392
        %v1394 = vmul.f32 %v1386, %v1393
        %v1396 = vlaneseq
        %v1397 = vshrl.u32 %v1396, 7
        %v1398 = vsub.s32 0, %v1397
        %v1399 = vrot.slane %v1379, %v1398
        %v1401 = vmul.f32 %v1394, %v1399
        %v1403 = vlaneseq
        %v1404 = vshrl.u32 %v1403, 7
        %v1405 = vsub.s32 0, %v1404
        %v1406 = vrot.slane %v1381, %v1405
        %v1408 = vadd.f32 %v1401, %v1406
        %v1409 = vadd.f32 %v1197, %v1408
        %1410 = vset.pattern.permute.xlu0 4
        %1411 = vperm.xlu0 %1410, %v559
        %v1412 = vpop.permute.xlu0 %1411
        %vm1413 = vcmp.eq.s32.totalorder %v1412, %v561
        %vm1414 = vcmp.eq.s32.totalorder %v1412, %v562
        %v1415 = vsel %vm1413, 1, 0
        %v1416 = vsel %vm1414, 1, 0
        %v1417 = vcvt.s32.f32 %v1415
        %v1418 = vcvt.s32.f32 %v1416
        %v1419 = vpack.c.bf16 %v1417, %v1417
        %v1420 = vpack.c.bf16 %v1418, %v1418
        %s1421 = scalar_lea.vmem %s2, 512
        %v1422 = vld [vmem:[%s1421] sm:$0xf]
        %v1423 = vld [vmem:[%s1421 + $0x4] sm:$0xf]
        %v1424 = vld [vmem:[%s1421 + $0x8] sm:$0xf]
        %v1425 = vld [vmem:[%s1421 + $0xc] sm:$0xf]
        %v1426 = vld [vmem:[%s1421 + $0x10] sm:$0xf]
        %v1427 = vld [vmem:[%s1421 + $0x14] sm:$0xf]
        %v1428 = vld [vmem:[%s1421 + $0x18] sm:$0xf]
        %v1429 = vld [vmem:[%s1421 + $0x1c] sm:$0xf]
        %v1430 = vld [vmem:[%s1421 + $0x20] sm:$0xf]
        %v1431 = vld [vmem:[%s1421 + $0x24] sm:$0xf]
        %v1432 = vld [vmem:[%s1421 + $0x28] sm:$0xf]
        %v1433 = vld [vmem:[%s1421 + $0x2c] sm:$0xf]
        %v1434 = vld [vmem:[%s1421 + $0x30] sm:$0xf]
        %v1435 = vld [vmem:[%s1421 + $0x34] sm:$0xf]
        %v1436 = vld [vmem:[%s1421 + $0x38] sm:$0xf]
        %v1437 = vld [vmem:[%s1421 + $0x3c] sm:$0xf]
        %v1438 = vld [vmem:[%s1421 + $0x40] sm:$0xf]
        %v1439 = vld [vmem:[%s1421 + $0x44] sm:$0xf]
        %v1440 = vld [vmem:[%s1421 + $0x48] sm:$0xf]
        %v1441 = vld [vmem:[%s1421 + $0x4c] sm:$0xf]
        %v1442 = vld [vmem:[%s1421 + $0x50] sm:$0xf]
        %v1443 = vld [vmem:[%s1421 + $0x54] sm:$0xf]
        %v1444 = vld [vmem:[%s1421 + $0x58] sm:$0xf]
        %v1445 = vld [vmem:[%s1421 + $0x5c] sm:$0xf]
        %v1446 = vld [vmem:[%s1421 + $0x60] sm:$0xf]
        %v1447 = vld [vmem:[%s1421 + $0x64] sm:$0xf]
        %v1448 = vld [vmem:[%s1421 + $0x68] sm:$0xf]
        %v1449 = vld [vmem:[%s1421 + $0x6c] sm:$0xf]
        %v1450 = vld [vmem:[%s1421 + $0x70] sm:$0xf]
        %v1451 = vld [vmem:[%s1421 + $0x74] sm:$0xf]
        %v1452 = vld [vmem:[%s1421 + $0x78] sm:$0xf]
        %v1453 = vld [vmem:[%s1421 + $0x7c] sm:$0xf]
        %v1486 = vunpack.c.l.b16 %v1422
        %v1487 = vunpack.c.l.b16 %v1423
        %v1488 = vunpack.c.l.b16 %v1424
        %v1489 = vunpack.c.l.b16 %v1425
        %v1490 = vunpack.c.l.b16 %v1426
        %v1491 = vunpack.c.l.b16 %v1427
        %v1492 = vunpack.c.l.b16 %v1428
        %v1493 = vunpack.c.l.b16 %v1429
        %v1494 = vunpack.c.l.b16 %v1430
        %v1495 = vunpack.c.l.b16 %v1431
        %v1496 = vunpack.c.l.b16 %v1432
        %v1497 = vunpack.c.l.b16 %v1433
        %v1498 = vunpack.c.l.b16 %v1434
        %v1499 = vunpack.c.l.b16 %v1435
        %v1500 = vunpack.c.l.b16 %v1436
        %v1501 = vunpack.c.l.b16 %v1437
        %v1502 = vunpack.c.l.b16 %v1438
        %v1503 = vunpack.c.l.b16 %v1439
        %v1504 = vunpack.c.l.b16 %v1440
        %v1505 = vunpack.c.l.b16 %v1441
        %v1506 = vunpack.c.l.b16 %v1442
        %v1507 = vunpack.c.l.b16 %v1443
        %v1508 = vunpack.c.l.b16 %v1444
        %v1509 = vunpack.c.l.b16 %v1445
        %v1510 = vunpack.c.l.b16 %v1446
        %v1511 = vunpack.c.l.b16 %v1447
        %v1512 = vunpack.c.l.b16 %v1448
        %v1513 = vunpack.c.l.b16 %v1449
        %v1514 = vunpack.c.l.b16 %v1450
        %v1515 = vunpack.c.l.b16 %v1451
        %v1516 = vunpack.c.l.b16 %v1452
        %v1517 = vunpack.c.l.b16 %v1453
        %v1518 = vpack.c.b16 %v1487, %v1486
        %v1519 = vpack.c.b16 %v1489, %v1488
        %v1520 = vpack.c.b16 %v1491, %v1490
        %v1521 = vpack.c.b16 %v1493, %v1492
        %v1522 = vpack.c.b16 %v1495, %v1494
        %v1523 = vpack.c.b16 %v1497, %v1496
        %v1524 = vpack.c.b16 %v1499, %v1498
        %v1525 = vpack.c.b16 %v1501, %v1500
        %v1526 = vpack.c.b16 %v1503, %v1502
        %v1527 = vpack.c.b16 %v1505, %v1504
        %v1528 = vpack.c.b16 %v1507, %v1506
        %v1529 = vpack.c.b16 %v1509, %v1508
        %v1530 = vpack.c.b16 %v1511, %v1510
        %v1531 = vpack.c.b16 %v1513, %v1512
        %v1532 = vpack.c.b16 %v1515, %v1514
        %v1533 = vpack.c.b16 %v1517, %v1516
        %1550 = vmatprep.subr.bf16.mxu0 0
        %1551 = vmatpush1.bf16.msra.mxu0 %v1518
        %1552 = vmatprep.subr.bf16.mxu0 0
        %1553 = vmatpush1.bf16.msra.mxu0 %v1519
        %1554 = vmatprep.subr.bf16.mxu0 0
        %1555 = vmatpush1.bf16.msra.mxu0 %v1520
        %1556 = vmatprep.subr.bf16.mxu0 0
        %1557 = vmatpush1.bf16.msra.mxu0 %v1521
        %1558 = vmatprep.subr.bf16.mxu0 0
        %1559 = vmatpush1.bf16.msra.mxu0 %v1522
        %1560 = vmatprep.subr.bf16.mxu0 0
        %1561 = vmatpush1.bf16.msra.mxu0 %v1523
        %1562 = vmatprep.subr.bf16.mxu0 0
        %1563 = vmatpush1.bf16.msra.mxu0 %v1524
        %1564 = vmatprep.subr.bf16.mxu0 0
        %1565 = vmatpush1.bf16.msra.mxu0 %v1525
        %1566 = vmatprep.subr.bf16.mxu0 0
        %1567 = vmatpush1.bf16.msra.mxu0 %v1526
        %1568 = vmatprep.subr.bf16.mxu0 0
        %1569 = vmatpush1.bf16.msra.mxu0 %v1527
        %1570 = vmatprep.subr.bf16.mxu0 0
        %1571 = vmatpush1.bf16.msra.mxu0 %v1528
        %1572 = vmatprep.subr.bf16.mxu0 0
        %1573 = vmatpush1.bf16.msra.mxu0 %v1529
        %1574 = vmatprep.subr.bf16.mxu0 0
        %1575 = vmatpush1.bf16.msra.mxu0 %v1530
        %1576 = vmatprep.subr.bf16.mxu0 0
        %1577 = vmatpush1.bf16.msra.mxu0 %v1531
        %1578 = vmatprep.subr.bf16.mxu0 0
        %1579 = vmatpush1.bf16.msra.mxu0 %v1532
        %1580 = vmatprep.subr.bf16.mxu0 0
        %1581 = vmatpush1.bf16.msra.mxu0 %v1533
        %1582 = vmatprep.mubr.bf16.mxu0 %v1420
        %1583 = vmatmul.mubr.bf16.gmra.mrb[0].mxu0 %v1419
        %v1584 = vpop.f32.mrb[0].mxu0
        %v1585 = vadd.f32 0.0, %v1584
        %v1586 = vpop.f32.mrb[0].mxu0
        %v1587 = vpop.f32.mrb[0].mxu0
        %v1588 = vpop.f32.mrb[0].mxu0
        %1589 = vdwg.mxu0
        %s1590 = scalar_lea.vmem %s3, 4
        %v1591 = vld [vmem:[%s1590] sm:$0x1]
        %s1592 = scalar_lea.vmem %s4, 4
        %v1593 = vld [vmem:[%s1592] sm:$0x1]
        %v1594 = vsel %vm744, %v1585, 0.0
        %1595 = vadd.xlane.f32.xlu0 %v1594
        %v1596 = vpop.xlane.xlu0 %1595
        %v1597 = vmul.f32 %v1596, %v748
        %v1598 = vsub.f32 %v1585, %v1597
        %v1599 = vmul.f32 %v1598, %v1598
        %v1600 = vsel %vm744, %v1599, 0.0
        %1601 = vadd.xlane.f32.xlu0 %v1600
        %v1602 = vpop.xlane.xlu0 %1601
        %v1603 = vmul.f32 %v1602, %v748
        %v1604 = vadd.f32 %v1603, 1e-05
        %v1605 = vrsqrt.pop %v1604
        %v1606 = vmul.f32 %v1598, %v1605
        %v1608 = vlaneseq
        %v1609 = vshrl.u32 %v1608, 7
        %v1610 = vsub.s32 0, %v1609
        %v1611 = vrot.slane %v1591, %v1610
        %v1613 = vmul.f32 %v1606, %v1611
        %v1615 = vlaneseq
        %v1616 = vshrl.u32 %v1615, 7
        %v1617 = vsub.s32 0, %v1616
        %v1618 = vrot.slane %v1593, %v1617
        %v1620 = vadd.f32 %v1613, %v1618
        %v1621 = vadd.f32 %v1409, %v1620
        %1622 = vset.pattern.permute.xlu0 5
        %1623 = vperm.xlu0 %1622, %v559
        %v1624 = vpop.permute.xlu0 %1623
        %vm1625 = vcmp.eq.s32.totalorder %v1624, %v561
        %vm1626 = vcmp.eq.s32.totalorder %v1624, %v562
        %v1627 = vsel %vm1625, 1, 0
        %v1628 = vsel %vm1626, 1, 0
        %v1629 = vcvt.s32.f32 %v1627
        %v1630 = vcvt.s32.f32 %v1628
        %v1631 = vpack.c.bf16 %v1629, %v1629
        %v1632 = vpack.c.bf16 %v1630, %v1630
        %s1633 = scalar_lea.vmem %s2, 640
        %v1634 = vld [vmem:[%s1633] sm:$0xf]
        %v1635 = vld [vmem:[%s1633 + $0x4] sm:$0xf]
        %v1636 = vld [vmem:[%s1633 + $0x8] sm:$0xf]
        %v1637 = vld [vmem:[%s1633 + $0xc] sm:$0xf]
        %v1638 = vld [vmem:[%s1633 + $0x10] sm:$0xf]
        %v1639 = vld [vmem:[%s1633 + $0x14] sm:$0xf]
        %v1640 = vld [vmem:[%s1633 + $0x18] sm:$0xf]
        %v1641 = vld [vmem:[%s1633 + $0x1c] sm:$0xf]
        %v1642 = vld [vmem:[%s1633 + $0x20] sm:$0xf]
        %v1643 = vld [vmem:[%s1633 + $0x24] sm:$0xf]
        %v1644 = vld [vmem:[%s1633 + $0x28] sm:$0xf]
        %v1645 = vld [vmem:[%s1633 + $0x2c] sm:$0xf]
        %v1646 = vld [vmem:[%s1633 + $0x30] sm:$0xf]
        %v1647 = vld [vmem:[%s1633 + $0x34] sm:$0xf]
        %v1648 = vld [vmem:[%s1633 + $0x38] sm:$0xf]
        %v1649 = vld [vmem:[%s1633 + $0x3c] sm:$0xf]
        %v1650 = vld [vmem:[%s1633 + $0x40] sm:$0xf]
        %v1651 = vld [vmem:[%s1633 + $0x44] sm:$0xf]
        %v1652 = vld [vmem:[%s1633 + $0x48] sm:$0xf]
        %v1653 = vld [vmem:[%s1633 + $0x4c] sm:$0xf]
        %v1654 = vld [vmem:[%s1633 + $0x50] sm:$0xf]
        %v1655 = vld [vmem:[%s1633 + $0x54] sm:$0xf]
        %v1656 = vld [vmem:[%s1633 + $0x58] sm:$0xf]
        %v1657 = vld [vmem:[%s1633 + $0x5c] sm:$0xf]
        %v1658 = vld [vmem:[%s1633 + $0x60] sm:$0xf]
        %v1659 = vld [vmem:[%s1633 + $0x64] sm:$0xf]
        %v1660 = vld [vmem:[%s1633 + $0x68] sm:$0xf]
        %v1661 = vld [vmem:[%s1633 + $0x6c] sm:$0xf]
        %v1662 = vld [vmem:[%s1633 + $0x70] sm:$0xf]
        %v1663 = vld [vmem:[%s1633 + $0x74] sm:$0xf]
        %v1664 = vld [vmem:[%s1633 + $0x78] sm:$0xf]
        %v1665 = vld [vmem:[%s1633 + $0x7c] sm:$0xf]
        %v1698 = vunpack.c.l.b16 %v1634
        %v1699 = vunpack.c.l.b16 %v1635
        %v1700 = vunpack.c.l.b16 %v1636
        %v1701 = vunpack.c.l.b16 %v1637
        %v1702 = vunpack.c.l.b16 %v1638
        %v1703 = vunpack.c.l.b16 %v1639
        %v1704 = vunpack.c.l.b16 %v1640
        %v1705 = vunpack.c.l.b16 %v1641
        %v1706 = vunpack.c.l.b16 %v1642
        %v1707 = vunpack.c.l.b16 %v1643
        %v1708 = vunpack.c.l.b16 %v1644
        %v1709 = vunpack.c.l.b16 %v1645
        %v1710 = vunpack.c.l.b16 %v1646
        %v1711 = vunpack.c.l.b16 %v1647
        %v1712 = vunpack.c.l.b16 %v1648
        %v1713 = vunpack.c.l.b16 %v1649
        %v1714 = vunpack.c.l.b16 %v1650
        %v1715 = vunpack.c.l.b16 %v1651
        %v1716 = vunpack.c.l.b16 %v1652
        %v1717 = vunpack.c.l.b16 %v1653
        %v1718 = vunpack.c.l.b16 %v1654
        %v1719 = vunpack.c.l.b16 %v1655
        %v1720 = vunpack.c.l.b16 %v1656
        %v1721 = vunpack.c.l.b16 %v1657
        %v1722 = vunpack.c.l.b16 %v1658
        %v1723 = vunpack.c.l.b16 %v1659
        %v1724 = vunpack.c.l.b16 %v1660
        %v1725 = vunpack.c.l.b16 %v1661
        %v1726 = vunpack.c.l.b16 %v1662
        %v1727 = vunpack.c.l.b16 %v1663
        %v1728 = vunpack.c.l.b16 %v1664
        %v1729 = vunpack.c.l.b16 %v1665
        %v1730 = vpack.c.b16 %v1699, %v1698
        %v1731 = vpack.c.b16 %v1701, %v1700
        %v1732 = vpack.c.b16 %v1703, %v1702
        %v1733 = vpack.c.b16 %v1705, %v1704
        %v1734 = vpack.c.b16 %v1707, %v1706
        %v1735 = vpack.c.b16 %v1709, %v1708
        %v1736 = vpack.c.b16 %v1711, %v1710
        %v1737 = vpack.c.b16 %v1713, %v1712
        %v1738 = vpack.c.b16 %v1715, %v1714
        %v1739 = vpack.c.b16 %v1717, %v1716
        %v1740 = vpack.c.b16 %v1719, %v1718
        %v1741 = vpack.c.b16 %v1721, %v1720
        %v1742 = vpack.c.b16 %v1723, %v1722
        %v1743 = vpack.c.b16 %v1725, %v1724
        %v1744 = vpack.c.b16 %v1727, %v1726
        %v1745 = vpack.c.b16 %v1729, %v1728
        %1762 = vmatprep.subr.bf16.mxu0 0
        %1763 = vmatpush1.bf16.msra.mxu0 %v1730
        %1764 = vmatprep.subr.bf16.mxu0 0
        %1765 = vmatpush1.bf16.msra.mxu0 %v1731
        %1766 = vmatprep.subr.bf16.mxu0 0
        %1767 = vmatpush1.bf16.msra.mxu0 %v1732
        %1768 = vmatprep.subr.bf16.mxu0 0
        %1769 = vmatpush1.bf16.msra.mxu0 %v1733
        %1770 = vmatprep.subr.bf16.mxu0 0
        %1771 = vmatpush1.bf16.msra.mxu0 %v1734
        %1772 = vmatprep.subr.bf16.mxu0 0
        %1773 = vmatpush1.bf16.msra.mxu0 %v1735
        %1774 = vmatprep.subr.bf16.mxu0 0
        %1775 = vmatpush1.bf16.msra.mxu0 %v1736
        %1776 = vmatprep.subr.bf16.mxu0 0
        %1777 = vmatpush1.bf16.msra.mxu0 %v1737
        %1778 = vmatprep.subr.bf16.mxu0 0
        %1779 = vmatpush1.bf16.msra.mxu0 %v1738
        %1780 = vmatprep.subr.bf16.mxu0 0
        %1781 = vmatpush1.bf16.msra.mxu0 %v1739
        %1782 = vmatprep.subr.bf16.mxu0 0
        %1783 = vmatpush1.bf16.msra.mxu0 %v1740
        %1784 = vmatprep.subr.bf16.mxu0 0
        %1785 = vmatpush1.bf16.msra.mxu0 %v1741
        %1786 = vmatprep.subr.bf16.mxu0 0
        %1787 = vmatpush1.bf16.msra.mxu0 %v1742
        %1788 = vmatprep.subr.bf16.mxu0 0
        %1789 = vmatpush1.bf16.msra.mxu0 %v1743
        %1790 = vmatprep.subr.bf16.mxu0 0
        %1791 = vmatpush1.bf16.msra.mxu0 %v1744
        %1792 = vmatprep.subr.bf16.mxu0 0
        %1793 = vmatpush1.bf16.msra.mxu0 %v1745
        %1794 = vmatprep.mubr.bf16.mxu0 %v1632
        %1795 = vmatmul.mubr.bf16.gmra.mrb[0].mxu0 %v1631
        %v1796 = vpop.f32.mrb[0].mxu0
        %v1797 = vadd.f32 0.0, %v1796
        %v1798 = vpop.f32.mrb[0].mxu0
        %v1799 = vpop.f32.mrb[0].mxu0
        %v1800 = vpop.f32.mrb[0].mxu0
        %1801 = vdwg.mxu0
        %s1802 = scalar_lea.vmem %s3, 5
        %v1803 = vld [vmem:[%s1802] sm:$0x1]
        %s1804 = scalar_lea.vmem %s4, 5
        %v1805 = vld [vmem:[%s1804] sm:$0x1]
        %v1806 = vsel %vm744, %v1797, 0.0
        %1807 = vadd.xlane.f32.xlu0 %v1806
        %v1808 = vpop.xlane.xlu0 %1807
        %v1809 = vmul.f32 %v1808, %v748
        %v1810 = vsub.f32 %v1797, %v1809
        %v1811 = vmul.f32 %v1810, %v1810
        %v1812 = vsel %vm744, %v1811, 0.0
        %1813 = vadd.xlane.f32.xlu0 %v1812
        %v1814 = vpop.xlane.xlu0 %1813
        %v1815 = vmul.f32 %v1814, %v748
        %v1816 = vadd.f32 %v1815, 1e-05
        %v1817 = vrsqrt.pop %v1816
        %v1818 = vmul.f32 %v1810, %v1817
        %v1820 = vlaneseq
        %v1821 = vshrl.u32 %v1820, 7
        %v1822 = vsub.s32 0, %v1821
        %v1823 = vrot.slane %v1803, %v1822
        %v1825 = vmul.f32 %v1818, %v1823
        %v1827 = vlaneseq
        %v1828 = vshrl.u32 %v1827, 7
        %v1829 = vsub.s32 0, %v1828
        %v1830 = vrot.slane %v1805, %v1829
        %v1832 = vadd.f32 %v1825, %v1830
        %v1833 = vadd.f32 %v1621, %v1832
        %1834 = vset.pattern.permute.xlu0 6
        %1835 = vperm.xlu0 %1834, %v559
        %v1836 = vpop.permute.xlu0 %1835
        %vm1837 = vcmp.eq.s32.totalorder %v1836, %v561
        %vm1838 = vcmp.eq.s32.totalorder %v1836, %v562
        %v1839 = vsel %vm1837, 1, 0
        %v1840 = vsel %vm1838, 1, 0
        %v1841 = vcvt.s32.f32 %v1839
        %v1842 = vcvt.s32.f32 %v1840
        %v1843 = vpack.c.bf16 %v1841, %v1841
        %v1844 = vpack.c.bf16 %v1842, %v1842
        %s1845 = scalar_lea.vmem %s2, 768
        %v1846 = vld [vmem:[%s1845] sm:$0xf]
        %v1847 = vld [vmem:[%s1845 + $0x4] sm:$0xf]
        %v1848 = vld [vmem:[%s1845 + $0x8] sm:$0xf]
        %v1849 = vld [vmem:[%s1845 + $0xc] sm:$0xf]
        %v1850 = vld [vmem:[%s1845 + $0x10] sm:$0xf]
        %v1851 = vld [vmem:[%s1845 + $0x14] sm:$0xf]
        %v1852 = vld [vmem:[%s1845 + $0x18] sm:$0xf]
        %v1853 = vld [vmem:[%s1845 + $0x1c] sm:$0xf]
        %v1854 = vld [vmem:[%s1845 + $0x20] sm:$0xf]
        %v1855 = vld [vmem:[%s1845 + $0x24] sm:$0xf]
        %v1856 = vld [vmem:[%s1845 + $0x28] sm:$0xf]
        %v1857 = vld [vmem:[%s1845 + $0x2c] sm:$0xf]
        %v1858 = vld [vmem:[%s1845 + $0x30] sm:$0xf]
        %v1859 = vld [vmem:[%s1845 + $0x34] sm:$0xf]
        %v1860 = vld [vmem:[%s1845 + $0x38] sm:$0xf]
        %v1861 = vld [vmem:[%s1845 + $0x3c] sm:$0xf]
        %v1862 = vld [vmem:[%s1845 + $0x40] sm:$0xf]
        %v1863 = vld [vmem:[%s1845 + $0x44] sm:$0xf]
        %v1864 = vld [vmem:[%s1845 + $0x48] sm:$0xf]
        %v1865 = vld [vmem:[%s1845 + $0x4c] sm:$0xf]
        %v1866 = vld [vmem:[%s1845 + $0x50] sm:$0xf]
        %v1867 = vld [vmem:[%s1845 + $0x54] sm:$0xf]
        %v1868 = vld [vmem:[%s1845 + $0x58] sm:$0xf]
        %v1869 = vld [vmem:[%s1845 + $0x5c] sm:$0xf]
        %v1870 = vld [vmem:[%s1845 + $0x60] sm:$0xf]
        %v1871 = vld [vmem:[%s1845 + $0x64] sm:$0xf]
        %v1872 = vld [vmem:[%s1845 + $0x68] sm:$0xf]
        %v1873 = vld [vmem:[%s1845 + $0x6c] sm:$0xf]
        %v1874 = vld [vmem:[%s1845 + $0x70] sm:$0xf]
        %v1875 = vld [vmem:[%s1845 + $0x74] sm:$0xf]
        %v1876 = vld [vmem:[%s1845 + $0x78] sm:$0xf]
        %v1877 = vld [vmem:[%s1845 + $0x7c] sm:$0xf]
        %v1910 = vunpack.c.l.b16 %v1846
        %v1911 = vunpack.c.l.b16 %v1847
        %v1912 = vunpack.c.l.b16 %v1848
        %v1913 = vunpack.c.l.b16 %v1849
        %v1914 = vunpack.c.l.b16 %v1850
        %v1915 = vunpack.c.l.b16 %v1851
        %v1916 = vunpack.c.l.b16 %v1852
        %v1917 = vunpack.c.l.b16 %v1853
        %v1918 = vunpack.c.l.b16 %v1854
        %v1919 = vunpack.c.l.b16 %v1855
        %v1920 = vunpack.c.l.b16 %v1856
        %v1921 = vunpack.c.l.b16 %v1857
        %v1922 = vunpack.c.l.b16 %v1858
        %v1923 = vunpack.c.l.b16 %v1859
        %v1924 = vunpack.c.l.b16 %v1860
        %v1925 = vunpack.c.l.b16 %v1861
        %v1926 = vunpack.c.l.b16 %v1862
        %v1927 = vunpack.c.l.b16 %v1863
        %v1928 = vunpack.c.l.b16 %v1864
        %v1929 = vunpack.c.l.b16 %v1865
        %v1930 = vunpack.c.l.b16 %v1866
        %v1931 = vunpack.c.l.b16 %v1867
        %v1932 = vunpack.c.l.b16 %v1868
        %v1933 = vunpack.c.l.b16 %v1869
        %v1934 = vunpack.c.l.b16 %v1870
        %v1935 = vunpack.c.l.b16 %v1871
        %v1936 = vunpack.c.l.b16 %v1872
        %v1937 = vunpack.c.l.b16 %v1873
        %v1938 = vunpack.c.l.b16 %v1874
        %v1939 = vunpack.c.l.b16 %v1875
        %v1940 = vunpack.c.l.b16 %v1876
        %v1941 = vunpack.c.l.b16 %v1877
        %v1942 = vpack.c.b16 %v1911, %v1910
        %v1943 = vpack.c.b16 %v1913, %v1912
        %v1944 = vpack.c.b16 %v1915, %v1914
        %v1945 = vpack.c.b16 %v1917, %v1916
        %v1946 = vpack.c.b16 %v1919, %v1918
        %v1947 = vpack.c.b16 %v1921, %v1920
        %v1948 = vpack.c.b16 %v1923, %v1922
        %v1949 = vpack.c.b16 %v1925, %v1924
        %v1950 = vpack.c.b16 %v1927, %v1926
        %v1951 = vpack.c.b16 %v1929, %v1928
        %v1952 = vpack.c.b16 %v1931, %v1930
        %v1953 = vpack.c.b16 %v1933, %v1932
        %v1954 = vpack.c.b16 %v1935, %v1934
        %v1955 = vpack.c.b16 %v1937, %v1936
        %v1956 = vpack.c.b16 %v1939, %v1938
        %v1957 = vpack.c.b16 %v1941, %v1940
        %1974 = vmatprep.subr.bf16.mxu0 0
        %1975 = vmatpush1.bf16.msra.mxu0 %v1942
        %1976 = vmatprep.subr.bf16.mxu0 0
        %1977 = vmatpush1.bf16.msra.mxu0 %v1943
        %1978 = vmatprep.subr.bf16.mxu0 0
        %1979 = vmatpush1.bf16.msra.mxu0 %v1944
        %1980 = vmatprep.subr.bf16.mxu0 0
        %1981 = vmatpush1.bf16.msra.mxu0 %v1945
        %1982 = vmatprep.subr.bf16.mxu0 0
        %1983 = vmatpush1.bf16.msra.mxu0 %v1946
        %1984 = vmatprep.subr.bf16.mxu0 0
        %1985 = vmatpush1.bf16.msra.mxu0 %v1947
        %1986 = vmatprep.subr.bf16.mxu0 0
        %1987 = vmatpush1.bf16.msra.mxu0 %v1948
        %1988 = vmatprep.subr.bf16.mxu0 0
        %1989 = vmatpush1.bf16.msra.mxu0 %v1949
        %1990 = vmatprep.subr.bf16.mxu0 0
        %1991 = vmatpush1.bf16.msra.mxu0 %v1950
        %1992 = vmatprep.subr.bf16.mxu0 0
        %1993 = vmatpush1.bf16.msra.mxu0 %v1951
        %1994 = vmatprep.subr.bf16.mxu0 0
        %1995 = vmatpush1.bf16.msra.mxu0 %v1952
        %1996 = vmatprep.subr.bf16.mxu0 0
        %1997 = vmatpush1.bf16.msra.mxu0 %v1953
        %1998 = vmatprep.subr.bf16.mxu0 0
        %1999 = vmatpush1.bf16.msra.mxu0 %v1954
        %2000 = vmatprep.subr.bf16.mxu0 0
        %2001 = vmatpush1.bf16.msra.mxu0 %v1955
        %2002 = vmatprep.subr.bf16.mxu0 0
        %2003 = vmatpush1.bf16.msra.mxu0 %v1956
        %2004 = vmatprep.subr.bf16.mxu0 0
        %2005 = vmatpush1.bf16.msra.mxu0 %v1957
        %2006 = vmatprep.mubr.bf16.mxu0 %v1844
        %2007 = vmatmul.mubr.bf16.gmra.mrb[0].mxu0 %v1843
        %v2008 = vpop.f32.mrb[0].mxu0
        %v2009 = vadd.f32 0.0, %v2008
        %v2010 = vpop.f32.mrb[0].mxu0
        %v2011 = vpop.f32.mrb[0].mxu0
        %v2012 = vpop.f32.mrb[0].mxu0
        %2013 = vdwg.mxu0
        %s2014 = scalar_lea.vmem %s3, 6
        %v2015 = vld [vmem:[%s2014] sm:$0x1]
        %s2016 = scalar_lea.vmem %s4, 6
        %v2017 = vld [vmem:[%s2016] sm:$0x1]
        %v2018 = vsel %vm744, %v2009, 0.0
        %2019 = vadd.xlane.f32.xlu0 %v2018
        %v2020 = vpop.xlane.xlu0 %2019
        %v2021 = vmul.f32 %v2020, %v748
        %v2022 = vsub.f32 %v2009, %v2021
        %v2023 = vmul.f32 %v2022, %v2022
        %v2024 = vsel %vm744, %v2023, 0.0
        %2025 = vadd.xlane.f32.xlu0 %v2024
        %v2026 = vpop.xlane.xlu0 %2025
        %v2027 = vmul.f32 %v2026, %v748
        %v2028 = vadd.f32 %v2027, 1e-05
        %v2029 = vrsqrt.pop %v2028
        %v2030 = vmul.f32 %v2022, %v2029
        %v2032 = vlaneseq
        %v2033 = vshrl.u32 %v2032, 7
        %v2034 = vsub.s32 0, %v2033
        %v2035 = vrot.slane %v2015, %v2034
        %v2037 = vmul.f32 %v2030, %v2035
        %v2039 = vlaneseq
        %v2040 = vshrl.u32 %v2039, 7
        %v2041 = vsub.s32 0, %v2040
        %v2042 = vrot.slane %v2017, %v2041
        %v2044 = vadd.f32 %v2037, %v2042
        %v2045 = vadd.f32 %v1833, %v2044
        %2046 = vset.pattern.permute.xlu0 7
        %2047 = vperm.xlu0 %2046, %v559
        %v2048 = vpop.permute.xlu0 %2047
        %vm2049 = vcmp.eq.s32.totalorder %v2048, %v561
        %vm2050 = vcmp.eq.s32.totalorder %v2048, %v562
        %v2051 = vsel %vm2049, 1, 0
        %v2052 = vsel %vm2050, 1, 0
        %v2053 = vcvt.s32.f32 %v2051
        %v2054 = vcvt.s32.f32 %v2052
        %v2055 = vpack.c.bf16 %v2053, %v2053
        %v2056 = vpack.c.bf16 %v2054, %v2054
        %s2057 = scalar_lea.vmem %s2, 896
        %v2058 = vld [vmem:[%s2057] sm:$0xf]
        %v2059 = vld [vmem:[%s2057 + $0x4] sm:$0xf]
        %v2060 = vld [vmem:[%s2057 + $0x8] sm:$0xf]
        %v2061 = vld [vmem:[%s2057 + $0xc] sm:$0xf]
        %v2062 = vld [vmem:[%s2057 + $0x10] sm:$0xf]
        %v2063 = vld [vmem:[%s2057 + $0x14] sm:$0xf]
        %v2064 = vld [vmem:[%s2057 + $0x18] sm:$0xf]
        %v2065 = vld [vmem:[%s2057 + $0x1c] sm:$0xf]
        %v2066 = vld [vmem:[%s2057 + $0x20] sm:$0xf]
        %v2067 = vld [vmem:[%s2057 + $0x24] sm:$0xf]
        %v2068 = vld [vmem:[%s2057 + $0x28] sm:$0xf]
        %v2069 = vld [vmem:[%s2057 + $0x2c] sm:$0xf]
        %v2070 = vld [vmem:[%s2057 + $0x30] sm:$0xf]
        %v2071 = vld [vmem:[%s2057 + $0x34] sm:$0xf]
        %v2072 = vld [vmem:[%s2057 + $0x38] sm:$0xf]
        %v2073 = vld [vmem:[%s2057 + $0x3c] sm:$0xf]
        %v2074 = vld [vmem:[%s2057 + $0x40] sm:$0xf]
        %v2075 = vld [vmem:[%s2057 + $0x44] sm:$0xf]
        %v2076 = vld [vmem:[%s2057 + $0x48] sm:$0xf]
        %v2077 = vld [vmem:[%s2057 + $0x4c] sm:$0xf]
        %v2078 = vld [vmem:[%s2057 + $0x50] sm:$0xf]
        %v2079 = vld [vmem:[%s2057 + $0x54] sm:$0xf]
        %v2080 = vld [vmem:[%s2057 + $0x58] sm:$0xf]
        %v2081 = vld [vmem:[%s2057 + $0x5c] sm:$0xf]
        %v2082 = vld [vmem:[%s2057 + $0x60] sm:$0xf]
        %v2083 = vld [vmem:[%s2057 + $0x64] sm:$0xf]
        %v2084 = vld [vmem:[%s2057 + $0x68] sm:$0xf]
        %v2085 = vld [vmem:[%s2057 + $0x6c] sm:$0xf]
        %v2086 = vld [vmem:[%s2057 + $0x70] sm:$0xf]
        %v2087 = vld [vmem:[%s2057 + $0x74] sm:$0xf]
        %v2088 = vld [vmem:[%s2057 + $0x78] sm:$0xf]
        %v2089 = vld [vmem:[%s2057 + $0x7c] sm:$0xf]
        %v2122 = vunpack.c.l.b16 %v2058
        %v2123 = vunpack.c.l.b16 %v2059
        %v2124 = vunpack.c.l.b16 %v2060
        %v2125 = vunpack.c.l.b16 %v2061
        %v2126 = vunpack.c.l.b16 %v2062
        %v2127 = vunpack.c.l.b16 %v2063
        %v2128 = vunpack.c.l.b16 %v2064
        %v2129 = vunpack.c.l.b16 %v2065
        %v2130 = vunpack.c.l.b16 %v2066
        %v2131 = vunpack.c.l.b16 %v2067
        %v2132 = vunpack.c.l.b16 %v2068
        %v2133 = vunpack.c.l.b16 %v2069
        %v2134 = vunpack.c.l.b16 %v2070
        %v2135 = vunpack.c.l.b16 %v2071
        %v2136 = vunpack.c.l.b16 %v2072
        %v2137 = vunpack.c.l.b16 %v2073
        %v2138 = vunpack.c.l.b16 %v2074
        %v2139 = vunpack.c.l.b16 %v2075
        %v2140 = vunpack.c.l.b16 %v2076
        %v2141 = vunpack.c.l.b16 %v2077
        %v2142 = vunpack.c.l.b16 %v2078
        %v2143 = vunpack.c.l.b16 %v2079
        %v2144 = vunpack.c.l.b16 %v2080
        %v2145 = vunpack.c.l.b16 %v2081
        %v2146 = vunpack.c.l.b16 %v2082
        %v2147 = vunpack.c.l.b16 %v2083
        %v2148 = vunpack.c.l.b16 %v2084
        %v2149 = vunpack.c.l.b16 %v2085
        %v2150 = vunpack.c.l.b16 %v2086
        %v2151 = vunpack.c.l.b16 %v2087
        %v2152 = vunpack.c.l.b16 %v2088
        %v2153 = vunpack.c.l.b16 %v2089
        %v2154 = vpack.c.b16 %v2123, %v2122
        %v2155 = vpack.c.b16 %v2125, %v2124
        %v2156 = vpack.c.b16 %v2127, %v2126
        %v2157 = vpack.c.b16 %v2129, %v2128
        %v2158 = vpack.c.b16 %v2131, %v2130
        %v2159 = vpack.c.b16 %v2133, %v2132
        %v2160 = vpack.c.b16 %v2135, %v2134
        %v2161 = vpack.c.b16 %v2137, %v2136
        %v2162 = vpack.c.b16 %v2139, %v2138
        %v2163 = vpack.c.b16 %v2141, %v2140
        %v2164 = vpack.c.b16 %v2143, %v2142
        %v2165 = vpack.c.b16 %v2145, %v2144
        %v2166 = vpack.c.b16 %v2147, %v2146
        %v2167 = vpack.c.b16 %v2149, %v2148
        %v2168 = vpack.c.b16 %v2151, %v2150
        %v2169 = vpack.c.b16 %v2153, %v2152
        %2186 = vmatprep.subr.bf16.mxu0 0
        %2187 = vmatpush1.bf16.msra.mxu0 %v2154
        %2188 = vmatprep.subr.bf16.mxu0 0
        %2189 = vmatpush1.bf16.msra.mxu0 %v2155
        %2190 = vmatprep.subr.bf16.mxu0 0
        %2191 = vmatpush1.bf16.msra.mxu0 %v2156
        %2192 = vmatprep.subr.bf16.mxu0 0
        %2193 = vmatpush1.bf16.msra.mxu0 %v2157
        %2194 = vmatprep.subr.bf16.mxu0 0
        %2195 = vmatpush1.bf16.msra.mxu0 %v2158
        %2196 = vmatprep.subr.bf16.mxu0 0
        %2197 = vmatpush1.bf16.msra.mxu0 %v2159
        %2198 = vmatprep.subr.bf16.mxu0 0
        %2199 = vmatpush1.bf16.msra.mxu0 %v2160
        %2200 = vmatprep.subr.bf16.mxu0 0
        %2201 = vmatpush1.bf16.msra.mxu0 %v2161
        %2202 = vmatprep.subr.bf16.mxu0 0
        %2203 = vmatpush1.bf16.msra.mxu0 %v2162
        %2204 = vmatprep.subr.bf16.mxu0 0
        %2205 = vmatpush1.bf16.msra.mxu0 %v2163
        %2206 = vmatprep.subr.bf16.mxu0 0
        %2207 = vmatpush1.bf16.msra.mxu0 %v2164
        %2208 = vmatprep.subr.bf16.mxu0 0
        %2209 = vmatpush1.bf16.msra.mxu0 %v2165
        %2210 = vmatprep.subr.bf16.mxu0 0
        %2211 = vmatpush1.bf16.msra.mxu0 %v2166
        %2212 = vmatprep.subr.bf16.mxu0 0
        %2213 = vmatpush1.bf16.msra.mxu0 %v2167
        %2214 = vmatprep.subr.bf16.mxu0 0
        %2215 = vmatpush1.bf16.msra.mxu0 %v2168
        %2216 = vmatprep.subr.bf16.mxu0 0
        %2217 = vmatpush1.bf16.msra.mxu0 %v2169
        %2218 = vmatprep.mubr.bf16.mxu0 %v2056
        %2219 = vmatmul.mubr.bf16.gmra.mrb[0].mxu0 %v2055
        %v2220 = vpop.f32.mrb[0].mxu0
        %v2221 = vadd.f32 0.0, %v2220
        %v2222 = vpop.f32.mrb[0].mxu0
        %v2223 = vpop.f32.mrb[0].mxu0
        %v2224 = vpop.f32.mrb[0].mxu0
        %2225 = vdwg.mxu0
        %s2226 = scalar_lea.vmem %s3, 7
        %v2227 = vld [vmem:[%s2226] sm:$0x1]
        %s2228 = scalar_lea.vmem %s4, 7
        %v2229 = vld [vmem:[%s2228] sm:$0x1]
        %v2230 = vsel %vm744, %v2221, 0.0
        %2231 = vadd.xlane.f32.xlu0 %v2230
        %v2232 = vpop.xlane.xlu0 %2231
        %v2233 = vmul.f32 %v2232, %v748
        %v2234 = vsub.f32 %v2221, %v2233
        %v2235 = vmul.f32 %v2234, %v2234
        %v2236 = vsel %vm744, %v2235, 0.0
        %2237 = vadd.xlane.f32.xlu0 %v2236
        %v2238 = vpop.xlane.xlu0 %2237
        %v2239 = vmul.f32 %v2238, %v748
        %v2240 = vadd.f32 %v2239, 1e-05
        %v2241 = vrsqrt.pop %v2240
        %v2242 = vmul.f32 %v2234, %v2241
        %v2244 = vlaneseq
        %v2245 = vshrl.u32 %v2244, 7
        %v2246 = vsub.s32 0, %v2245
        %v2247 = vrot.slane %v2227, %v2246
        %v2249 = vmul.f32 %v2242, %v2247
        %v2251 = vlaneseq
        %v2252 = vshrl.u32 %v2251, 7
        %v2253 = vsub.s32 0, %v2252
        %v2254 = vrot.slane %v2229, %v2253
        %v2256 = vadd.f32 %v2249, %v2254
        %v2257 = vadd.f32 %v2045, %v2256
        %v2258 = vld [vmem:[%s557] sm:$0x1]
        %v2260 = vlaneseq
        %v2261 = vshrl.u32 %v2260, 7
        %v2262 = vsub.s32 0, %v2261
        %v2263 = vrot.slane %v2258, %v2262
        %v2265 = vmul.f32 %v2257, 0.125
        %v2266 = vadd.f32 %v2265, %v2263
        %v2267 = vlaneseq
        %v2268 = vshrl.u32 %v2267, 7
        %vm2269 = vcmp.eq.s32.totalorder %v2268, 0
        %vm2270 = vcmp.eq.s32.totalorder %v2268, 7
        %v2271 = vld [vmem:[%s5] sm:$0x1]
        %v2272 = vld [vmem:[%s6] sm:$0x1]
        %v2273 = vsel %vm744, %v2266, 0.0
        %2274 = vadd.xlane.f32.xlu0 %v2273
        %v2275 = vpop.xlane.xlu0 %2274
        %v2276 = vmul.f32 %v2275, %v748
        %v2277 = vsub.f32 %v2266, %v2276
        %v2278 = vmul.f32 %v2277, %v2277
        %v2279 = vsel %vm744, %v2278, 0.0
        %2280 = vadd.xlane.f32.xlu0 %v2279
        %v2281 = vpop.xlane.xlu0 %2280
        %v2282 = vmul.f32 %v2281, %v748
        %v2283 = vadd.f32 %v2282, 1e-05
        %v2284 = vrsqrt.pop %v2283
        %v2285 = vmul.f32 %v2277, %v2284
        %v2287 = vlaneseq
        %v2288 = vshrl.u32 %v2287, 7
        %v2289 = vsub.s32 0, %v2288
        %v2290 = vrot.slane %v2271, %v2289
        %v2292 = vmul.f32 %v2285, %v2290
        %v2294 = vlaneseq
        %v2295 = vshrl.u32 %v2294, 7
        %v2296 = vsub.s32 0, %v2295
        %v2297 = vrot.slane %v2272, %v2296
        %v2299 = vadd.f32 %v2292, %v2297
        %v2300 = vpack.c.bf16 %v2299, %v2299
        %v2301 = vld [vmem:[%s7] sm:$0xf]
        %v2302 = vld [vmem:[%s7 + $0x4] sm:$0xf]
        %v2303 = vld [vmem:[%s7 + $0x8] sm:$0xf]
        %v2304 = vld [vmem:[%s7 + $0xc] sm:$0xf]
        %v2309 = vunpack.c.l.b16 %v2301
        %v2310 = vunpack.c.l.b16 %v2302
        %v2311 = vunpack.c.l.b16 %v2303
        %v2312 = vunpack.c.l.b16 %v2304
        %v2313 = vpack.c.b16 %v2310, %v2309
        %v2314 = vpack.c.b16 %v2312, %v2311
        %v2318 = vsel %vm744, %v2300, 0
        %2320 = vmatprep.subr.bf16.mxu0 0
        %2321 = vmatpush1.bf16.msra.mxu0 %v2313
        %2322 = vmatprep.subr.bf16.mxu0 0
        %2323 = vmatpush1.bf16.msra.mxu0 %v2314
        %2324 = vmatprep.subr.bf16.mxu0 0
        %2325 = vmatpush1.bf16.msra.mxu0 0
        %2326 = vmatprep.subr.bf16.mxu0 0
        %2327 = vmatpush1.bf16.msra.mxu0 0
        %2328 = vmatprep.subr.bf16.mxu0 0
        %2329 = vmatpush1.bf16.msra.mxu0 0
        %2330 = vmatprep.subr.bf16.mxu0 0
        %2331 = vmatpush1.bf16.msra.mxu0 0
        %2332 = vmatprep.subr.bf16.mxu0 0
        %2333 = vmatpush1.bf16.msra.mxu0 0
        %2334 = vmatprep.subr.bf16.mxu0 0
        %2335 = vmatpush1.bf16.msra.mxu0 0
        %2336 = vmatprep.subr.bf16.mxu0 0
        %2337 = vmatpush1.bf16.msra.mxu0 0
        %2338 = vmatprep.subr.bf16.mxu0 0
        %2339 = vmatpush1.bf16.msra.mxu0 0
        %2340 = vmatprep.subr.bf16.mxu0 0
        %2341 = vmatpush1.bf16.msra.mxu0 0
        %2342 = vmatprep.subr.bf16.mxu0 0
        %2343 = vmatpush1.bf16.msra.mxu0 0
        %2344 = vmatprep.subr.bf16.mxu0 0
        %2345 = vmatpush1.bf16.msra.mxu0 0
        %2346 = vmatprep.subr.bf16.mxu0 0
        %2347 = vmatpush1.bf16.msra.mxu0 0
        %2348 = vmatprep.subr.bf16.mxu0 0
        %2349 = vmatpush1.bf16.msra.mxu0 0
        %2350 = vmatprep.subr.bf16.mxu0 0
        %2351 = vmatpush1.bf16.msra.mxu0 0
        %2352 = vmatprep.mubr.bf16.mxu0 0
        %2353 = vmatmul.mubr.bf16.gmra.mrb[0].mxu0 %v2318
        %v2354 = vpop.f32.mrb[0].mxu0
        %v2355 = vadd.f32 0.0, %v2354
        %v2356 = vpop.f32.mrb[0].mxu0
        %v2357 = vpop.f32.mrb[0].mxu0
        %v2358 = vpop.f32.mrb[0].mxu0
        %2359 = vdwg.mxu0
        %v2360 = vrot.slane %v2355, 7
        %v2361 = vsel %vm2269, 0.0, %v2360
        %v2362 = vrot.slane %v2355, 1
        %v2363 = vsel %vm2270, 0.0, %v2362
        %v2364 = vld [vmem:[%s8] sm:$0x7]
        %v2365 = vlaneseq
        %v2366 = vshrl.u32 %v2365, 7
        %v2367 = vsub.s32 0, %v2366
        %v2368 = vrot.slane %v2364, %v2367
        %v2369 = vmul.f32 %v2361, %v2368
        %v2370 = vlaneseq
        %v2371 = vshrl.u32 %v2370, 7
        %v2372 = vsub.s32 1, %v2371
        %v2373 = vrot.slane %v2364, %v2372
        %v2374 = vmul.f32 %v2355, %v2373
        %v2375 = vadd.f32 %v2369, %v2374
        %v2376 = vlaneseq
        %v2377 = vshrl.u32 %v2376, 7
        %v2378 = vsub.s32 2, %v2377
        %v2379 = vrot.slane %v2364, %v2378
        %v2380 = vmul.f32 %v2363, %v2379
        %v2381 = vadd.f32 %v2375, %v2380
        %v2382 = vsub.f32 0.0, %v2381
        %v2383 = vmul.f32 %v2382, 1.442695
        %v2384 = vpow.pop %v2383
        %v2385 = vadd.f32 %v2384, 1.0
        %v2386 = vrcp.pop %v2385
        %v2387 = vmul.f32 %v2381, %v2386
        %v2388 = vpack.c.bf16 %v2387, %v2387
        %v2389 = vld [vmem:[%s9] sm:$0xf]
        %v2390 = vld [vmem:[%s9 + $0x4] sm:$0xf]
        %v2391 = vld [vmem:[%s9 + $0x8] sm:$0xf]
        %v2392 = vld [vmem:[%s9 + $0xc] sm:$0xf]
        %v2393 = vld [vmem:[%s9 + $0x10] sm:$0xf]
        %v2394 = vld [vmem:[%s9 + $0x14] sm:$0xf]
        %v2395 = vld [vmem:[%s10] sm:$0x1]
        %v2397 = vlaneseq
        %v2398 = vshrl.u32 %v2397, 7
        %v2399 = vsub.s32 0, %v2398
        %v2400 = vrot.slane %v2395, %v2399
        %v2408 = vunpack.c.l.b16 %v2389
        %v2409 = vunpack.c.l.b16 %v2390
        %v2410 = vunpack.c.l.b16 %v2391
        %v2411 = vunpack.c.l.b16 %v2392
        %v2412 = vunpack.c.l.b16 %v2393
        %v2413 = vunpack.c.l.b16 %v2394
        %v2414 = vpack.c.b16 %v2409, %v2408
        %v2415 = vpack.c.b16 %v2411, %v2410
        %v2416 = vpack.c.b16 %v2413, %v2412
        %vm2420 = vcmask 392192
        %v2422 = vsel %vm2420, %v2388, 0
        %2424 = vmatprep.subr.bf16.mxu0 0
        %2425 = vmatpush1.bf16.msra.mxu0 %v2414
        %2426 = vmatprep.subr.bf16.mxu0 0
        %2427 = vmatpush1.bf16.msra.mxu0 %v2415
        %2428 = vmatprep.subr.bf16.mxu0 0
        %2429 = vmatpush1.bf16.msra.mxu0 %v2416
        %2430 = vmatprep.subr.bf16.mxu0 0
        %2431 = vmatpush1.bf16.msra.mxu0 0
        %2432 = vmatprep.subr.bf16.mxu0 0
        %2433 = vmatpush1.bf16.msra.mxu0 0
        %2434 = vmatprep.subr.bf16.mxu0 0
        %2435 = vmatpush1.bf16.msra.mxu0 0
        %2436 = vmatprep.subr.bf16.mxu0 0
        %2437 = vmatpush1.bf16.msra.mxu0 0
        %2438 = vmatprep.subr.bf16.mxu0 0
        %2439 = vmatpush1.bf16.msra.mxu0 0
        %2440 = vmatprep.subr.bf16.mxu0 0
        %2441 = vmatpush1.bf16.msra.mxu0 0
        %2442 = vmatprep.subr.bf16.mxu0 0
        %2443 = vmatpush1.bf16.msra.mxu0 0
        %2444 = vmatprep.subr.bf16.mxu0 0
        %2445 = vmatpush1.bf16.msra.mxu0 0
        %2446 = vmatprep.subr.bf16.mxu0 0
        %2447 = vmatpush1.bf16.msra.mxu0 0
        %2448 = vmatprep.subr.bf16.mxu0 0
        %2449 = vmatpush1.bf16.msra.mxu0 0
        %2450 = vmatprep.subr.bf16.mxu0 0
        %2451 = vmatpush1.bf16.msra.mxu0 0
        %2452 = vmatprep.subr.bf16.mxu0 0
        %2453 = vmatpush1.bf16.msra.mxu0 0
        %2454 = vmatprep.subr.bf16.mxu0 0
        %2455 = vmatpush1.bf16.msra.mxu0 0
        %2456 = vmatprep.mubr.bf16.mxu0 0
        %2457 = vmatmul.mubr.bf16.gmra.mrb[0].mxu0 %v2422
        %v2458 = vpop.f32.mrb[0].mxu0
        %v2459 = vadd.f32 %v2400, %v2458
        %v2460 = vpop.f32.mrb[0].mxu0
        %v2461 = vpop.f32.mrb[0].mxu0
        %v2462 = vpop.f32.mrb[0].mxu0
        %2463 = vdwg.mxu0
        %v2464 = vmin.f32 %v2459, 30.0
        %v2465 = vmul.f32 %v2464, 1.442695
        %v2466 = vpow.pop %v2465
        %v2467 = vadd.f32 %v2466, 2.0
        %v2468 = vrcp.pop %v2467
        %v2469 = vsub.f32 1.0, %v2468
        %v2470 = vmul.f32 %v2387, %v2469
        %v2471 = vsub.f32 0.0, %v2355
        %v2472 = vmul.f32 %v2471, 1.442695
        %v2473 = vpow.pop %v2472
        %v2474 = vadd.f32 %v2473, 1.0
        %v2475 = vrcp.pop %v2474
        %2477 = vrot.lane.b32.xlu0 %v2475, 80
        %v2478 = vpop.permute.xlu0 %2477
        %v2480 = vmul.f32 %v2470, %v2478
        %v2481 = vpack.c.bf16 %v2480, %v2480
        %v2482 = vld [vmem:[%s11] sm:$0xf]
        %v2483 = vld [vmem:[%s11 + $0x4] sm:$0xf]
        %v2484 = vld [vmem:[%s11 + $0x8] sm:$0xf]
        %v2485 = vld [vmem:[%s11 + $0xc] sm:$0xf]
        %v2486 = vld [vmem:[%s11 + $0x10] sm:$0xf]
        %v2487 = vld [vmem:[%s11 + $0x14] sm:$0xf]
        %v2494 = vunpack.c.l.b16 %v2482
        %v2495 = vunpack.c.l.b16 %v2483
        %v2496 = vunpack.c.l.b16 %v2484
        %v2497 = vunpack.c.l.b16 %v2485
        %v2498 = vunpack.c.l.b16 %v2486
        %v2499 = vunpack.c.l.b16 %v2487
        %v2500 = vpack.c.b16 %v2495, %v2494
        %v2501 = vpack.c.b16 %v2497, %v2496
        %v2502 = vpack.c.b16 %v2499, %v2498
        %v2507 = vsel %vm2420, %v2481, 0
        %2509 = vmatprep.subr.bf16.mxu0 0
        %2510 = vmatpush1.bf16.msra.mxu0 %v2500
        %2511 = vmatprep.subr.bf16.mxu0 0
        %2512 = vmatpush1.bf16.msra.mxu0 %v2501
        %2513 = vmatprep.subr.bf16.mxu0 0
        %2514 = vmatpush1.bf16.msra.mxu0 %v2502
        %2515 = vmatprep.subr.bf16.mxu0 0
        %2516 = vmatpush1.bf16.msra.mxu0 0
        %2517 = vmatprep.subr.bf16.mxu0 0
        %2518 = vmatpush1.bf16.msra.mxu0 0
        %2519 = vmatprep.subr.bf16.mxu0 0
        %2520 = vmatpush1.bf16.msra.mxu0 0
        %2521 = vmatprep.subr.bf16.mxu0 0
        %2522 = vmatpush1.bf16.msra.mxu0 0
        %2523 = vmatprep.subr.bf16.mxu0 0
        %2524 = vmatpush1.bf16.msra.mxu0 0
        %2525 = vmatprep.subr.bf16.mxu0 0
        %2526 = vmatpush1.bf16.msra.mxu0 0
        %2527 = vmatprep.subr.bf16.mxu0 0
        %2528 = vmatpush1.bf16.msra.mxu0 0
        %2529 = vmatprep.subr.bf16.mxu0 0
        %2530 = vmatpush1.bf16.msra.mxu0 0
        %2531 = vmatprep.subr.bf16.mxu0 0
        %2532 = vmatpush1.bf16.msra.mxu0 0
        %2533 = vmatprep.subr.bf16.mxu0 0
        %2534 = vmatpush1.bf16.msra.mxu0 0
        %2535 = vmatprep.subr.bf16.mxu0 0
        %2536 = vmatpush1.bf16.msra.mxu0 0
        %2537 = vmatprep.subr.bf16.mxu0 0
        %2538 = vmatpush1.bf16.msra.mxu0 0
        %2539 = vmatprep.subr.bf16.mxu0 0
        %2540 = vmatpush1.bf16.msra.mxu0 0
        %2541 = vmatprep.mubr.bf16.mxu0 0
        %2542 = vmatmul.mubr.bf16.gmra.mrb[0].mxu0 %v2507
        %v2543 = vpop.f32.mrb[0].mxu0
        %v2544 = vadd.f32 0.0, %v2543
        %v2545 = vpop.f32.mrb[0].mxu0
        %v2546 = vpop.f32.mrb[0].mxu0
        %v2547 = vpop.f32.mrb[0].mxu0
        %2548 = vdwg.mxu0
        %v2549 = vld [vmem:[%s12] sm:$0x1]
        %v2551 = vlaneseq
        %v2552 = vshrl.u32 %v2551, 7
        %v2553 = vsub.s32 0, %v2552
        %v2554 = vrot.slane %v2549, %v2553
        %v2556 = vmul.f32 %v2544, %v2554
        %v2557 = vadd.f32 %v2556, %v2266
        %s2558 = scalar_lea.vmem %s5, 1
        %v2559 = vld [vmem:[%s2558] sm:$0x1]
        %s2560 = scalar_lea.vmem %s6, 1
        %v2561 = vld [vmem:[%s2560] sm:$0x1]
        %v2562 = vsel %vm744, %v2557, 0.0
        %2563 = vadd.xlane.f32.xlu0 %v2562
        %v2564 = vpop.xlane.xlu0 %2563
        %v2565 = vmul.f32 %v2564, %v748
        %v2566 = vsub.f32 %v2557, %v2565
        %v2567 = vmul.f32 %v2566, %v2566
        %v2568 = vsel %vm744, %v2567, 0.0
        %2569 = vadd.xlane.f32.xlu0 %v2568
        %v2570 = vpop.xlane.xlu0 %2569
        %v2571 = vmul.f32 %v2570, %v748
        %v2572 = vadd.f32 %v2571, 1e-05
        %v2573 = vrsqrt.pop %v2572
        %v2574 = vmul.f32 %v2566, %v2573
        %v2576 = vlaneseq
        %v2577 = vshrl.u32 %v2576, 7
        %v2578 = vsub.s32 0, %v2577
        %v2579 = vrot.slane %v2559, %v2578
        %v2581 = vmul.f32 %v2574, %v2579
        %v2583 = vlaneseq
        %v2584 = vshrl.u32 %v2583, 7
        %v2585 = vsub.s32 0, %v2584
        %v2586 = vrot.slane %v2561, %v2585
        %v2588 = vadd.f32 %v2581, %v2586
        %v2589 = vpack.c.bf16 %v2588, %v2588
        %s2590 = scalar_lea.vmem %s7, 16
        %v2591 = vld [vmem:[%s2590] sm:$0xf]
        %v2592 = vld [vmem:[%s2590 + $0x4] sm:$0xf]
        %v2593 = vld [vmem:[%s2590 + $0x8] sm:$0xf]
        %v2594 = vld [vmem:[%s2590 + $0xc] sm:$0xf]
        %v2599 = vunpack.c.l.b16 %v2591
        %v2600 = vunpack.c.l.b16 %v2592
        %v2601 = vunpack.c.l.b16 %v2593
        %v2602 = vunpack.c.l.b16 %v2594
        %v2603 = vpack.c.b16 %v2600, %v2599
        %v2604 = vpack.c.b16 %v2602, %v2601
        %v2608 = vsel %vm744, %v2589, 0
        %2610 = vmatprep.subr.bf16.mxu0 0
        %2611 = vmatpush1.bf16.msra.mxu0 %v2603
        %2612 = vmatprep.subr.bf16.mxu0 0
        %2613 = vmatpush1.bf16.msra.mxu0 %v2604
        %2614 = vmatprep.subr.bf16.mxu0 0
        %2615 = vmatpush1.bf16.msra.mxu0 0
        %2616 = vmatprep.subr.bf16.mxu0 0
        %2617 = vmatpush1.bf16.msra.mxu0 0
        %2618 = vmatprep.subr.bf16.mxu0 0
        %2619 = vmatpush1.bf16.msra.mxu0 0
        %2620 = vmatprep.subr.bf16.mxu0 0
        %2621 = vmatpush1.bf16.msra.mxu0 0
        %2622 = vmatprep.subr.bf16.mxu0 0
        %2623 = vmatpush1.bf16.msra.mxu0 0
        %2624 = vmatprep.subr.bf16.mxu0 0
        %2625 = vmatpush1.bf16.msra.mxu0 0
        %2626 = vmatprep.subr.bf16.mxu0 0
        %2627 = vmatpush1.bf16.msra.mxu0 0
        %2628 = vmatprep.subr.bf16.mxu0 0
        %2629 = vmatpush1.bf16.msra.mxu0 0
        %2630 = vmatprep.subr.bf16.mxu0 0
        %2631 = vmatpush1.bf16.msra.mxu0 0
        %2632 = vmatprep.subr.bf16.mxu0 0
        %2633 = vmatpush1.bf16.msra.mxu0 0
        %2634 = vmatprep.subr.bf16.mxu0 0
        %2635 = vmatpush1.bf16.msra.mxu0 0
        %2636 = vmatprep.subr.bf16.mxu0 0
        %2637 = vmatpush1.bf16.msra.mxu0 0
        %2638 = vmatprep.subr.bf16.mxu0 0
        %2639 = vmatpush1.bf16.msra.mxu0 0
        %2640 = vmatprep.subr.bf16.mxu0 0
        %2641 = vmatpush1.bf16.msra.mxu0 0
        %2642 = vmatprep.mubr.bf16.mxu0 0
        %2643 = vmatmul.mubr.bf16.gmra.mrb[0].mxu0 %v2608
        %v2644 = vpop.f32.mrb[0].mxu0
        %v2645 = vadd.f32 0.0, %v2644
        %v2646 = vpop.f32.mrb[0].mxu0
        %v2647 = vpop.f32.mrb[0].mxu0
        %v2648 = vpop.f32.mrb[0].mxu0
        %2649 = vdwg.mxu0
        %v2650 = vrot.slane %v2645, 7
        %v2651 = vsel %vm2269, 0.0, %v2650
        %v2652 = vrot.slane %v2645, 1
        %v2653 = vsel %vm2270, 0.0, %v2652
        %s2654 = scalar_lea.vmem %s8, 4
        %v2655 = vld [vmem:[%s2654] sm:$0x7]
        %v2656 = vlaneseq
        %v2657 = vshrl.u32 %v2656, 7
        %v2658 = vsub.s32 0, %v2657
        %v2659 = vrot.slane %v2655, %v2658
        %v2660 = vmul.f32 %v2651, %v2659
        %v2661 = vlaneseq
        %v2662 = vshrl.u32 %v2661, 7
        %v2663 = vsub.s32 1, %v2662
        %v2664 = vrot.slane %v2655, %v2663
        %v2665 = vmul.f32 %v2645, %v2664
        %v2666 = vadd.f32 %v2660, %v2665
        %v2667 = vlaneseq
        %v2668 = vshrl.u32 %v2667, 7
        %v2669 = vsub.s32 2, %v2668
        %v2670 = vrot.slane %v2655, %v2669
        %v2671 = vmul.f32 %v2653, %v2670
        %v2672 = vadd.f32 %v2666, %v2671
        %v2673 = vsub.f32 0.0, %v2672
        %v2674 = vmul.f32 %v2673, 1.442695
        %v2675 = vpow.pop %v2674
        %v2676 = vadd.f32 %v2675, 1.0
        %v2677 = vrcp.pop %v2676
        %v2678 = vmul.f32 %v2672, %v2677
        %v2679 = vpack.c.bf16 %v2678, %v2678
        %s2680 = scalar_lea.vmem %s9, 24
        %v2681 = vld [vmem:[%s2680] sm:$0xf]
        %v2682 = vld [vmem:[%s2680 + $0x4] sm:$0xf]
        %v2683 = vld [vmem:[%s2680 + $0x8] sm:$0xf]
        %v2684 = vld [vmem:[%s2680 + $0xc] sm:$0xf]
        %v2685 = vld [vmem:[%s2680 + $0x10] sm:$0xf]
        %v2686 = vld [vmem:[%s2680 + $0x14] sm:$0xf]
        %s2687 = scalar_lea.vmem %s10, 1
        %v2688 = vld [vmem:[%s2687] sm:$0x1]
        %v2690 = vlaneseq
        %v2691 = vshrl.u32 %v2690, 7
        %v2692 = vsub.s32 0, %v2691
        %v2693 = vrot.slane %v2688, %v2692
        %v2701 = vunpack.c.l.b16 %v2681
        %v2702 = vunpack.c.l.b16 %v2682
        %v2703 = vunpack.c.l.b16 %v2683
        %v2704 = vunpack.c.l.b16 %v2684
        %v2705 = vunpack.c.l.b16 %v2685
        %v2706 = vunpack.c.l.b16 %v2686
        %v2707 = vpack.c.b16 %v2702, %v2701
        %v2708 = vpack.c.b16 %v2704, %v2703
        %v2709 = vpack.c.b16 %v2706, %v2705
        %v2714 = vsel %vm2420, %v2679, 0
        %2716 = vmatprep.subr.bf16.mxu0 0
        %2717 = vmatpush1.bf16.msra.mxu0 %v2707
        %2718 = vmatprep.subr.bf16.mxu0 0
        %2719 = vmatpush1.bf16.msra.mxu0 %v2708
        %2720 = vmatprep.subr.bf16.mxu0 0
        %2721 = vmatpush1.bf16.msra.mxu0 %v2709
        %2722 = vmatprep.subr.bf16.mxu0 0
        %2723 = vmatpush1.bf16.msra.mxu0 0
        %2724 = vmatprep.subr.bf16.mxu0 0
        %2725 = vmatpush1.bf16.msra.mxu0 0
        %2726 = vmatprep.subr.bf16.mxu0 0
        %2727 = vmatpush1.bf16.msra.mxu0 0
        %2728 = vmatprep.subr.bf16.mxu0 0
        %2729 = vmatpush1.bf16.msra.mxu0 0
        %2730 = vmatprep.subr.bf16.mxu0 0
        %2731 = vmatpush1.bf16.msra.mxu0 0
        %2732 = vmatprep.subr.bf16.mxu0 0
        %2733 = vmatpush1.bf16.msra.mxu0 0
        %2734 = vmatprep.subr.bf16.mxu0 0
        %2735 = vmatpush1.bf16.msra.mxu0 0
        %2736 = vmatprep.subr.bf16.mxu0 0
        %2737 = vmatpush1.bf16.msra.mxu0 0
        %2738 = vmatprep.subr.bf16.mxu0 0
        %2739 = vmatpush1.bf16.msra.mxu0 0
        %2740 = vmatprep.subr.bf16.mxu0 0
        %2741 = vmatpush1.bf16.msra.mxu0 0
        %2742 = vmatprep.subr.bf16.mxu0 0
        %2743 = vmatpush1.bf16.msra.mxu0 0
        %2744 = vmatprep.subr.bf16.mxu0 0
        %2745 = vmatpush1.bf16.msra.mxu0 0
        %2746 = vmatprep.subr.bf16.mxu0 0
        %2747 = vmatpush1.bf16.msra.mxu0 0
        %2748 = vmatprep.mubr.bf16.mxu0 0
        %2749 = vmatmul.mubr.bf16.gmra.mrb[0].mxu0 %v2714
        %v2750 = vpop.f32.mrb[0].mxu0
        %v2751 = vadd.f32 %v2693, %v2750
        %v2752 = vpop.f32.mrb[0].mxu0
        %v2753 = vpop.f32.mrb[0].mxu0
        %v2754 = vpop.f32.mrb[0].mxu0
        %2755 = vdwg.mxu0
        %v2756 = vmin.f32 %v2751, 30.0
        %v2757 = vmul.f32 %v2756, 1.442695
        %v2758 = vpow.pop %v2757
        %v2759 = vadd.f32 %v2758, 2.0
        %v2760 = vrcp.pop %v2759
        %v2761 = vsub.f32 1.0, %v2760
        %v2762 = vmul.f32 %v2678, %v2761
        %v2763 = vsub.f32 0.0, %v2645
        %v2764 = vmul.f32 %v2763, 1.442695
        %v2765 = vpow.pop %v2764
        %v2766 = vadd.f32 %v2765, 1.0
        %v2767 = vrcp.pop %v2766
        %2769 = vrot.lane.b32.xlu0 %v2767, 80
        %v2770 = vpop.permute.xlu0 %2769
        %v2772 = vmul.f32 %v2762, %v2770
        %v2773 = vpack.c.bf16 %v2772, %v2772
        %s2774 = scalar_lea.vmem %s11, 24
        %v2775 = vld [vmem:[%s2774] sm:$0xf]
        %v2776 = vld [vmem:[%s2774 + $0x4] sm:$0xf]
        %v2777 = vld [vmem:[%s2774 + $0x8] sm:$0xf]
        %v2778 = vld [vmem:[%s2774 + $0xc] sm:$0xf]
        %v2779 = vld [vmem:[%s2774 + $0x10] sm:$0xf]
        %v2780 = vld [vmem:[%s2774 + $0x14] sm:$0xf]
        %v2787 = vunpack.c.l.b16 %v2775
        %v2788 = vunpack.c.l.b16 %v2776
        %v2789 = vunpack.c.l.b16 %v2777
        %v2790 = vunpack.c.l.b16 %v2778
        %v2791 = vunpack.c.l.b16 %v2779
        %v2792 = vunpack.c.l.b16 %v2780
        %v2793 = vpack.c.b16 %v2788, %v2787
        %v2794 = vpack.c.b16 %v2790, %v2789
        %v2795 = vpack.c.b16 %v2792, %v2791
        %v2800 = vsel %vm2420, %v2773, 0
        %2802 = vmatprep.subr.bf16.mxu0 0
        %2803 = vmatpush1.bf16.msra.mxu0 %v2793
        %2804 = vmatprep.subr.bf16.mxu0 0
        %2805 = vmatpush1.bf16.msra.mxu0 %v2794
        %2806 = vmatprep.subr.bf16.mxu0 0
        %2807 = vmatpush1.bf16.msra.mxu0 %v2795
        %2808 = vmatprep.subr.bf16.mxu0 0
        %2809 = vmatpush1.bf16.msra.mxu0 0
        %2810 = vmatprep.subr.bf16.mxu0 0
        %2811 = vmatpush1.bf16.msra.mxu0 0
        %2812 = vmatprep.subr.bf16.mxu0 0
        %2813 = vmatpush1.bf16.msra.mxu0 0
        %2814 = vmatprep.subr.bf16.mxu0 0
        %2815 = vmatpush1.bf16.msra.mxu0 0
        %2816 = vmatprep.subr.bf16.mxu0 0
        %2817 = vmatpush1.bf16.msra.mxu0 0
        %2818 = vmatprep.subr.bf16.mxu0 0
        %2819 = vmatpush1.bf16.msra.mxu0 0
        %2820 = vmatprep.subr.bf16.mxu0 0
        %2821 = vmatpush1.bf16.msra.mxu0 0
        %2822 = vmatprep.subr.bf16.mxu0 0
        %2823 = vmatpush1.bf16.msra.mxu0 0
        %2824 = vmatprep.subr.bf16.mxu0 0
        %2825 = vmatpush1.bf16.msra.mxu0 0
        %2826 = vmatprep.subr.bf16.mxu0 0
        %2827 = vmatpush1.bf16.msra.mxu0 0
        %2828 = vmatprep.subr.bf16.mxu0 0
        %2829 = vmatpush1.bf16.msra.mxu0 0
        %2830 = vmatprep.subr.bf16.mxu0 0
        %2831 = vmatpush1.bf16.msra.mxu0 0
        %2832 = vmatprep.subr.bf16.mxu0 0
        %2833 = vmatpush1.bf16.msra.mxu0 0
        %2834 = vmatprep.mubr.bf16.mxu0 0
        %2835 = vmatmul.mubr.bf16.gmra.mrb[0].mxu0 %v2800
        %v2836 = vpop.f32.mrb[0].mxu0
        %v2837 = vadd.f32 0.0, %v2836
        %v2838 = vpop.f32.mrb[0].mxu0
        %v2839 = vpop.f32.mrb[0].mxu0
        %v2840 = vpop.f32.mrb[0].mxu0
        %2841 = vdwg.mxu0
        %s2842 = scalar_lea.vmem %s12, 1
        %v2843 = vld [vmem:[%s2842] sm:$0x1]
        %v2845 = vlaneseq
        %v2846 = vshrl.u32 %v2845, 7
        %v2847 = vsub.s32 0, %v2846
        %v2848 = vrot.slane %v2843, %v2847
        %v2850 = vmul.f32 %v2837, %v2848
        %v2851 = vadd.f32 %v2850, %v2557
        %s2852 = scalar_lea.vmem %s5, 2
        %v2853 = vld [vmem:[%s2852] sm:$0x1]
        %s2854 = scalar_lea.vmem %s6, 2
        %v2855 = vld [vmem:[%s2854] sm:$0x1]
        %v2856 = vsel %vm744, %v2851, 0.0
        %2857 = vadd.xlane.f32.xlu0 %v2856
        %v2858 = vpop.xlane.xlu0 %2857
        %v2859 = vmul.f32 %v2858, %v748
        %v2860 = vsub.f32 %v2851, %v2859
        %v2861 = vmul.f32 %v2860, %v2860
        %v2862 = vsel %vm744, %v2861, 0.0
        %2863 = vadd.xlane.f32.xlu0 %v2862
        %v2864 = vpop.xlane.xlu0 %2863
        %v2865 = vmul.f32 %v2864, %v748
        %v2866 = vadd.f32 %v2865, 1e-05
        %v2867 = vrsqrt.pop %v2866
        %v2868 = vmul.f32 %v2860, %v2867
        %v2870 = vlaneseq
        %v2871 = vshrl.u32 %v2870, 7
        %v2872 = vsub.s32 0, %v2871
        %v2873 = vrot.slane %v2853, %v2872
        %v2875 = vmul.f32 %v2868, %v2873
        %v2877 = vlaneseq
        %v2878 = vshrl.u32 %v2877, 7
        %v2879 = vsub.s32 0, %v2878
        %v2880 = vrot.slane %v2855, %v2879
        %v2882 = vadd.f32 %v2875, %v2880
        %v2883 = vpack.c.bf16 %v2882, %v2882
        %s2884 = scalar_lea.vmem %s7, 32
        %v2885 = vld [vmem:[%s2884] sm:$0xf]
        %v2886 = vld [vmem:[%s2884 + $0x4] sm:$0xf]
        %v2887 = vld [vmem:[%s2884 + $0x8] sm:$0xf]
        %v2888 = vld [vmem:[%s2884 + $0xc] sm:$0xf]
        %v2893 = vunpack.c.l.b16 %v2885
        %v2894 = vunpack.c.l.b16 %v2886
        %v2895 = vunpack.c.l.b16 %v2887
        %v2896 = vunpack.c.l.b16 %v2888
        %v2897 = vpack.c.b16 %v2894, %v2893
        %v2898 = vpack.c.b16 %v2896, %v2895
        %v2902 = vsel %vm744, %v2883, 0
        %2904 = vmatprep.subr.bf16.mxu0 0
        %2905 = vmatpush1.bf16.msra.mxu0 %v2897
        %2906 = vmatprep.subr.bf16.mxu0 0
        %2907 = vmatpush1.bf16.msra.mxu0 %v2898
        %2908 = vmatprep.subr.bf16.mxu0 0
        %2909 = vmatpush1.bf16.msra.mxu0 0
        %2910 = vmatprep.subr.bf16.mxu0 0
        %2911 = vmatpush1.bf16.msra.mxu0 0
        %2912 = vmatprep.subr.bf16.mxu0 0
        %2913 = vmatpush1.bf16.msra.mxu0 0
        %2914 = vmatprep.subr.bf16.mxu0 0
        %2915 = vmatpush1.bf16.msra.mxu0 0
        %2916 = vmatprep.subr.bf16.mxu0 0
        %2917 = vmatpush1.bf16.msra.mxu0 0
        %2918 = vmatprep.subr.bf16.mxu0 0
        %2919 = vmatpush1.bf16.msra.mxu0 0
        %2920 = vmatprep.subr.bf16.mxu0 0
        %2921 = vmatpush1.bf16.msra.mxu0 0
        %2922 = vmatprep.subr.bf16.mxu0 0
        %2923 = vmatpush1.bf16.msra.mxu0 0
        %2924 = vmatprep.subr.bf16.mxu0 0
        %2925 = vmatpush1.bf16.msra.mxu0 0
        %2926 = vmatprep.subr.bf16.mxu0 0
        %2927 = vmatpush1.bf16.msra.mxu0 0
        %2928 = vmatprep.subr.bf16.mxu0 0
        %2929 = vmatpush1.bf16.msra.mxu0 0
        %2930 = vmatprep.subr.bf16.mxu0 0
        %2931 = vmatpush1.bf16.msra.mxu0 0
        %2932 = vmatprep.subr.bf16.mxu0 0
        %2933 = vmatpush1.bf16.msra.mxu0 0
        %2934 = vmatprep.subr.bf16.mxu0 0
        %2935 = vmatpush1.bf16.msra.mxu0 0
        %2936 = vmatprep.mubr.bf16.mxu0 0
        %2937 = vmatmul.mubr.bf16.gmra.mrb[0].mxu0 %v2902
        %v2938 = vpop.f32.mrb[0].mxu0
        %v2939 = vadd.f32 0.0, %v2938
        %v2940 = vpop.f32.mrb[0].mxu0
        %v2941 = vpop.f32.mrb[0].mxu0
        %v2942 = vpop.f32.mrb[0].mxu0
        %2943 = vdwg.mxu0
        %v2944 = vrot.slane %v2939, 7
        %v2945 = vsel %vm2269, 0.0, %v2944
        %v2946 = vrot.slane %v2939, 1
        %v2947 = vsel %vm2270, 0.0, %v2946
        %s2948 = scalar_lea.vmem %s8, 8
        %v2949 = vld [vmem:[%s2948] sm:$0x7]
        %v2950 = vlaneseq
        %v2951 = vshrl.u32 %v2950, 7
        %v2952 = vsub.s32 0, %v2951
        %v2953 = vrot.slane %v2949, %v2952
        %v2954 = vmul.f32 %v2945, %v2953
        %v2955 = vlaneseq
        %v2956 = vshrl.u32 %v2955, 7
        %v2957 = vsub.s32 1, %v2956
        %v2958 = vrot.slane %v2949, %v2957
        %v2959 = vmul.f32 %v2939, %v2958
        %v2960 = vadd.f32 %v2954, %v2959
        %v2961 = vlaneseq
        %v2962 = vshrl.u32 %v2961, 7
        %v2963 = vsub.s32 2, %v2962
        %v2964 = vrot.slane %v2949, %v2963
        %v2965 = vmul.f32 %v2947, %v2964
        %v2966 = vadd.f32 %v2960, %v2965
        %v2967 = vsub.f32 0.0, %v2966
        %v2968 = vmul.f32 %v2967, 1.442695
        %v2969 = vpow.pop %v2968
        %v2970 = vadd.f32 %v2969, 1.0
        %v2971 = vrcp.pop %v2970
        %v2972 = vmul.f32 %v2966, %v2971
        %v2973 = vpack.c.bf16 %v2972, %v2972
        %s2974 = scalar_lea.vmem %s9, 48
        %v2975 = vld [vmem:[%s2974] sm:$0xf]
        %v2976 = vld [vmem:[%s2974 + $0x4] sm:$0xf]
        %v2977 = vld [vmem:[%s2974 + $0x8] sm:$0xf]
        %v2978 = vld [vmem:[%s2974 + $0xc] sm:$0xf]
        %v2979 = vld [vmem:[%s2974 + $0x10] sm:$0xf]
        %v2980 = vld [vmem:[%s2974 + $0x14] sm:$0xf]
        %s2981 = scalar_lea.vmem %s10, 2
        %v2982 = vld [vmem:[%s2981] sm:$0x1]
        %v2984 = vlaneseq
        %v2985 = vshrl.u32 %v2984, 7
        %v2986 = vsub.s32 0, %v2985
        %v2987 = vrot.slane %v2982, %v2986
        %v2995 = vunpack.c.l.b16 %v2975
        %v2996 = vunpack.c.l.b16 %v2976
        %v2997 = vunpack.c.l.b16 %v2977
        %v2998 = vunpack.c.l.b16 %v2978
        %v2999 = vunpack.c.l.b16 %v2979
        %v3000 = vunpack.c.l.b16 %v2980
        %v3001 = vpack.c.b16 %v2996, %v2995
        %v3002 = vpack.c.b16 %v2998, %v2997
        %v3003 = vpack.c.b16 %v3000, %v2999
        %v3008 = vsel %vm2420, %v2973, 0
        %3010 = vmatprep.subr.bf16.mxu0 0
        %3011 = vmatpush1.bf16.msra.mxu0 %v3001
        %3012 = vmatprep.subr.bf16.mxu0 0
        %3013 = vmatpush1.bf16.msra.mxu0 %v3002
        %3014 = vmatprep.subr.bf16.mxu0 0
        %3015 = vmatpush1.bf16.msra.mxu0 %v3003
        %3016 = vmatprep.subr.bf16.mxu0 0
        %3017 = vmatpush1.bf16.msra.mxu0 0
        %3018 = vmatprep.subr.bf16.mxu0 0
        %3019 = vmatpush1.bf16.msra.mxu0 0
        %3020 = vmatprep.subr.bf16.mxu0 0
        %3021 = vmatpush1.bf16.msra.mxu0 0
        %3022 = vmatprep.subr.bf16.mxu0 0
        %3023 = vmatpush1.bf16.msra.mxu0 0
        %3024 = vmatprep.subr.bf16.mxu0 0
        %3025 = vmatpush1.bf16.msra.mxu0 0
        %3026 = vmatprep.subr.bf16.mxu0 0
        %3027 = vmatpush1.bf16.msra.mxu0 0
        %3028 = vmatprep.subr.bf16.mxu0 0
        %3029 = vmatpush1.bf16.msra.mxu0 0
        %3030 = vmatprep.subr.bf16.mxu0 0
        %3031 = vmatpush1.bf16.msra.mxu0 0
        %3032 = vmatprep.subr.bf16.mxu0 0
        %3033 = vmatpush1.bf16.msra.mxu0 0
        %3034 = vmatprep.subr.bf16.mxu0 0
        %3035 = vmatpush1.bf16.msra.mxu0 0
        %3036 = vmatprep.subr.bf16.mxu0 0
        %3037 = vmatpush1.bf16.msra.mxu0 0
        %3038 = vmatprep.subr.bf16.mxu0 0
        %3039 = vmatpush1.bf16.msra.mxu0 0
        %3040 = vmatprep.subr.bf16.mxu0 0
        %3041 = vmatpush1.bf16.msra.mxu0 0
        %3042 = vmatprep.mubr.bf16.mxu0 0
        %3043 = vmatmul.mubr.bf16.gmra.mrb[0].mxu0 %v3008
        %v3044 = vpop.f32.mrb[0].mxu0
        %v3045 = vadd.f32 %v2987, %v3044
        %v3046 = vpop.f32.mrb[0].mxu0
        %v3047 = vpop.f32.mrb[0].mxu0
        %v3048 = vpop.f32.mrb[0].mxu0
        %3049 = vdwg.mxu0
        %v3050 = vmin.f32 %v3045, 30.0
        %v3051 = vmul.f32 %v3050, 1.442695
        %v3052 = vpow.pop %v3051
        %v3053 = vadd.f32 %v3052, 2.0
        %v3054 = vrcp.pop %v3053
        %v3055 = vsub.f32 1.0, %v3054
        %v3056 = vmul.f32 %v2972, %v3055
        %v3057 = vsub.f32 0.0, %v2939
        %v3058 = vmul.f32 %v3057, 1.442695
        %v3059 = vpow.pop %v3058
        %v3060 = vadd.f32 %v3059, 1.0
        %v3061 = vrcp.pop %v3060
        %3063 = vrot.lane.b32.xlu0 %v3061, 80
        %v3064 = vpop.permute.xlu0 %3063
        %v3066 = vmul.f32 %v3056, %v3064
        %v3067 = vpack.c.bf16 %v3066, %v3066
        %s3068 = scalar_lea.vmem %s11, 48
        %v3069 = vld [vmem:[%s3068] sm:$0xf]
        %v3070 = vld [vmem:[%s3068 + $0x4] sm:$0xf]
        %v3071 = vld [vmem:[%s3068 + $0x8] sm:$0xf]
        %v3072 = vld [vmem:[%s3068 + $0xc] sm:$0xf]
        %v3073 = vld [vmem:[%s3068 + $0x10] sm:$0xf]
        %v3074 = vld [vmem:[%s3068 + $0x14] sm:$0xf]
        %v3081 = vunpack.c.l.b16 %v3069
        %v3082 = vunpack.c.l.b16 %v3070
        %v3083 = vunpack.c.l.b16 %v3071
        %v3084 = vunpack.c.l.b16 %v3072
        %v3085 = vunpack.c.l.b16 %v3073
        %v3086 = vunpack.c.l.b16 %v3074
        %v3087 = vpack.c.b16 %v3082, %v3081
        %v3088 = vpack.c.b16 %v3084, %v3083
        %v3089 = vpack.c.b16 %v3086, %v3085
        %v3094 = vsel %vm2420, %v3067, 0
        %3096 = vmatprep.subr.bf16.mxu0 0
        %3097 = vmatpush1.bf16.msra.mxu0 %v3087
        %3098 = vmatprep.subr.bf16.mxu0 0
        %3099 = vmatpush1.bf16.msra.mxu0 %v3088
        %3100 = vmatprep.subr.bf16.mxu0 0
        %3101 = vmatpush1.bf16.msra.mxu0 %v3089
        %3102 = vmatprep.subr.bf16.mxu0 0
        %3103 = vmatpush1.bf16.msra.mxu0 0
        %3104 = vmatprep.subr.bf16.mxu0 0
        %3105 = vmatpush1.bf16.msra.mxu0 0
        %3106 = vmatprep.subr.bf16.mxu0 0
        %3107 = vmatpush1.bf16.msra.mxu0 0
        %3108 = vmatprep.subr.bf16.mxu0 0
        %3109 = vmatpush1.bf16.msra.mxu0 0
        %3110 = vmatprep.subr.bf16.mxu0 0
        %3111 = vmatpush1.bf16.msra.mxu0 0
        %3112 = vmatprep.subr.bf16.mxu0 0
        %3113 = vmatpush1.bf16.msra.mxu0 0
        %3114 = vmatprep.subr.bf16.mxu0 0
        %3115 = vmatpush1.bf16.msra.mxu0 0
        %3116 = vmatprep.subr.bf16.mxu0 0
        %3117 = vmatpush1.bf16.msra.mxu0 0
        %3118 = vmatprep.subr.bf16.mxu0 0
        %3119 = vmatpush1.bf16.msra.mxu0 0
        %3120 = vmatprep.subr.bf16.mxu0 0
        %3121 = vmatpush1.bf16.msra.mxu0 0
        %3122 = vmatprep.subr.bf16.mxu0 0
        %3123 = vmatpush1.bf16.msra.mxu0 0
        %3124 = vmatprep.subr.bf16.mxu0 0
        %3125 = vmatpush1.bf16.msra.mxu0 0
        %3126 = vmatprep.subr.bf16.mxu0 0
        %3127 = vmatpush1.bf16.msra.mxu0 0
        %3128 = vmatprep.mubr.bf16.mxu0 0
        %3129 = vmatmul.mubr.bf16.gmra.mrb[0].mxu0 %v3094
        %v3130 = vpop.f32.mrb[0].mxu0
        %v3131 = vadd.f32 0.0, %v3130
        %v3132 = vpop.f32.mrb[0].mxu0
        %v3133 = vpop.f32.mrb[0].mxu0
        %v3134 = vpop.f32.mrb[0].mxu0
        %3135 = vdwg.mxu0
        %s3136 = scalar_lea.vmem %s12, 2
        %v3137 = vld [vmem:[%s3136] sm:$0x1]
        %v3139 = vlaneseq
        %v3140 = vshrl.u32 %v3139, 7
        %v3141 = vsub.s32 0, %v3140
        %v3142 = vrot.slane %v3137, %v3141
        %v3144 = vmul.f32 %v3131, %v3142
        %v3145 = vadd.f32 %v3144, %v2851
        %s3146 = scalar_lea.vmem %s5, 3
        %v3147 = vld [vmem:[%s3146] sm:$0x1]
        %s3148 = scalar_lea.vmem %s6, 3
        %v3149 = vld [vmem:[%s3148] sm:$0x1]
        %v3150 = vsel %vm744, %v3145, 0.0
        %3151 = vadd.xlane.f32.xlu0 %v3150
        %v3152 = vpop.xlane.xlu0 %3151
        %v3153 = vmul.f32 %v3152, %v748
        %v3154 = vsub.f32 %v3145, %v3153
        %v3155 = vmul.f32 %v3154, %v3154
        %v3156 = vsel %vm744, %v3155, 0.0
        %3157 = vadd.xlane.f32.xlu0 %v3156
        %v3158 = vpop.xlane.xlu0 %3157
        %v3159 = vmul.f32 %v3158, %v748
        %v3160 = vadd.f32 %v3159, 1e-05
        %v3161 = vrsqrt.pop %v3160
        %v3162 = vmul.f32 %v3154, %v3161
        %v3164 = vlaneseq
        %v3165 = vshrl.u32 %v3164, 7
        %v3166 = vsub.s32 0, %v3165
        %v3167 = vrot.slane %v3147, %v3166
        %v3169 = vmul.f32 %v3162, %v3167
        %v3171 = vlaneseq
        %v3172 = vshrl.u32 %v3171, 7
        %v3173 = vsub.s32 0, %v3172
        %v3174 = vrot.slane %v3149, %v3173
        %v3176 = vadd.f32 %v3169, %v3174
        %v3177 = vpack.c.bf16 %v3176, %v3176
        %s3178 = scalar_lea.vmem %s7, 48
        %v3179 = vld [vmem:[%s3178] sm:$0xf]
        %v3180 = vld [vmem:[%s3178 + $0x4] sm:$0xf]
        %v3181 = vld [vmem:[%s3178 + $0x8] sm:$0xf]
        %v3182 = vld [vmem:[%s3178 + $0xc] sm:$0xf]
        %v3187 = vunpack.c.l.b16 %v3179
        %v3188 = vunpack.c.l.b16 %v3180
        %v3189 = vunpack.c.l.b16 %v3181
        %v3190 = vunpack.c.l.b16 %v3182
        %v3191 = vpack.c.b16 %v3188, %v3187
        %v3192 = vpack.c.b16 %v3190, %v3189
        %v3196 = vsel %vm744, %v3177, 0
        %3198 = vmatprep.subr.bf16.mxu0 0
        %3199 = vmatpush1.bf16.msra.mxu0 %v3191
        %3200 = vmatprep.subr.bf16.mxu0 0
        %3201 = vmatpush1.bf16.msra.mxu0 %v3192
        %3202 = vmatprep.subr.bf16.mxu0 0
        %3203 = vmatpush1.bf16.msra.mxu0 0
        %3204 = vmatprep.subr.bf16.mxu0 0
        %3205 = vmatpush1.bf16.msra.mxu0 0
        %3206 = vmatprep.subr.bf16.mxu0 0
        %3207 = vmatpush1.bf16.msra.mxu0 0
        %3208 = vmatprep.subr.bf16.mxu0 0
        %3209 = vmatpush1.bf16.msra.mxu0 0
        %3210 = vmatprep.subr.bf16.mxu0 0
        %3211 = vmatpush1.bf16.msra.mxu0 0
        %3212 = vmatprep.subr.bf16.mxu0 0
        %3213 = vmatpush1.bf16.msra.mxu0 0
        %3214 = vmatprep.subr.bf16.mxu0 0
        %3215 = vmatpush1.bf16.msra.mxu0 0
        %3216 = vmatprep.subr.bf16.mxu0 0
        %3217 = vmatpush1.bf16.msra.mxu0 0
        %3218 = vmatprep.subr.bf16.mxu0 0
        %3219 = vmatpush1.bf16.msra.mxu0 0
        %3220 = vmatprep.subr.bf16.mxu0 0
        %3221 = vmatpush1.bf16.msra.mxu0 0
        %3222 = vmatprep.subr.bf16.mxu0 0
        %3223 = vmatpush1.bf16.msra.mxu0 0
        %3224 = vmatprep.subr.bf16.mxu0 0
        %3225 = vmatpush1.bf16.msra.mxu0 0
        %3226 = vmatprep.subr.bf16.mxu0 0
        %3227 = vmatpush1.bf16.msra.mxu0 0
        %3228 = vmatprep.subr.bf16.mxu0 0
        %3229 = vmatpush1.bf16.msra.mxu0 0
        %3230 = vmatprep.mubr.bf16.mxu0 0
        %3231 = vmatmul.mubr.bf16.gmra.mrb[0].mxu0 %v3196
        %v3232 = vpop.f32.mrb[0].mxu0
        %v3233 = vadd.f32 0.0, %v3232
        %v3234 = vpop.f32.mrb[0].mxu0
        %v3235 = vpop.f32.mrb[0].mxu0
        %v3236 = vpop.f32.mrb[0].mxu0
        %3237 = vdwg.mxu0
        %v3238 = vrot.slane %v3233, 7
        %v3239 = vsel %vm2269, 0.0, %v3238
        %v3240 = vrot.slane %v3233, 1
        %v3241 = vsel %vm2270, 0.0, %v3240
        %s3242 = scalar_lea.vmem %s8, 12
        %v3243 = vld [vmem:[%s3242] sm:$0x7]
        %v3244 = vlaneseq
        %v3245 = vshrl.u32 %v3244, 7
        %v3246 = vsub.s32 0, %v3245
        %v3247 = vrot.slane %v3243, %v3246
        %v3248 = vmul.f32 %v3239, %v3247
        %v3249 = vlaneseq
        %v3250 = vshrl.u32 %v3249, 7
        %v3251 = vsub.s32 1, %v3250
        %v3252 = vrot.slane %v3243, %v3251
        %v3253 = vmul.f32 %v3233, %v3252
        %v3254 = vadd.f32 %v3248, %v3253
        %v3255 = vlaneseq
        %v3256 = vshrl.u32 %v3255, 7
        %v3257 = vsub.s32 2, %v3256
        %v3258 = vrot.slane %v3243, %v3257
        %v3259 = vmul.f32 %v3241, %v3258
        %v3260 = vadd.f32 %v3254, %v3259
        %v3261 = vsub.f32 0.0, %v3260
        %v3262 = vmul.f32 %v3261, 1.442695
        %v3263 = vpow.pop %v3262
        %v3264 = vadd.f32 %v3263, 1.0
        %v3265 = vrcp.pop %v3264
        %v3266 = vmul.f32 %v3260, %v3265
        %v3267 = vpack.c.bf16 %v3266, %v3266
        %s3268 = scalar_lea.vmem %s9, 72
        %v3269 = vld [vmem:[%s3268] sm:$0xf]
        %v3270 = vld [vmem:[%s3268 + $0x4] sm:$0xf]
        %v3271 = vld [vmem:[%s3268 + $0x8] sm:$0xf]
        %v3272 = vld [vmem:[%s3268 + $0xc] sm:$0xf]
        %v3273 = vld [vmem:[%s3268 + $0x10] sm:$0xf]
        %v3274 = vld [vmem:[%s3268 + $0x14] sm:$0xf]
        %s3275 = scalar_lea.vmem %s10, 3
        %v3276 = vld [vmem:[%s3275] sm:$0x1]
        %v3278 = vlaneseq
        %v3279 = vshrl.u32 %v3278, 7
        %v3280 = vsub.s32 0, %v3279
        %v3281 = vrot.slane %v3276, %v3280
        %v3289 = vunpack.c.l.b16 %v3269
        %v3290 = vunpack.c.l.b16 %v3270
        %v3291 = vunpack.c.l.b16 %v3271
        %v3292 = vunpack.c.l.b16 %v3272
        %v3293 = vunpack.c.l.b16 %v3273
        %v3294 = vunpack.c.l.b16 %v3274
        %v3295 = vpack.c.b16 %v3290, %v3289
        %v3296 = vpack.c.b16 %v3292, %v3291
        %v3297 = vpack.c.b16 %v3294, %v3293
        %v3302 = vsel %vm2420, %v3267, 0
        %3304 = vmatprep.subr.bf16.mxu0 0
        %3305 = vmatpush1.bf16.msra.mxu0 %v3295
        %3306 = vmatprep.subr.bf16.mxu0 0
        %3307 = vmatpush1.bf16.msra.mxu0 %v3296
        %3308 = vmatprep.subr.bf16.mxu0 0
        %3309 = vmatpush1.bf16.msra.mxu0 %v3297
        %3310 = vmatprep.subr.bf16.mxu0 0
        %3311 = vmatpush1.bf16.msra.mxu0 0
        %3312 = vmatprep.subr.bf16.mxu0 0
        %3313 = vmatpush1.bf16.msra.mxu0 0
        %3314 = vmatprep.subr.bf16.mxu0 0
        %3315 = vmatpush1.bf16.msra.mxu0 0
        %3316 = vmatprep.subr.bf16.mxu0 0
        %3317 = vmatpush1.bf16.msra.mxu0 0
        %3318 = vmatprep.subr.bf16.mxu0 0
        %3319 = vmatpush1.bf16.msra.mxu0 0
        %3320 = vmatprep.subr.bf16.mxu0 0
        %3321 = vmatpush1.bf16.msra.mxu0 0
        %3322 = vmatprep.subr.bf16.mxu0 0
        %3323 = vmatpush1.bf16.msra.mxu0 0
        %3324 = vmatprep.subr.bf16.mxu0 0
        %3325 = vmatpush1.bf16.msra.mxu0 0
        %3326 = vmatprep.subr.bf16.mxu0 0
        %3327 = vmatpush1.bf16.msra.mxu0 0
        %3328 = vmatprep.subr.bf16.mxu0 0
        %3329 = vmatpush1.bf16.msra.mxu0 0
        %3330 = vmatprep.subr.bf16.mxu0 0
        %3331 = vmatpush1.bf16.msra.mxu0 0
        %3332 = vmatprep.subr.bf16.mxu0 0
        %3333 = vmatpush1.bf16.msra.mxu0 0
        %3334 = vmatprep.subr.bf16.mxu0 0
        %3335 = vmatpush1.bf16.msra.mxu0 0
        %3336 = vmatprep.mubr.bf16.mxu0 0
        %3337 = vmatmul.mubr.bf16.gmra.mrb[0].mxu0 %v3302
        %v3338 = vpop.f32.mrb[0].mxu0
        %v3339 = vadd.f32 %v3281, %v3338
        %v3340 = vpop.f32.mrb[0].mxu0
        %v3341 = vpop.f32.mrb[0].mxu0
        %v3342 = vpop.f32.mrb[0].mxu0
        %3343 = vdwg.mxu0
        %v3344 = vmin.f32 %v3339, 30.0
        %v3345 = vmul.f32 %v3344, 1.442695
        %v3346 = vpow.pop %v3345
        %v3347 = vadd.f32 %v3346, 2.0
        %v3348 = vrcp.pop %v3347
        %v3349 = vsub.f32 1.0, %v3348
        %v3350 = vmul.f32 %v3266, %v3349
        %v3351 = vsub.f32 0.0, %v3233
        %v3352 = vmul.f32 %v3351, 1.442695
        %v3353 = vpow.pop %v3352
        %v3354 = vadd.f32 %v3353, 1.0
        %v3355 = vrcp.pop %v3354
        %3357 = vrot.lane.b32.xlu0 %v3355, 80
        %v3358 = vpop.permute.xlu0 %3357
        %v3360 = vmul.f32 %v3350, %v3358
        %v3361 = vpack.c.bf16 %v3360, %v3360
        %s3362 = scalar_lea.vmem %s11, 72
        %v3363 = vld [vmem:[%s3362] sm:$0xf]
        %v3364 = vld [vmem:[%s3362 + $0x4] sm:$0xf]
        %v3365 = vld [vmem:[%s3362 + $0x8] sm:$0xf]
        %v3366 = vld [vmem:[%s3362 + $0xc] sm:$0xf]
        %v3367 = vld [vmem:[%s3362 + $0x10] sm:$0xf]
        %v3368 = vld [vmem:[%s3362 + $0x14] sm:$0xf]
        %v3375 = vunpack.c.l.b16 %v3363
        %v3376 = vunpack.c.l.b16 %v3364
        %v3377 = vunpack.c.l.b16 %v3365
        %v3378 = vunpack.c.l.b16 %v3366
        %v3379 = vunpack.c.l.b16 %v3367
        %v3380 = vunpack.c.l.b16 %v3368
        %v3381 = vpack.c.b16 %v3376, %v3375
        %v3382 = vpack.c.b16 %v3378, %v3377
        %v3383 = vpack.c.b16 %v3380, %v3379
        %v3388 = vsel %vm2420, %v3361, 0
        %3390 = vmatprep.subr.bf16.mxu0 0
        %3391 = vmatpush1.bf16.msra.mxu0 %v3381
        %3392 = vmatprep.subr.bf16.mxu0 0
        %3393 = vmatpush1.bf16.msra.mxu0 %v3382
        %3394 = vmatprep.subr.bf16.mxu0 0
        %3395 = vmatpush1.bf16.msra.mxu0 %v3383
        %3396 = vmatprep.subr.bf16.mxu0 0
        %3397 = vmatpush1.bf16.msra.mxu0 0
        %3398 = vmatprep.subr.bf16.mxu0 0
        %3399 = vmatpush1.bf16.msra.mxu0 0
        %3400 = vmatprep.subr.bf16.mxu0 0
        %3401 = vmatpush1.bf16.msra.mxu0 0
        %3402 = vmatprep.subr.bf16.mxu0 0
        %3403 = vmatpush1.bf16.msra.mxu0 0
        %3404 = vmatprep.subr.bf16.mxu0 0
        %3405 = vmatpush1.bf16.msra.mxu0 0
        %3406 = vmatprep.subr.bf16.mxu0 0
        %3407 = vmatpush1.bf16.msra.mxu0 0
        %3408 = vmatprep.subr.bf16.mxu0 0
        %3409 = vmatpush1.bf16.msra.mxu0 0
        %3410 = vmatprep.subr.bf16.mxu0 0
        %3411 = vmatpush1.bf16.msra.mxu0 0
        %3412 = vmatprep.subr.bf16.mxu0 0
        %3413 = vmatpush1.bf16.msra.mxu0 0
        %3414 = vmatprep.subr.bf16.mxu0 0
        %3415 = vmatpush1.bf16.msra.mxu0 0
        %3416 = vmatprep.subr.bf16.mxu0 0
        %3417 = vmatpush1.bf16.msra.mxu0 0
        %3418 = vmatprep.subr.bf16.mxu0 0
        %3419 = vmatpush1.bf16.msra.mxu0 0
        %3420 = vmatprep.subr.bf16.mxu0 0
        %3421 = vmatpush1.bf16.msra.mxu0 0
        %3422 = vmatprep.mubr.bf16.mxu0 0
        %3423 = vmatmul.mubr.bf16.gmra.mrb[0].mxu0 %v3388
        %v3424 = vpop.f32.mrb[0].mxu0
        %v3425 = vadd.f32 0.0, %v3424
        %v3426 = vpop.f32.mrb[0].mxu0
        %v3427 = vpop.f32.mrb[0].mxu0
        %v3428 = vpop.f32.mrb[0].mxu0
        %3429 = vdwg.mxu0
        %s3430 = scalar_lea.vmem %s12, 3
        %v3431 = vld [vmem:[%s3430] sm:$0x1]
        %v3433 = vlaneseq
        %v3434 = vshrl.u32 %v3433, 7
        %v3435 = vsub.s32 0, %v3434
        %v3436 = vrot.slane %v3431, %v3435
        %v3438 = vmul.f32 %v3425, %v3436
        %v3439 = vadd.f32 %v3438, %v3145
        %v3440 = vsel %vm744, %v3439, 0.0
        %3441 = vadd.xlane.f32.xlu0 %v3440
        %v3442 = vpop.xlane.xlu0 %3441
        %v3443 = vmul.f32 %v3442, %v748
        %v3444 = vsub.f32 %v3439, %v3443
        %v3445 = vmul.f32 %v3444, %v3444
        %v3446 = vsel %vm744, %v3445, 0.0
        %3447 = vadd.xlane.f32.xlu0 %v3446
        %v3448 = vpop.xlane.xlu0 %3447
        %v3449 = vmul.f32 %v3448, %v748
        %v3450 = vadd.f32 %v3449, 1e-05
        %v3451 = vrsqrt.pop %v3450
        %v3452 = vmul.f32 %v3444, %v3451
        %v3453 = vpack.c.bf16 %v3452, %v3452
        %v3454 = vld [vmem:[%s13] sm:$0xf]
        %v3455 = vld [vmem:[%s13 + $0x4] sm:$0xf]
        %v3456 = vld [vmem:[%s13 + $0x8] sm:$0xf]
        %v3457 = vld [vmem:[%s13 + $0xc] sm:$0xf]
        %v3458 = vld [vmem:[%s14] sm:$0x1]
        %v3460 = vlaneseq
        %v3461 = vshrl.u32 %v3460, 7
        %v3462 = vsub.s32 0, %v3461
        %v3463 = vrot.slane %v3458, %v3462
        %v3469 = vunpack.c.l.b16 %v3454
        %v3470 = vunpack.c.l.b16 %v3455
        %v3471 = vunpack.c.l.b16 %v3456
        %v3472 = vunpack.c.l.b16 %v3457
        %v3473 = vpack.c.b16 %v3470, %v3469
        %v3474 = vpack.c.b16 %v3472, %v3471
        %v3478 = vsel %vm744, %v3453, 0
        %3480 = vmatprep.subr.bf16.mxu0 0
        %3481 = vmatpush1.bf16.msra.mxu0 %v3473
        %3482 = vmatprep.subr.bf16.mxu0 0
        %3483 = vmatpush1.bf16.msra.mxu0 %v3474
        %3484 = vmatprep.subr.bf16.mxu0 0
        %3485 = vmatpush1.bf16.msra.mxu0 0
        %3486 = vmatprep.subr.bf16.mxu0 0
        %3487 = vmatpush1.bf16.msra.mxu0 0
        %3488 = vmatprep.subr.bf16.mxu0 0
        %3489 = vmatpush1.bf16.msra.mxu0 0
        %3490 = vmatprep.subr.bf16.mxu0 0
        %3491 = vmatpush1.bf16.msra.mxu0 0
        %3492 = vmatprep.subr.bf16.mxu0 0
        %3493 = vmatpush1.bf16.msra.mxu0 0
        %3494 = vmatprep.subr.bf16.mxu0 0
        %3495 = vmatpush1.bf16.msra.mxu0 0
        %3496 = vmatprep.subr.bf16.mxu0 0
        %3497 = vmatpush1.bf16.msra.mxu0 0
        %3498 = vmatprep.subr.bf16.mxu0 0
        %3499 = vmatpush1.bf16.msra.mxu0 0
        %3500 = vmatprep.subr.bf16.mxu0 0
        %3501 = vmatpush1.bf16.msra.mxu0 0
        %3502 = vmatprep.subr.bf16.mxu0 0
        %3503 = vmatpush1.bf16.msra.mxu0 0
        %3504 = vmatprep.subr.bf16.mxu0 0
        %3505 = vmatpush1.bf16.msra.mxu0 0
        %3506 = vmatprep.subr.bf16.mxu0 0
        %3507 = vmatpush1.bf16.msra.mxu0 0
        %3508 = vmatprep.subr.bf16.mxu0 0
        %3509 = vmatpush1.bf16.msra.mxu0 0
        %3510 = vmatprep.subr.bf16.mxu0 0
        %3511 = vmatpush1.bf16.msra.mxu0 0
        %3512 = vmatprep.mubr.bf16.mxu0 0
        %3513 = vmatmul.mubr.bf16.gmra.mrb[0].mxu0 %v3478
        %v3514 = vpop.f32.mrb[0].mxu0
        %v3515 = vadd.f32 %v3463, %v3514
        %v3516 = vpop.f32.mrb[0].mxu0
        %v3517 = vpop.f32.mrb[0].mxu0
        %v3518 = vpop.f32.mrb[0].mxu0
        %3519 = vdwg.mxu0
        %v3520 = vmul.f32 %v3515, 0.5
        %v3521 = vmul.f32 %v3515, 0.044715
        %v3522 = vmul.f32 %v3521, %v3515
        %v3523 = vmul.f32 %v3522, %v3515
        %v3524 = vadd.f32 %v3515, %v3523
        %v3525 = vmul.f32 %v3524, 0.7978846
        %v3526 = vtanh.pop %v3525
        %v3527 = vadd.f32 %v3526, 1.0
        %v3528 = vmul.f32 %v3520, %v3527
        %v3529 = vpack.c.bf16 %v3528, %v3528
        %v3530 = vld [vmem:[%s15] sm:$0xff]
        %v3531 = vld [vmem:[%s15 + $0x8] sm:$0xff]
        %v3532 = vld [vmem:[%s15 + $0x10] sm:$0xff]
        %v3533 = vld [vmem:[%s15 + $0x18] sm:$0xff]
        %v3534 = vld [vmem:[%s15 + $0x20] sm:$0xff]
        %v3535 = vld [vmem:[%s15 + $0x28] sm:$0xff]
        %v3536 = vld [vmem:[%s15 + $0x30] sm:$0xff]
        %v3537 = vld [vmem:[%s15 + $0x38] sm:$0xff]
        %v3538 = vld [vmem:[%s15 + $0x40] sm:$0xff]
        %v3539 = vld [vmem:[%s15 + $0x48] sm:$0xff]
        %v3540 = vld [vmem:[%s15 + $0x50] sm:$0xff]
        %v3541 = vld [vmem:[%s15 + $0x58] sm:$0xff]
        %v3542 = vld [vmem:[%s15 + $0x60] sm:$0xff]
        %v3543 = vld [vmem:[%s15 + $0x68] sm:$0xff]
        %v3544 = vld [vmem:[%s15 + $0x70] sm:$0xff]
        %v3545 = vld [vmem:[%s15 + $0x78] sm:$0xff]
        %v3546 = vld [vmem:[%s15 + $0x80] sm:$0xff]
        %v3547 = vld [vmem:[%s15 + $0x88] sm:$0xff]
        %v3548 = vld [vmem:[%s15 + $0x90] sm:$0xff]
        %v3549 = vld [vmem:[%s15 + $0x98] sm:$0xff]
        %v3550 = vld [vmem:[%s15 + $0xa0] sm:$0xff]
        %v3551 = vld [vmem:[%s15 + $0xa8] sm:$0xff]
        %v3552 = vld [vmem:[%s15 + $0xb0] sm:$0xff]
        %v3553 = vld [vmem:[%s15 + $0xb8] sm:$0xff]
        %v3554 = vld [vmem:[%s15 + $0xc0] sm:$0xff]
        %v3555 = vld [vmem:[%s15 + $0xc8] sm:$0xff]
        %v3556 = vld [vmem:[%s15 + $0xd0] sm:$0xff]
        %v3557 = vld [vmem:[%s15 + $0xd8] sm:$0xff]
        %v3558 = vld [vmem:[%s15 + $0xe0] sm:$0xff]
        %v3559 = vld [vmem:[%s15 + $0xe8] sm:$0xff]
        %v3560 = vld [vmem:[%s15 + $0xf0] sm:$0xff]
        %v3561 = vld [vmem:[%s15 + $0xf8] sm:$0xff]
        %v3562 = vld [vmem:[%s15 + $0x100] sm:$0xff]
        %v3563 = vld [vmem:[%s15 + $0x108] sm:$0xff]
        %v3564 = vld [vmem:[%s15 + $0x110] sm:$0xff]
        %v3565 = vld [vmem:[%s15 + $0x118] sm:$0xff]
        %v3566 = vld [vmem:[%s15 + $0x120] sm:$0xff]
        %v3567 = vld [vmem:[%s15 + $0x128] sm:$0xff]
        %v3568 = vld [vmem:[%s15 + $0x130] sm:$0xff]
        %v3569 = vld [vmem:[%s15 + $0x138] sm:$0xff]
        %v3570 = vld [vmem:[%s15 + $0x140] sm:$0xff]
        %v3571 = vld [vmem:[%s15 + $0x148] sm:$0xff]
        %v3572 = vld [vmem:[%s15 + $0x150] sm:$0xff]
        %v3573 = vld [vmem:[%s15 + $0x158] sm:$0xff]
        %v3574 = vld [vmem:[%s15 + $0x160] sm:$0xff]
        %v3575 = vld [vmem:[%s15 + $0x168] sm:$0xff]
        %v3576 = vld [vmem:[%s15 + $0x170] sm:$0xff]
        %v3577 = vld [vmem:[%s15 + $0x178] sm:$0xff]
        %v3578 = vld [vmem:[%s15 + $0x180] sm:$0xff]
        %v3579 = vld [vmem:[%s15 + $0x188] sm:$0xff]
        %v3580 = vld [vmem:[%s15 + $0x190] sm:$0xff]
        %v3581 = vld [vmem:[%s15 + $0x198] sm:$0xff]
        %v3582 = vld [vmem:[%s15 + $0x1a0] sm:$0xff]
        %v3583 = vld [vmem:[%s15 + $0x1a8] sm:$0xff]
        %v3584 = vld [vmem:[%s15 + $0x1b0] sm:$0xff]
        %v3585 = vld [vmem:[%s15 + $0x1b8] sm:$0xff]
        %v3586 = vld [vmem:[%s15 + $0x1c0] sm:$0xff]
        %v3587 = vld [vmem:[%s15 + $0x1c8] sm:$0xff]
        %v3588 = vld [vmem:[%s15 + $0x1d0] sm:$0xff]
        %v3589 = vld [vmem:[%s15 + $0x1d8] sm:$0xff]
        %v3590 = vld [vmem:[%s15 + $0x1e0] sm:$0xff]
        %v3591 = vld [vmem:[%s15 + $0x1e8] sm:$0xff]
        %v3592 = vld [vmem:[%s15 + $0x1f0] sm:$0xff]
        %v3593 = vld [vmem:[%s15 + $0x1f8] sm:$0xff]
        %v3594 = vld [vmem:[%s15 + $0x200] sm:$0xff]
        %v3595 = vld [vmem:[%s15 + $0x208] sm:$0xff]
        %v3596 = vld [vmem:[%s15 + $0x210] sm:$0xff]
        %v3597 = vld [vmem:[%s15 + $0x218] sm:$0xff]
        %v3598 = vld [vmem:[%s15 + $0x220] sm:$0xff]
        %v3599 = vld [vmem:[%s15 + $0x228] sm:$0xff]
        %v3600 = vld [vmem:[%s15 + $0x230] sm:$0xff]
        %v3601 = vld [vmem:[%s15 + $0x238] sm:$0xff]
        %v3602 = vld [vmem:[%s15 + $0x240] sm:$0xff]
        %v3603 = vld [vmem:[%s15 + $0x248] sm:$0xff]
        %v3604 = vld [vmem:[%s15 + $0x250] sm:$0xff]
        %v3605 = vld [vmem:[%s15 + $0x258] sm:$0xff]
        %v3606 = vld [vmem:[%s15 + $0x260] sm:$0xff]
        %v3607 = vld [vmem:[%s15 + $0x268] sm:$0xff]
        %v3608 = vld [vmem:[%s15 + $0x270] sm:$0xff]
        %v3609 = vld [vmem:[%s15 + $0x278] sm:$0xff]
        %v3610 = vld [vmem:[%s15 + $0x280] sm:$0xff]
        %v3611 = vld [vmem:[%s15 + $0x288] sm:$0xff]
        %v3612 = vld [vmem:[%s15 + $0x290] sm:$0xff]
        %v3613 = vld [vmem:[%s15 + $0x298] sm:$0xff]
        %v3614 = vld [vmem:[%s15 + $0x2a0] sm:$0xff]
        %v3615 = vld [vmem:[%s15 + $0x2a8] sm:$0xff]
        %v3616 = vld [vmem:[%s15 + $0x2b0] sm:$0xff]
        %v3617 = vld [vmem:[%s15 + $0x2b8] sm:$0xff]
        %v3618 = vld [vmem:[%s15 + $0x2c0] sm:$0xff]
        %v3619 = vld [vmem:[%s15 + $0x2c8] sm:$0xff]
        %v3620 = vld [vmem:[%s15 + $0x2d0] sm:$0xff]
        %v3621 = vld [vmem:[%s15 + $0x2d8] sm:$0xff]
        %v3622 = vld [vmem:[%s15 + $0x2e0] sm:$0xff]
        %v3623 = vld [vmem:[%s15 + $0x2e8] sm:$0xff]
        %v3624 = vld [vmem:[%s15 + $0x2f0] sm:$0xff]
        %v3625 = vld [vmem:[%s15 + $0x2f8] sm:$0xff]
        %v3626 = vld [vmem:[%s15 + $0x300] sm:$0xff]
        %v3627 = vld [vmem:[%s15 + $0x308] sm:$0xff]
        %v3628 = vld [vmem:[%s15 + $0x310] sm:$0xff]
        %v3629 = vld [vmem:[%s15 + $0x318] sm:$0xff]
        %v3630 = vld [vmem:[%s15 + $0x320] sm:$0xff]
        %v3631 = vld [vmem:[%s15 + $0x328] sm:$0xff]
        %v3632 = vld [vmem:[%s15 + $0x330] sm:$0xff]
        %v3633 = vld [vmem:[%s15 + $0x338] sm:$0xff]
        %v3634 = vld [vmem:[%s15 + $0x340] sm:$0xff]
        %v3635 = vld [vmem:[%s15 + $0x348] sm:$0xff]
        %v3636 = vld [vmem:[%s15 + $0x350] sm:$0xff]
        %v3637 = vld [vmem:[%s15 + $0x358] sm:$0xff]
        %v3638 = vld [vmem:[%s15 + $0x360] sm:$0xff]
        %v3639 = vld [vmem:[%s15 + $0x368] sm:$0xff]
        %v3640 = vld [vmem:[%s15 + $0x370] sm:$0xff]
        %v3641 = vld [vmem:[%s15 + $0x378] sm:$0xff]
        %v3642 = vld [vmem:[%s15 + $0x380] sm:$0xff]
        %v3643 = vld [vmem:[%s15 + $0x388] sm:$0xff]
        %v3644 = vld [vmem:[%s15 + $0x390] sm:$0xff]
        %v3645 = vld [vmem:[%s15 + $0x398] sm:$0xff]
        %v3646 = vld [vmem:[%s15 + $0x3a0] sm:$0xff]
        %v3647 = vld [vmem:[%s15 + $0x3a8] sm:$0xff]
        %v3648 = vld [vmem:[%s15 + $0x3b0] sm:$0xff]
        %v3649 = vld [vmem:[%s15 + $0x3b8] sm:$0xff]
        %v3650 = vld [vmem:[%s15 + $0x3c0] sm:$0xff]
        %v3651 = vld [vmem:[%s15 + $0x3c8] sm:$0xff]
        %v3652 = vld [vmem:[%s15 + $0x3d0] sm:$0xff]
        %v3653 = vld [vmem:[%s15 + $0x3d8] sm:$0xff]
        %v3654 = vld [vmem:[%s15 + $0x3e0] sm:$0xff]
        %v3655 = vld [vmem:[%s15 + $0x3e8] sm:$0xff]
        %v3656 = vld [vmem:[%s15 + $0x3f0] sm:$0xff]
        %v3657 = vld [vmem:[%s15 + $0x3f8] sm:$0xff]
        %v3658 = vld [vmem:[%s16] sm:$0xff]
        %v3659 = vld [vmem:[%s16 + $0x8] sm:$0xff]
        %v3662 = vlaneseq
        %v3663 = vshrl.u32 %v3662, 7
        %v3664 = vsub.s32 0, %v3663
        %v3665 = vrot.slane %v3658, %v3664
        %v3666 = vlaneseq
        %v3667 = vshrl.u32 %v3666, 7
        %v3668 = vsub.s32 1, %v3667
        %v3669 = vrot.slane %v3658, %v3668
        %v3670 = vlaneseq
        %v3671 = vshrl.u32 %v3670, 7
        %v3672 = vsub.s32 2, %v3671
        %v3673 = vrot.slane %v3658, %v3672
        %v3674 = vlaneseq
        %v3675 = vshrl.u32 %v3674, 7
        %v3676 = vsub.s32 3, %v3675
        %v3677 = vrot.slane %v3658, %v3676
        %v3678 = vlaneseq
        %v3679 = vshrl.u32 %v3678, 7
        %v3680 = vsub.s32 4, %v3679
        %v3681 = vrot.slane %v3658, %v3680
        %v3682 = vlaneseq
        %v3683 = vshrl.u32 %v3682, 7
        %v3684 = vsub.s32 5, %v3683
        %v3685 = vrot.slane %v3658, %v3684
        %v3686 = vlaneseq
        %v3687 = vshrl.u32 %v3686, 7
        %v3688 = vsub.s32 6, %v3687
        %v3689 = vrot.slane %v3658, %v3688
        %v3690 = vlaneseq
        %v3691 = vshrl.u32 %v3690, 7
        %v3692 = vsub.s32 7, %v3691
        %v3693 = vrot.slane %v3658, %v3692
        %v3694 = vlaneseq
        %v3695 = vshrl.u32 %v3694, 7
        %v3696 = vsub.s32 0, %v3695
        %v3697 = vrot.slane %v3659, %v3696
        %v3698 = vlaneseq
        %v3699 = vshrl.u32 %v3698, 7
        %v3700 = vsub.s32 1, %v3699
        %v3701 = vrot.slane %v3659, %v3700
        %v3702 = vlaneseq
        %v3703 = vshrl.u32 %v3702, 7
        %v3704 = vsub.s32 2, %v3703
        %v3705 = vrot.slane %v3659, %v3704
        %v3706 = vlaneseq
        %v3707 = vshrl.u32 %v3706, 7
        %v3708 = vsub.s32 3, %v3707
        %v3709 = vrot.slane %v3659, %v3708
        %v3710 = vlaneseq
        %v3711 = vshrl.u32 %v3710, 7
        %v3712 = vsub.s32 4, %v3711
        %v3713 = vrot.slane %v3659, %v3712
        %v3714 = vlaneseq
        %v3715 = vshrl.u32 %v3714, 7
        %v3716 = vsub.s32 5, %v3715
        %v3717 = vrot.slane %v3659, %v3716
        %v3718 = vlaneseq
        %v3719 = vshrl.u32 %v3718, 7
        %v3720 = vsub.s32 6, %v3719
        %v3721 = vrot.slane %v3659, %v3720
        %v3722 = vlaneseq
        %v3723 = vshrl.u32 %v3722, 7
        %v3724 = vsub.s32 7, %v3723
        %v3725 = vrot.slane %v3659, %v3724
        %v3870 = vunpack.c.l.b16 %v3530
        %v3871 = vunpack.c.h.b16 %v3530
        %v3872 = vunpack.c.l.b16 %v3531
        %v3873 = vunpack.c.h.b16 %v3531
        %v3874 = vunpack.c.l.b16 %v3532
        %v3875 = vunpack.c.h.b16 %v3532
        %v3876 = vunpack.c.l.b16 %v3533
        %v3877 = vunpack.c.h.b16 %v3533
        %v3878 = vunpack.c.l.b16 %v3534
        %v3879 = vunpack.c.h.b16 %v3534
        %v3880 = vunpack.c.l.b16 %v3535
        %v3881 = vunpack.c.h.b16 %v3535
        %v3882 = vunpack.c.l.b16 %v3536
        %v3883 = vunpack.c.h.b16 %v3536
        %v3884 = vunpack.c.l.b16 %v3537
        %v3885 = vunpack.c.h.b16 %v3537
        %v3886 = vunpack.c.l.b16 %v3538
        %v3887 = vunpack.c.h.b16 %v3538
        %v3888 = vunpack.c.l.b16 %v3539
        %v3889 = vunpack.c.h.b16 %v3539
        %v3890 = vunpack.c.l.b16 %v3540
        %v3891 = vunpack.c.h.b16 %v3540
        %v3892 = vunpack.c.l.b16 %v3541
        %v3893 = vunpack.c.h.b16 %v3541
        %v3894 = vunpack.c.l.b16 %v3542
        %v3895 = vunpack.c.h.b16 %v3542
        %v3896 = vunpack.c.l.b16 %v3543
        %v3897 = vunpack.c.h.b16 %v3543
        %v3898 = vunpack.c.l.b16 %v3544
        %v3899 = vunpack.c.h.b16 %v3544
        %v3900 = vunpack.c.l.b16 %v3545
        %v3901 = vunpack.c.h.b16 %v3545
        %v3902 = vunpack.c.l.b16 %v3546
        %v3903 = vunpack.c.h.b16 %v3546
        %v3904 = vunpack.c.l.b16 %v3547
        %v3905 = vunpack.c.h.b16 %v3547
        %v3906 = vunpack.c.l.b16 %v3548
        %v3907 = vunpack.c.h.b16 %v3548
        %v3908 = vunpack.c.l.b16 %v3549
        %v3909 = vunpack.c.h.b16 %v3549
        %v3910 = vunpack.c.l.b16 %v3550
        %v3911 = vunpack.c.h.b16 %v3550
        %v3912 = vunpack.c.l.b16 %v3551
        %v3913 = vunpack.c.h.b16 %v3551
        %v3914 = vunpack.c.l.b16 %v3552
        %v3915 = vunpack.c.h.b16 %v3552
        %v3916 = vunpack.c.l.b16 %v3553
        %v3917 = vunpack.c.h.b16 %v3553
        %v3918 = vunpack.c.l.b16 %v3554
        %v3919 = vunpack.c.h.b16 %v3554
        %v3920 = vunpack.c.l.b16 %v3555
        %v3921 = vunpack.c.h.b16 %v3555
        %v3922 = vunpack.c.l.b16 %v3556
        %v3923 = vunpack.c.h.b16 %v3556
        %v3924 = vunpack.c.l.b16 %v3557
        %v3925 = vunpack.c.h.b16 %v3557
        %v3926 = vunpack.c.l.b16 %v3558
        %v3927 = vunpack.c.h.b16 %v3558
        %v3928 = vunpack.c.l.b16 %v3559
        %v3929 = vunpack.c.h.b16 %v3559
        %v3930 = vunpack.c.l.b16 %v3560
        %v3931 = vunpack.c.h.b16 %v3560
        %v3932 = vunpack.c.l.b16 %v3561
        %v3933 = vunpack.c.h.b16 %v3561
        %v3934 = vunpack.c.l.b16 %v3562
        %v3935 = vunpack.c.h.b16 %v3562
        %v3936 = vunpack.c.l.b16 %v3563
        %v3937 = vunpack.c.h.b16 %v3563
        %v3938 = vunpack.c.l.b16 %v3564
        %v3939 = vunpack.c.h.b16 %v3564
        %v3940 = vunpack.c.l.b16 %v3565
        %v3941 = vunpack.c.h.b16 %v3565
        %v3942 = vunpack.c.l.b16 %v3566
        %v3943 = vunpack.c.h.b16 %v3566
        %v3944 = vunpack.c.l.b16 %v3567
        %v3945 = vunpack.c.h.b16 %v3567
        %v3946 = vunpack.c.l.b16 %v3568
        %v3947 = vunpack.c.h.b16 %v3568
        %v3948 = vunpack.c.l.b16 %v3569
        %v3949 = vunpack.c.h.b16 %v3569
        %v3950 = vunpack.c.l.b16 %v3570
        %v3951 = vunpack.c.h.b16 %v3570
        %v3952 = vunpack.c.l.b16 %v3571
        %v3953 = vunpack.c.h.b16 %v3571
        %v3954 = vunpack.c.l.b16 %v3572
        %v3955 = vunpack.c.h.b16 %v3572
        %v3956 = vunpack.c.l.b16 %v3573
        %v3957 = vunpack.c.h.b16 %v3573
        %v3958 = vunpack.c.l.b16 %v3574
        %v3959 = vunpack.c.h.b16 %v3574
        %v3960 = vunpack.c.l.b16 %v3575
        %v3961 = vunpack.c.h.b16 %v3575
        %v3962 = vunpack.c.l.b16 %v3576
        %v3963 = vunpack.c.h.b16 %v3576
        %v3964 = vunpack.c.l.b16 %v3577
        %v3965 = vunpack.c.h.b16 %v3577
        %v3966 = vunpack.c.l.b16 %v3578
        %v3967 = vunpack.c.h.b16 %v3578
        %v3968 = vunpack.c.l.b16 %v3579
        %v3969 = vunpack.c.h.b16 %v3579
        %v3970 = vunpack.c.l.b16 %v3580
        %v3971 = vunpack.c.h.b16 %v3580
        %v3972 = vunpack.c.l.b16 %v3581
        %v3973 = vunpack.c.h.b16 %v3581
        %v3974 = vunpack.c.l.b16 %v3582
        %v3975 = vunpack.c.h.b16 %v3582
        %v3976 = vunpack.c.l.b16 %v3583
        %v3977 = vunpack.c.h.b16 %v3583
        %v3978 = vunpack.c.l.b16 %v3584
        %v3979 = vunpack.c.h.b16 %v3584
        %v3980 = vunpack.c.l.b16 %v3585
        %v3981 = vunpack.c.h.b16 %v3585
        %v3982 = vunpack.c.l.b16 %v3586
        %v3983 = vunpack.c.h.b16 %v3586
        %v3984 = vunpack.c.l.b16 %v3587
        %v3985 = vunpack.c.h.b16 %v3587
        %v3986 = vunpack.c.l.b16 %v3588
        %v3987 = vunpack.c.h.b16 %v3588
        %v3988 = vunpack.c.l.b16 %v3589
        %v3989 = vunpack.c.h.b16 %v3589
        %v3990 = vunpack.c.l.b16 %v3590
        %v3991 = vunpack.c.h.b16 %v3590
        %v3992 = vunpack.c.l.b16 %v3591
        %v3993 = vunpack.c.h.b16 %v3591
        %v3994 = vunpack.c.l.b16 %v3592
        %v3995 = vunpack.c.h.b16 %v3592
        %v3996 = vunpack.c.l.b16 %v3593
        %v3997 = vunpack.c.h.b16 %v3593
        %v3998 = vunpack.c.l.b16 %v3594
        %v3999 = vunpack.c.h.b16 %v3594
        %v4000 = vunpack.c.l.b16 %v3595
        %v4001 = vunpack.c.h.b16 %v3595
        %v4002 = vunpack.c.l.b16 %v3596
        %v4003 = vunpack.c.h.b16 %v3596
        %v4004 = vunpack.c.l.b16 %v3597
        %v4005 = vunpack.c.h.b16 %v3597
        %v4006 = vunpack.c.l.b16 %v3598
        %v4007 = vunpack.c.h.b16 %v3598
        %v4008 = vunpack.c.l.b16 %v3599
        %v4009 = vunpack.c.h.b16 %v3599
        %v4010 = vunpack.c.l.b16 %v3600
        %v4011 = vunpack.c.h.b16 %v3600
        %v4012 = vunpack.c.l.b16 %v3601
        %v4013 = vunpack.c.h.b16 %v3601
        %v4014 = vunpack.c.l.b16 %v3602
        %v4015 = vunpack.c.h.b16 %v3602
        %v4016 = vunpack.c.l.b16 %v3603
        %v4017 = vunpack.c.h.b16 %v3603
        %v4018 = vunpack.c.l.b16 %v3604
        %v4019 = vunpack.c.h.b16 %v3604
        %v4020 = vunpack.c.l.b16 %v3605
        %v4021 = vunpack.c.h.b16 %v3605
        %v4022 = vunpack.c.l.b16 %v3606
        %v4023 = vunpack.c.h.b16 %v3606
        %v4024 = vunpack.c.l.b16 %v3607
        %v4025 = vunpack.c.h.b16 %v3607
        %v4026 = vunpack.c.l.b16 %v3608
        %v4027 = vunpack.c.h.b16 %v3608
        %v4028 = vunpack.c.l.b16 %v3609
        %v4029 = vunpack.c.h.b16 %v3609
        %v4030 = vunpack.c.l.b16 %v3610
        %v4031 = vunpack.c.h.b16 %v3610
        %v4032 = vunpack.c.l.b16 %v3611
        %v4033 = vunpack.c.h.b16 %v3611
        %v4034 = vunpack.c.l.b16 %v3612
        %v4035 = vunpack.c.h.b16 %v3612
        %v4036 = vunpack.c.l.b16 %v3613
        %v4037 = vunpack.c.h.b16 %v3613
        %v4038 = vunpack.c.l.b16 %v3614
        %v4039 = vunpack.c.h.b16 %v3614
        %v4040 = vunpack.c.l.b16 %v3615
        %v4041 = vunpack.c.h.b16 %v3615
        %v4042 = vunpack.c.l.b16 %v3616
        %v4043 = vunpack.c.h.b16 %v3616
        %v4044 = vunpack.c.l.b16 %v3617
        %v4045 = vunpack.c.h.b16 %v3617
        %v4046 = vunpack.c.l.b16 %v3618
        %v4047 = vunpack.c.h.b16 %v3618
        %v4048 = vunpack.c.l.b16 %v3619
        %v4049 = vunpack.c.h.b16 %v3619
        %v4050 = vunpack.c.l.b16 %v3620
        %v4051 = vunpack.c.h.b16 %v3620
        %v4052 = vunpack.c.l.b16 %v3621
        %v4053 = vunpack.c.h.b16 %v3621
        %v4054 = vunpack.c.l.b16 %v3622
        %v4055 = vunpack.c.h.b16 %v3622
        %v4056 = vunpack.c.l.b16 %v3623
        %v4057 = vunpack.c.h.b16 %v3623
        %v4058 = vunpack.c.l.b16 %v3624
        %v4059 = vunpack.c.h.b16 %v3624
        %v4060 = vunpack.c.l.b16 %v3625
        %v4061 = vunpack.c.h.b16 %v3625
        %v4062 = vunpack.c.l.b16 %v3626
        %v4063 = vunpack.c.h.b16 %v3626
        %v4064 = vunpack.c.l.b16 %v3627
        %v4065 = vunpack.c.h.b16 %v3627
        %v4066 = vunpack.c.l.b16 %v3628
        %v4067 = vunpack.c.h.b16 %v3628
        %v4068 = vunpack.c.l.b16 %v3629
        %v4069 = vunpack.c.h.b16 %v3629
        %v4070 = vunpack.c.l.b16 %v3630
        %v4071 = vunpack.c.h.b16 %v3630
        %v4072 = vunpack.c.l.b16 %v3631
        %v4073 = vunpack.c.h.b16 %v3631
        %v4074 = vunpack.c.l.b16 %v3632
        %v4075 = vunpack.c.h.b16 %v3632
        %v4076 = vunpack.c.l.b16 %v3633
        %v4077 = vunpack.c.h.b16 %v3633
        %v4078 = vunpack.c.l.b16 %v3634
        %v4079 = vunpack.c.h.b16 %v3634
        %v4080 = vunpack.c.l.b16 %v3635
        %v4081 = vunpack.c.h.b16 %v3635
        %v4082 = vunpack.c.l.b16 %v3636
        %v4083 = vunpack.c.h.b16 %v3636
        %v4084 = vunpack.c.l.b16 %v3637
        %v4085 = vunpack.c.h.b16 %v3637
        %v4086 = vunpack.c.l.b16 %v3638
        %v4087 = vunpack.c.h.b16 %v3638
        %v4088 = vunpack.c.l.b16 %v3639
        %v4089 = vunpack.c.h.b16 %v3639
        %v4090 = vunpack.c.l.b16 %v3640
        %v4091 = vunpack.c.h.b16 %v3640
        %v4092 = vunpack.c.l.b16 %v3641
        %v4093 = vunpack.c.h.b16 %v3641
        %v4094 = vunpack.c.l.b16 %v3642
        %v4095 = vunpack.c.h.b16 %v3642
        %v4096 = vunpack.c.l.b16 %v3643
        %v4097 = vunpack.c.h.b16 %v3643
        %v4098 = vunpack.c.l.b16 %v3644
        %v4099 = vunpack.c.h.b16 %v3644
        %v4100 = vunpack.c.l.b16 %v3645
        %v4101 = vunpack.c.h.b16 %v3645
        %v4102 = vunpack.c.l.b16 %v3646
        %v4103 = vunpack.c.h.b16 %v3646
        %v4104 = vunpack.c.l.b16 %v3647
        %v4105 = vunpack.c.h.b16 %v3647
        %v4106 = vunpack.c.l.b16 %v3648
        %v4107 = vunpack.c.h.b16 %v3648
        %v4108 = vunpack.c.l.b16 %v3649
        %v4109 = vunpack.c.h.b16 %v3649
        %v4110 = vunpack.c.l.b16 %v3650
        %v4111 = vunpack.c.h.b16 %v3650
        %v4112 = vunpack.c.l.b16 %v3651
        %v4113 = vunpack.c.h.b16 %v3651
        %v4114 = vunpack.c.l.b16 %v3652
        %v4115 = vunpack.c.h.b16 %v3652
        %v4116 = vunpack.c.l.b16 %v3653
        %v4117 = vunpack.c.h.b16 %v3653
        %v4118 = vunpack.c.l.b16 %v3654
        %v4119 = vunpack.c.h.b16 %v3654
        %v4120 = vunpack.c.l.b16 %v3655
        %v4121 = vunpack.c.h.b16 %v3655
        %v4122 = vunpack.c.l.b16 %v3656
        %v4123 = vunpack.c.h.b16 %v3656
        %v4124 = vunpack.c.l.b16 %v3657
        %v4125 = vunpack.c.h.b16 %v3657
        %v4126 = vpack.c.b16 %v3886, %v3870
        %v4127 = vpack.c.b16 %v3887, %v3871
        %v4128 = vpack.c.b16 %v3888, %v3872
        %v4129 = vpack.c.b16 %v3889, %v3873
        %v4130 = vpack.c.b16 %v3890, %v3874
        %v4131 = vpack.c.b16 %v3891, %v3875
        %v4132 = vpack.c.b16 %v3892, %v3876
        %v4133 = vpack.c.b16 %v3893, %v3877
        %v4134 = vpack.c.b16 %v3894, %v3878
        %v4135 = vpack.c.b16 %v3895, %v3879
        %v4136 = vpack.c.b16 %v3896, %v3880
        %v4137 = vpack.c.b16 %v3897, %v3881
        %v4138 = vpack.c.b16 %v3898, %v3882
        %v4139 = vpack.c.b16 %v3899, %v3883
        %v4140 = vpack.c.b16 %v3900, %v3884
        %v4141 = vpack.c.b16 %v3901, %v3885
        %v4142 = vpack.c.b16 %v3918, %v3902
        %v4143 = vpack.c.b16 %v3919, %v3903
        %v4144 = vpack.c.b16 %v3920, %v3904
        %v4145 = vpack.c.b16 %v3921, %v3905
        %v4146 = vpack.c.b16 %v3922, %v3906
        %v4147 = vpack.c.b16 %v3923, %v3907
        %v4148 = vpack.c.b16 %v3924, %v3908
        %v4149 = vpack.c.b16 %v3925, %v3909
        %v4150 = vpack.c.b16 %v3926, %v3910
        %v4151 = vpack.c.b16 %v3927, %v3911
        %v4152 = vpack.c.b16 %v3928, %v3912
        %v4153 = vpack.c.b16 %v3929, %v3913
        %v4154 = vpack.c.b16 %v3930, %v3914
        %v4155 = vpack.c.b16 %v3931, %v3915
        %v4156 = vpack.c.b16 %v3932, %v3916
        %v4157 = vpack.c.b16 %v3933, %v3917
        %v4158 = vpack.c.b16 %v3950, %v3934
        %v4159 = vpack.c.b16 %v3951, %v3935
        %v4160 = vpack.c.b16 %v3952, %v3936
        %v4161 = vpack.c.b16 %v3953, %v3937
        %v4162 = vpack.c.b16 %v3954, %v3938
        %v4163 = vpack.c.b16 %v3955, %v3939
        %v4164 = vpack.c.b16 %v3956, %v3940
        %v4165 = vpack.c.b16 %v3957, %v3941
        %v4166 = vpack.c.b16 %v3958, %v3942
        %v4167 = vpack.c.b16 %v3959, %v3943
        %v4168 = vpack.c.b16 %v3960, %v3944
        %v4169 = vpack.c.b16 %v3961, %v3945
        %v4170 = vpack.c.b16 %v3962, %v3946
        %v4171 = vpack.c.b16 %v3963, %v3947
        %v4172 = vpack.c.b16 %v3964, %v3948
        %v4173 = vpack.c.b16 %v3965, %v3949
        %v4174 = vpack.c.b16 %v3982, %v3966
        %v4175 = vpack.c.b16 %v3983, %v3967
        %v4176 = vpack.c.b16 %v3984, %v3968
        %v4177 = vpack.c.b16 %v3985, %v3969
        %v4178 = vpack.c.b16 %v3986, %v3970
        %v4179 = vpack.c.b16 %v3987, %v3971
        %v4180 = vpack.c.b16 %v3988, %v3972
        %v4181 = vpack.c.b16 %v3989, %v3973
        %v4182 = vpack.c.b16 %v3990, %v3974
        %v4183 = vpack.c.b16 %v3991, %v3975
        %v4184 = vpack.c.b16 %v3992, %v3976
        %v4185 = vpack.c.b16 %v3993, %v3977
        %v4186 = vpack.c.b16 %v3994, %v3978
        %v4187 = vpack.c.b16 %v3995, %v3979
        %v4188 = vpack.c.b16 %v3996, %v3980
        %v4189 = vpack.c.b16 %v3997, %v3981
        %v4190 = vpack.c.b16 %v4014, %v3998
        %v4191 = vpack.c.b16 %v4015, %v3999
        %v4192 = vpack.c.b16 %v4016, %v4000
        %v4193 = vpack.c.b16 %v4017, %v4001
        %v4194 = vpack.c.b16 %v4018, %v4002
        %v4195 = vpack.c.b16 %v4019, %v4003
        %v4196 = vpack.c.b16 %v4020, %v4004
        %v4197 = vpack.c.b16 %v4021, %v4005
        %v4198 = vpack.c.b16 %v4022, %v4006
        %v4199 = vpack.c.b16 %v4023, %v4007
        %v4200 = vpack.c.b16 %v4024, %v4008
        %v4201 = vpack.c.b16 %v4025, %v4009
        %v4202 = vpack.c.b16 %v4026, %v4010
        %v4203 = vpack.c.b16 %v4027, %v4011
        %v4204 = vpack.c.b16 %v4028, %v4012
        %v4205 = vpack.c.b16 %v4029, %v4013
        %v4206 = vpack.c.b16 %v4046, %v4030
        %v4207 = vpack.c.b16 %v4047, %v4031
        %v4208 = vpack.c.b16 %v4048, %v4032
        %v4209 = vpack.c.b16 %v4049, %v4033
        %v4210 = vpack.c.b16 %v4050, %v4034
        %v4211 = vpack.c.b16 %v4051, %v4035
        %v4212 = vpack.c.b16 %v4052, %v4036
        %v4213 = vpack.c.b16 %v4053, %v4037
        %v4214 = vpack.c.b16 %v4054, %v4038
        %v4215 = vpack.c.b16 %v4055, %v4039
        %v4216 = vpack.c.b16 %v4056, %v4040
        %v4217 = vpack.c.b16 %v4057, %v4041
        %v4218 = vpack.c.b16 %v4058, %v4042
        %v4219 = vpack.c.b16 %v4059, %v4043
        %v4220 = vpack.c.b16 %v4060, %v4044
        %v4221 = vpack.c.b16 %v4061, %v4045
        %v4222 = vpack.c.b16 %v4078, %v4062
        %v4223 = vpack.c.b16 %v4079, %v4063
        %v4224 = vpack.c.b16 %v4080, %v4064
        %v4225 = vpack.c.b16 %v4081, %v4065
        %v4226 = vpack.c.b16 %v4082, %v4066
        %v4227 = vpack.c.b16 %v4083, %v4067
        %v4228 = vpack.c.b16 %v4084, %v4068
        %v4229 = vpack.c.b16 %v4085, %v4069
        %v4230 = vpack.c.b16 %v4086, %v4070
        %v4231 = vpack.c.b16 %v4087, %v4071
        %v4232 = vpack.c.b16 %v4088, %v4072
        %v4233 = vpack.c.b16 %v4089, %v4073
        %v4234 = vpack.c.b16 %v4090, %v4074
        %v4235 = vpack.c.b16 %v4091, %v4075
        %v4236 = vpack.c.b16 %v4092, %v4076
        %v4237 = vpack.c.b16 %v4093, %v4077
        %v4238 = vpack.c.b16 %v4110, %v4094
        %v4239 = vpack.c.b16 %v4111, %v4095
        %v4240 = vpack.c.b16 %v4112, %v4096
        %v4241 = vpack.c.b16 %v4113, %v4097
        %v4242 = vpack.c.b16 %v4114, %v4098
        %v4243 = vpack.c.b16 %v4115, %v4099
        %v4244 = vpack.c.b16 %v4116, %v4100
        %v4245 = vpack.c.b16 %v4117, %v4101
        %v4246 = vpack.c.b16 %v4118, %v4102
        %v4247 = vpack.c.b16 %v4119, %v4103
        %v4248 = vpack.c.b16 %v4120, %v4104
        %v4249 = vpack.c.b16 %v4121, %v4105
        %v4250 = vpack.c.b16 %v4122, %v4106
        %v4251 = vpack.c.b16 %v4123, %v4107
        %v4252 = vpack.c.b16 %v4124, %v4108
        %v4253 = vpack.c.b16 %v4125, %v4109
        %4382 = vmatprep.subr.bf16.mxu0 %v4127
        %4383 = vmatpush1.bf16.msra.mxu0 %v4126
        %4384 = vmatprep.subr.bf16.mxu0 %v4143
        %4385 = vmatpush1.bf16.msra.mxu0 %v4142
        %4386 = vmatprep.subr.bf16.mxu0 %v4159
        %4387 = vmatpush1.bf16.msra.mxu0 %v4158
        %4388 = vmatprep.subr.bf16.mxu0 %v4175
        %4389 = vmatpush1.bf16.msra.mxu0 %v4174
        %4390 = vmatprep.subr.bf16.mxu0 %v4191
        %4391 = vmatpush1.bf16.msra.mxu0 %v4190
        %4392 = vmatprep.subr.bf16.mxu0 %v4207
        %4393 = vmatpush1.bf16.msra.mxu0 %v4206
        %4394 = vmatprep.subr.bf16.mxu0 %v4223
        %4395 = vmatpush1.bf16.msra.mxu0 %v4222
        %4396 = vmatprep.subr.bf16.mxu0 %v4239
        %4397 = vmatpush1.bf16.msra.mxu0 %v4238
        %4398 = vmatprep.subr.bf16.mxu0 0
        %4399 = vmatpush1.bf16.msra.mxu0 0
        %4400 = vmatprep.subr.bf16.mxu0 0
        %4401 = vmatpush1.bf16.msra.mxu0 0
        %4402 = vmatprep.subr.bf16.mxu0 0
        %4403 = vmatpush1.bf16.msra.mxu0 0
        %4404 = vmatprep.subr.bf16.mxu0 0
        %4405 = vmatpush1.bf16.msra.mxu0 0
        %4406 = vmatprep.subr.bf16.mxu0 0
        %4407 = vmatpush1.bf16.msra.mxu0 0
        %4408 = vmatprep.subr.bf16.mxu0 0
        %4409 = vmatpush1.bf16.msra.mxu0 0
        %4410 = vmatprep.subr.bf16.mxu0 0
        %4411 = vmatpush1.bf16.msra.mxu0 0
        %4412 = vmatprep.subr.bf16.mxu0 0
        %4413 = vmatpush1.bf16.msra.mxu0 0
        %4414 = vmatprep.mubr.bf16.mxu0 0
        %4415 = vmatmul.mubr.bf16.gmra.mrb[0].mxu0 %v3529
        %v4416 = vpop.f32.mrb[0].mxu0
        %v4417 = vadd.f32 %v3665, %v4416
        %v4418 = vpop.f32.mrb[0].mxu0
        %v4419 = vadd.f32 %v3669, %v4418
        %v4420 = vpop.f32.mrb[0].mxu0
        %v4421 = vpop.f32.mrb[0].mxu0
        %4422 = vdwg.mxu0
        %4423 = vmatprep.subr.bf16.mxu0 %v4129
        %4424 = vmatpush1.bf16.msra.mxu0 %v4128
        %4425 = vmatprep.subr.bf16.mxu0 %v4145
        %4426 = vmatpush1.bf16.msra.mxu0 %v4144
        %4427 = vmatprep.subr.bf16.mxu0 %v4161
        %4428 = vmatpush1.bf16.msra.mxu0 %v4160
        %4429 = vmatprep.subr.bf16.mxu0 %v4177
        %4430 = vmatpush1.bf16.msra.mxu0 %v4176
        %4431 = vmatprep.subr.bf16.mxu0 %v4193
        %4432 = vmatpush1.bf16.msra.mxu0 %v4192
        %4433 = vmatprep.subr.bf16.mxu0 %v4209
        %4434 = vmatpush1.bf16.msra.mxu0 %v4208
        %4435 = vmatprep.subr.bf16.mxu0 %v4225
        %4436 = vmatpush1.bf16.msra.mxu0 %v4224
        %4437 = vmatprep.subr.bf16.mxu0 %v4241
        %4438 = vmatpush1.bf16.msra.mxu0 %v4240
        %4439 = vmatprep.subr.bf16.mxu0 0
        %4440 = vmatpush1.bf16.msra.mxu0 0
        %4441 = vmatprep.subr.bf16.mxu0 0
        %4442 = vmatpush1.bf16.msra.mxu0 0
        %4443 = vmatprep.subr.bf16.mxu0 0
        %4444 = vmatpush1.bf16.msra.mxu0 0
        %4445 = vmatprep.subr.bf16.mxu0 0
        %4446 = vmatpush1.bf16.msra.mxu0 0
        %4447 = vmatprep.subr.bf16.mxu0 0
        %4448 = vmatpush1.bf16.msra.mxu0 0
        %4449 = vmatprep.subr.bf16.mxu0 0
        %4450 = vmatpush1.bf16.msra.mxu0 0
        %4451 = vmatprep.subr.bf16.mxu0 0
        %4452 = vmatpush1.bf16.msra.mxu0 0
        %4453 = vmatprep.subr.bf16.mxu0 0
        %4454 = vmatpush1.bf16.msra.mxu0 0
        %4455 = vmatprep.mubr.bf16.mxu0 0
        %4456 = vmatmul.mubr.bf16.gmra.mrb[0].mxu0 %v3529
        %v4457 = vpop.f32.mrb[0].mxu0
        %v4458 = vadd.f32 %v3673, %v4457
        %v4459 = vpop.f32.mrb[0].mxu0
        %v4460 = vadd.f32 %v3677, %v4459
        %v4461 = vpop.f32.mrb[0].mxu0
        %v4462 = vpop.f32.mrb[0].mxu0
        %4463 = vdwg.mxu0
        %4464 = vmatprep.subr.bf16.mxu0 %v4131
        %4465 = vmatpush1.bf16.msra.mxu0 %v4130
        %4466 = vmatprep.subr.bf16.mxu0 %v4147
        %4467 = vmatpush1.bf16.msra.mxu0 %v4146
        %4468 = vmatprep.subr.bf16.mxu0 %v4163
        %4469 = vmatpush1.bf16.msra.mxu0 %v4162
        %4470 = vmatprep.subr.bf16.mxu0 %v4179
        %4471 = vmatpush1.bf16.msra.mxu0 %v4178
        %4472 = vmatprep.subr.bf16.mxu0 %v4195
        %4473 = vmatpush1.bf16.msra.mxu0 %v4194
        %4474 = vmatprep.subr.bf16.mxu0 %v4211
        %4475 = vmatpush1.bf16.msra.mxu0 %v4210
        %4476 = vmatprep.subr.bf16.mxu0 %v4227
        %4477 = vmatpush1.bf16.msra.mxu0 %v4226
        %4478 = vmatprep.subr.bf16.mxu0 %v4243
        %4479 = vmatpush1.bf16.msra.mxu0 %v4242
        %4480 = vmatprep.subr.bf16.mxu0 0
        %4481 = vmatpush1.bf16.msra.mxu0 0
        %4482 = vmatprep.subr.bf16.mxu0 0
        %4483 = vmatpush1.bf16.msra.mxu0 0
        %4484 = vmatprep.subr.bf16.mxu0 0
        %4485 = vmatpush1.bf16.msra.mxu0 0
        %4486 = vmatprep.subr.bf16.mxu0 0
        %4487 = vmatpush1.bf16.msra.mxu0 0
        %4488 = vmatprep.subr.bf16.mxu0 0
        %4489 = vmatpush1.bf16.msra.mxu0 0
        %4490 = vmatprep.subr.bf16.mxu0 0
        %4491 = vmatpush1.bf16.msra.mxu0 0
        %4492 = vmatprep.subr.bf16.mxu0 0
        %4493 = vmatpush1.bf16.msra.mxu0 0
        %4494 = vmatprep.subr.bf16.mxu0 0
        %4495 = vmatpush1.bf16.msra.mxu0 0
        %4496 = vmatprep.mubr.bf16.mxu0 0
        %4497 = vmatmul.mubr.bf16.gmra.mrb[0].mxu0 %v3529
        %v4498 = vpop.f32.mrb[0].mxu0
        %v4499 = vadd.f32 %v3681, %v4498
        %v4500 = vpop.f32.mrb[0].mxu0
        %v4501 = vadd.f32 %v3685, %v4500
        %v4502 = vpop.f32.mrb[0].mxu0
        %v4503 = vpop.f32.mrb[0].mxu0
        %4504 = vdwg.mxu0
        %4505 = vmatprep.subr.bf16.mxu0 %v4133
        %4506 = vmatpush1.bf16.msra.mxu0 %v4132
        %4507 = vmatprep.subr.bf16.mxu0 %v4149
        %4508 = vmatpush1.bf16.msra.mxu0 %v4148
        %4509 = vmatprep.subr.bf16.mxu0 %v4165
        %4510 = vmatpush1.bf16.msra.mxu0 %v4164
        %4511 = vmatprep.subr.bf16.mxu0 %v4181
        %4512 = vmatpush1.bf16.msra.mxu0 %v4180
        %4513 = vmatprep.subr.bf16.mxu0 %v4197
        %4514 = vmatpush1.bf16.msra.mxu0 %v4196
        %4515 = vmatprep.subr.bf16.mxu0 %v4213
        %4516 = vmatpush1.bf16.msra.mxu0 %v4212
        %4517 = vmatprep.subr.bf16.mxu0 %v4229
        %4518 = vmatpush1.bf16.msra.mxu0 %v4228
        %4519 = vmatprep.subr.bf16.mxu0 %v4245
        %4520 = vmatpush1.bf16.msra.mxu0 %v4244
        %4521 = vmatprep.subr.bf16.mxu0 0
        %4522 = vmatpush1.bf16.msra.mxu0 0
        %4523 = vmatprep.subr.bf16.mxu0 0
        %4524 = vmatpush1.bf16.msra.mxu0 0
        %4525 = vmatprep.subr.bf16.mxu0 0
        %4526 = vmatpush1.bf16.msra.mxu0 0
        %4527 = vmatprep.subr.bf16.mxu0 0
        %4528 = vmatpush1.bf16.msra.mxu0 0
        %4529 = vmatprep.subr.bf16.mxu0 0
        %4530 = vmatpush1.bf16.msra.mxu0 0
        %4531 = vmatprep.subr.bf16.mxu0 0
        %4532 = vmatpush1.bf16.msra.mxu0 0
        %4533 = vmatprep.subr.bf16.mxu0 0
        %4534 = vmatpush1.bf16.msra.mxu0 0
        %4535 = vmatprep.subr.bf16.mxu0 0
        %4536 = vmatpush1.bf16.msra.mxu0 0
        %4537 = vmatprep.mubr.bf16.mxu0 0
        %4538 = vmatmul.mubr.bf16.gmra.mrb[0].mxu0 %v3529
        %v4539 = vpop.f32.mrb[0].mxu0
        %v4540 = vadd.f32 %v3689, %v4539
        %v4541 = vpop.f32.mrb[0].mxu0
        %v4542 = vadd.f32 %v3693, %v4541
        %v4543 = vpop.f32.mrb[0].mxu0
        %v4544 = vpop.f32.mrb[0].mxu0
        %4545 = vdwg.mxu0
        %4546 = vmatprep.subr.bf16.mxu0 %v4135
        %4547 = vmatpush1.bf16.msra.mxu0 %v4134
        %4548 = vmatprep.subr.bf16.mxu0 %v4151
        %4549 = vmatpush1.bf16.msra.mxu0 %v4150
        %4550 = vmatprep.subr.bf16.mxu0 %v4167
        %4551 = vmatpush1.bf16.msra.mxu0 %v4166
        %4552 = vmatprep.subr.bf16.mxu0 %v4183
        %4553 = vmatpush1.bf16.msra.mxu0 %v4182
        %4554 = vmatprep.subr.bf16.mxu0 %v4199
        %4555 = vmatpush1.bf16.msra.mxu0 %v4198
        %4556 = vmatprep.subr.bf16.mxu0 %v4215
        %4557 = vmatpush1.bf16.msra.mxu0 %v4214
        %4558 = vmatprep.subr.bf16.mxu0 %v4231
        %4559 = vmatpush1.bf16.msra.mxu0 %v4230
        %4560 = vmatprep.subr.bf16.mxu0 %v4247
        %4561 = vmatpush1.bf16.msra.mxu0 %v4246
        %4562 = vmatprep.subr.bf16.mxu0 0
        %4563 = vmatpush1.bf16.msra.mxu0 0
        %4564 = vmatprep.subr.bf16.mxu0 0
        %4565 = vmatpush1.bf16.msra.mxu0 0
        %4566 = vmatprep.subr.bf16.mxu0 0
        %4567 = vmatpush1.bf16.msra.mxu0 0
        %4568 = vmatprep.subr.bf16.mxu0 0
        %4569 = vmatpush1.bf16.msra.mxu0 0
        %4570 = vmatprep.subr.bf16.mxu0 0
        %4571 = vmatpush1.bf16.msra.mxu0 0
        %4572 = vmatprep.subr.bf16.mxu0 0
        %4573 = vmatpush1.bf16.msra.mxu0 0
        %4574 = vmatprep.subr.bf16.mxu0 0
        %4575 = vmatpush1.bf16.msra.mxu0 0
        %4576 = vmatprep.subr.bf16.mxu0 0
        %4577 = vmatpush1.bf16.msra.mxu0 0
        %4578 = vmatprep.mubr.bf16.mxu0 0
        %4579 = vmatmul.mubr.bf16.gmra.mrb[0].mxu0 %v3529
        %v4580 = vpop.f32.mrb[0].mxu0
        %v4581 = vadd.f32 %v3697, %v4580
        %v4582 = vpop.f32.mrb[0].mxu0
        %v4583 = vadd.f32 %v3701, %v4582
        %v4584 = vpop.f32.mrb[0].mxu0
        %v4585 = vpop.f32.mrb[0].mxu0
        %4586 = vdwg.mxu0
        %4587 = vmatprep.subr.bf16.mxu0 %v4137
        %4588 = vmatpush1.bf16.msra.mxu0 %v4136
        %4589 = vmatprep.subr.bf16.mxu0 %v4153
        %4590 = vmatpush1.bf16.msra.mxu0 %v4152
        %4591 = vmatprep.subr.bf16.mxu0 %v4169
        %4592 = vmatpush1.bf16.msra.mxu0 %v4168
        %4593 = vmatprep.subr.bf16.mxu0 %v4185
        %4594 = vmatpush1.bf16.msra.mxu0 %v4184
        %4595 = vmatprep.subr.bf16.mxu0 %v4201
        %4596 = vmatpush1.bf16.msra.mxu0 %v4200
        %4597 = vmatprep.subr.bf16.mxu0 %v4217
        %4598 = vmatpush1.bf16.msra.mxu0 %v4216
        %4599 = vmatprep.subr.bf16.mxu0 %v4233
        %4600 = vmatpush1.bf16.msra.mxu0 %v4232
        %4601 = vmatprep.subr.bf16.mxu0 %v4249
        %4602 = vmatpush1.bf16.msra.mxu0 %v4248
        %4603 = vmatprep.subr.bf16.mxu0 0
        %4604 = vmatpush1.bf16.msra.mxu0 0
        %4605 = vmatprep.subr.bf16.mxu0 0
        %4606 = vmatpush1.bf16.msra.mxu0 0
        %4607 = vmatprep.subr.bf16.mxu0 0
        %4608 = vmatpush1.bf16.msra.mxu0 0
        %4609 = vmatprep.subr.bf16.mxu0 0
        %4610 = vmatpush1.bf16.msra.mxu0 0
        %4611 = vmatprep.subr.bf16.mxu0 0
        %4612 = vmatpush1.bf16.msra.mxu0 0
        %4613 = vmatprep.subr.bf16.mxu0 0
        %4614 = vmatpush1.bf16.msra.mxu0 0
        %4615 = vmatprep.subr.bf16.mxu0 0
        %4616 = vmatpush1.bf16.msra.mxu0 0
        %4617 = vmatprep.subr.bf16.mxu0 0
        %4618 = vmatpush1.bf16.msra.mxu0 0
        %4619 = vmatprep.mubr.bf16.mxu0 0
        %4620 = vmatmul.mubr.bf16.gmra.mrb[0].mxu0 %v3529
        %v4621 = vpop.f32.mrb[0].mxu0
        %v4622 = vadd.f32 %v3705, %v4621
        %v4623 = vpop.f32.mrb[0].mxu0
        %v4624 = vadd.f32 %v3709, %v4623
        %v4625 = vpop.f32.mrb[0].mxu0
        %v4626 = vpop.f32.mrb[0].mxu0
        %4627 = vdwg.mxu0
        %4628 = vmatprep.subr.bf16.mxu0 %v4139
        %4629 = vmatpush1.bf16.msra.mxu0 %v4138
        %4630 = vmatprep.subr.bf16.mxu0 %v4155
        %4631 = vmatpush1.bf16.msra.mxu0 %v4154
        %4632 = vmatprep.subr.bf16.mxu0 %v4171
        %4633 = vmatpush1.bf16.msra.mxu0 %v4170
        %4634 = vmatprep.subr.bf16.mxu0 %v4187
        %4635 = vmatpush1.bf16.msra.mxu0 %v4186
        %4636 = vmatprep.subr.bf16.mxu0 %v4203
        %4637 = vmatpush1.bf16.msra.mxu0 %v4202
        %4638 = vmatprep.subr.bf16.mxu0 %v4219
        %4639 = vmatpush1.bf16.msra.mxu0 %v4218
        %4640 = vmatprep.subr.bf16.mxu0 %v4235
        %4641 = vmatpush1.bf16.msra.mxu0 %v4234
        %4642 = vmatprep.subr.bf16.mxu0 %v4251
        %4643 = vmatpush1.bf16.msra.mxu0 %v4250
        %4644 = vmatprep.subr.bf16.mxu0 0
        %4645 = vmatpush1.bf16.msra.mxu0 0
        %4646 = vmatprep.subr.bf16.mxu0 0
        %4647 = vmatpush1.bf16.msra.mxu0 0
        %4648 = vmatprep.subr.bf16.mxu0 0
        %4649 = vmatpush1.bf16.msra.mxu0 0
        %4650 = vmatprep.subr.bf16.mxu0 0
        %4651 = vmatpush1.bf16.msra.mxu0 0
        %4652 = vmatprep.subr.bf16.mxu0 0
        %4653 = vmatpush1.bf16.msra.mxu0 0
        %4654 = vmatprep.subr.bf16.mxu0 0
        %4655 = vmatpush1.bf16.msra.mxu0 0
        %4656 = vmatprep.subr.bf16.mxu0 0
        %4657 = vmatpush1.bf16.msra.mxu0 0
        %4658 = vmatprep.subr.bf16.mxu0 0
        %4659 = vmatpush1.bf16.msra.mxu0 0
        %4660 = vmatprep.mubr.bf16.mxu0 0
        %4661 = vmatmul.mubr.bf16.gmra.mrb[0].mxu0 %v3529
        %v4662 = vpop.f32.mrb[0].mxu0
        %v4663 = vadd.f32 %v3713, %v4662
        %v4664 = vpop.f32.mrb[0].mxu0
        %v4665 = vadd.f32 %v3717, %v4664
        %v4666 = vpop.f32.mrb[0].mxu0
        %v4667 = vpop.f32.mrb[0].mxu0
        %4668 = vdwg.mxu0
        %4669 = vmatprep.subr.bf16.mxu0 %v4141
        %4670 = vmatpush1.bf16.msra.mxu0 %v4140
        %4671 = vmatprep.subr.bf16.mxu0 %v4157
        %4672 = vmatpush1.bf16.msra.mxu0 %v4156
        %4673 = vmatprep.subr.bf16.mxu0 %v4173
        %4674 = vmatpush1.bf16.msra.mxu0 %v4172
        %4675 = vmatprep.subr.bf16.mxu0 %v4189
        %4676 = vmatpush1.bf16.msra.mxu0 %v4188
        %4677 = vmatprep.subr.bf16.mxu0 %v4205
        %4678 = vmatpush1.bf16.msra.mxu0 %v4204
        %4679 = vmatprep.subr.bf16.mxu0 %v4221
        %4680 = vmatpush1.bf16.msra.mxu0 %v4220
        %4681 = vmatprep.subr.bf16.mxu0 %v4237
        %4682 = vmatpush1.bf16.msra.mxu0 %v4236
        %4683 = vmatprep.subr.bf16.mxu0 %v4253
        %4684 = vmatpush1.bf16.msra.mxu0 %v4252
        %4685 = vmatprep.subr.bf16.mxu0 0
        %4686 = vmatpush1.bf16.msra.mxu0 0
        %4687 = vmatprep.subr.bf16.mxu0 0
        %4688 = vmatpush1.bf16.msra.mxu0 0
        %4689 = vmatprep.subr.bf16.mxu0 0
        %4690 = vmatpush1.bf16.msra.mxu0 0
        %4691 = vmatprep.subr.bf16.mxu0 0
        %4692 = vmatpush1.bf16.msra.mxu0 0
        %4693 = vmatprep.subr.bf16.mxu0 0
        %4694 = vmatpush1.bf16.msra.mxu0 0
        %4695 = vmatprep.subr.bf16.mxu0 0
        %4696 = vmatpush1.bf16.msra.mxu0 0
        %4697 = vmatprep.subr.bf16.mxu0 0
        %4698 = vmatpush1.bf16.msra.mxu0 0
        %4699 = vmatprep.subr.bf16.mxu0 0
        %4700 = vmatpush1.bf16.msra.mxu0 0
        %4701 = vmatprep.mubr.bf16.mxu0 0
        %4702 = vmatmul.mubr.bf16.gmra.mrb[0].mxu0 %v3529
        %v4703 = vpop.f32.mrb[0].mxu0
        %v4704 = vadd.f32 %v3721, %v4703
        %v4705 = vpop.f32.mrb[0].mxu0
        %v4706 = vadd.f32 %v3725, %v4705
        %v4707 = vpop.f32.mrb[0].mxu0
        %v4708 = vpop.f32.mrb[0].mxu0
        %4709 = vdwg.mxu0
        %4710 = vst [vmem:[%s550] sm:$0xff] %v4417
        %4711 = vst [vmem:[%s550 + $0x8] sm:$0xff] %v4419
        %4712 = vst [vmem:[%s550 + $0x10] sm:$0xff] %v4458
        %4713 = vst [vmem:[%s550 + $0x18] sm:$0xff] %v4460
        %4714 = vst [vmem:[%s550 + $0x20] sm:$0xff] %v4499
        %4715 = vst [vmem:[%s550 + $0x28] sm:$0xff] %v4501
        %4716 = vst [vmem:[%s550 + $0x30] sm:$0xff] %v4540
        %4717 = vst [vmem:[%s550 + $0x38] sm:$0xff] %v4542
        %4718 = vst [vmem:[%s550 + $0x40] sm:$0xff] %v4581
        %4719 = vst [vmem:[%s550 + $0x48] sm:$0xff] %v4583
        %4720 = vst [vmem:[%s550 + $0x50] sm:$0xff] %v4622
        %4721 = vst [vmem:[%s550 + $0x58] sm:$0xff] %v4624
        %4722 = vst [vmem:[%s550 + $0x60] sm:$0xff] %v4663
        %4723 = vst [vmem:[%s550 + $0x68] sm:$0xff] %v4665
        %4724 = vst [vmem:[%s550 + $0x70] sm:$0xff] %v4704
        %4725 = vst [vmem:[%s550 + $0x78] sm:$0xff] %v4706
        %s4726 = sand.u32 %s406, 1
        %s4727 = scalar_lea.sflag [#allocation3], %s4726
        %s4728 = sand.u32 %s406, 1
        %s4729 = smul.addr %s4728, 128
        %s4730 = scalar_lea.vmem [#allocation2], %s4729
        // Predicated region
        $region89: #{tpu_custom_call.1} parent=87 // pred_check
          %p4731 = pneg %p416
        $region90: #{tpu_custom_call.1} parent=87 // pred_check_branch
          %4733 = sbr.rel (%p4731) target = $region92
        $region91: #{tpu_custom_call.1} parent=87 // pred_region
          %s4735 = ssub.s32 2048, 2048
          %4736 = vsyncadd %s4727, %s4735
          %s4737 = smul.addr %s31, 16
          %s4738 = smul.addr %s4737, 128
          %s4739 = scalar_lea.hbm %s17, %s4738
          %s4741 = sshll.u32 %s4730, 4
          %s4742 = int_to_ptr.vmem [resolvable:$true] %s4741
          %4744 = dma.vmem_to_hbm [thread:$0]  %s4742, 2048, %s4739, %s4727
        $region92: #{tpu_custom_call.1} parent=87 // pred_fallthru
          _
      $region88: #{tpu_custom_call.1} parent=5 // pred_fallthru
        _
      %p4745 = scmp.le.s32.totalorder 2, %s26
      // Predicated region
      $region93: #{tpu_custom_call.1} parent=5 // pred_check
        %p4746 = pneg %p4745
      $region94: #{tpu_custom_call.1} parent=5 // pred_check_branch
        %4748 = sbr.rel (%p4746) target = $region96
      $region95: #{tpu_custom_call.1} parent=5 // pred_region
        %s4749 = ssub.s32 %s26, 2
        // Predicated region
        $region97: #{tpu_custom_call.1} parent=95 // pred_check
          %p4750 = pneg %p422
        $region98: #{tpu_custom_call.1} parent=95 // pred_check_branch
          %4752 = sbr.rel (%p4750) target = $region100
        $region99: #{tpu_custom_call.1} parent=95 // pred_region
          %s4753 = sand.u32 %s407, 1
          %s4754 = scalar_lea.sflag [#allocation3], %s4753
          %s4755 = sand.u32 %s407, 1
          %s4756 = smul.addr %s4755, 128
          %s4757 = scalar_lea.vmem [#allocation2], %s4756
          %4758 = dma.done %s4754, 2048
        $region100: #{tpu_custom_call.1} parent=95 // pred_fallthru
          _
      $region96: #{tpu_custom_call.1} parent=5 // pred_fallthru
        _
    $region6: #{tpu_custom_call.1} parent=1 // loop_footer
      %s30 = sadd.s32 1, %s26
    $region7: #{tpu_custom_call.1} parent=1 // loop_footer_branch
      %25 = sbr.rel target = $region3
    $region8: #{tpu_custom_call.1} parent=1 // loop_exit
      _
    %4759 = vsyncpa [#allocation3], 1
    %s4760 = scalar_lea.sflag [#allocation3], 1
    %4761 = vsyncpa %s4760, 1

</llo_original>
